<compile_context>
chip_gen: v7x
topology: tpu7x:2x2x1
jax: 0.10.0
libtpu: 0.0.40
codegen_flags: <defaults>
</compile_context>

<pallas_src>
import functools

import jax
import jax.numpy as jnp
import numpy as np
from jax.experimental import pallas as pl
from jax.experimental.pallas import tpu as pltpu


# -----------------------------------------------------------------------------
# Row-tiled linear kernel:  y = x @ W + b
#   x:[N,Din], W:[Din,Dout], b:[1,Dout]   (grid over row tiles, 'parallel')
# -----------------------------------------------------------------------------
def _linear_kernel(x_ref, w_ref, b_ref, o_ref):
    o_ref[...] = (
        jnp.dot(x_ref[...], w_ref[...], preferred_element_type=jnp.float32)
        + b_ref[...]
    )


def pallas_linear(x, w, b, tile_n=256):
    n, din = x.shape
    dout = w.shape[1]
    tn = n if n <= tile_n else tile_n
    grid = (pl.cdiv(n, tn),)
    return pl.pallas_call(
        _linear_kernel,
        out_shape=jax.ShapeDtypeStruct((n, dout), jnp.float32),
        grid=grid,
        in_specs=[
            pl.BlockSpec((tn, din), lambda i: (i, 0)),
            pl.BlockSpec((din, dout), lambda i: (0, 0)),
            pl.BlockSpec((1, dout), lambda i: (0, 0)),
        ],
        out_specs=pl.BlockSpec((tn, dout), lambda i: (i, 0)),
        compiler_params=pltpu.CompilerParams(
            dimension_semantics=("parallel",)
        ),
    )(x, w, b)


# -----------------------------------------------------------------------------
# Fused bidirectional LSTM recurrence.  Single pallas_call (no grid); the time
# loop runs inside the kernel.  Both directions advance together each step:
#   h = [h_fwd | h_bwd]  (B, 2H),   W_hh block-diagonal  (2H, 8H)
#   gates_fwd come from xproj[t, :, :4H],  gates_bwd from xproj[T-1-t, :, 4H:]
# Output [T, B, 2H]: columns [0:H] forward hidden, [H:2H] backward hidden.
# PyTorch gate order inside each 4H block: i, f, g, o.
# Biases (b_ih + b_hh, both directions) are already folded into xproj.
# -----------------------------------------------------------------------------
def _blstm_kernel(xproj_ref, whh_ref, out_ref):
    t_len, batch, g8 = xproj_ref.shape
    hdim = g8 // 8
    h4 = 4 * hdim
    whh = whh_ref[...]  # [2H, 8H], loaded once, stays in vregs/VMEM

    def lstm_cell(gates, c_prev):
        i_g = jax.nn.sigmoid(gates[:, 0 * hdim:1 * hdim])
        f_g = jax.nn.sigmoid(gates[:, 1 * hdim:2 * hdim])
        g_g = jnp.tanh(gates[:, 2 * hdim:3 * hdim])
        o_g = jax.nn.sigmoid(gates[:, 3 * hdim:4 * hdim])
        c_new = f_g * c_prev + i_g * g_g
        h_new = o_g * jnp.tanh(c_new)
        return h_new, c_new

    def step(t, carry):
        h, c_f, c_b = carry
        tr = t_len - 1 - t
        x_t = xproj_ref[t]      # [B, 8H]  (forward uses first 4H)
        x_r = xproj_ref[tr]     # [B, 8H]  (backward uses last  4H)
        hw = jnp.dot(h, whh, preferred_element_type=jnp.float32)  # [B, 8H]
        gates_f = x_t[:, :h4] + hw[:, :h4]
        gates_b = x_r[:, h4:] + hw[:, h4:]
        h_f, c_f_new = lstm_cell(gates_f, c_f)
        h_b, c_b_new = lstm_cell(gates_b, c_b)
        # Writes land in the VMEM-resident output block; HBM writeback happens
        # once, lane-dense, when the kernel finishes.
        out_ref[pl.ds(t, 1), :, 0:hdim] = h_f.reshape(1, batch, hdim)
        out_ref[pl.ds(tr, 1), :, hdim:2 * hdim] = h_b.reshape(1, batch, hdim)
        h_new = jnp.concatenate([h_f, h_b], axis=-1)
        return h_new, c_f_new, c_b_new

    h0 = jnp.zeros((batch, 2 * hdim), jnp.float32)
    c0 = jnp.zeros((batch, hdim), jnp.float32)
    jax.lax.fori_loop(0, t_len, step, (h0, c0, c0))


def pallas_blstm_recurrence(xproj, whh_bd):
    t_len, batch, g8 = xproj.shape
    hdim = g8 // 8
    return pl.pallas_call(
        _blstm_kernel,
        out_shape=jax.ShapeDtypeStruct((t_len, batch, 2 * hdim), jnp.float32),
        in_specs=[
            pl.BlockSpec((t_len, batch, g8), lambda: (0, 0, 0)),
            pl.BlockSpec((2 * hdim, g8), lambda: (0, 0)),
        ],
        out_specs=pl.BlockSpec((t_len, batch, 2 * hdim), lambda: (0, 0, 0)),
    )(xproj, whh_bd)


def blstm_layer(x, p):
    """x: [T, B, Din] -> [T, B, 2H] using the fused-direction recurrence."""
    t_len, batch, din = x.shape
    xflat = x.reshape(t_len * batch, din)
    # One matmul for both directions; all four biases folded in.
    xproj = pallas_linear(xflat, p["w_ih_cat"], p["b_cat"])  # [T*B, 8H]
    xproj = xproj.reshape(t_len, batch, -1)
    return pallas_blstm_recurrence(xproj, p["whh_bd"])


# -----------------------------------------------------------------------------
# Fused epilogue: out_projection + KAN layer1 + KAN layer2 + residual add,
# row-tiled over N = T*B.  KANLinear (efficient-KAN style):
#   y = SiLU(x) @ base_w  +  Bspline(x) @ spline_w_flat
# with Bspline(x): [N, NUM_BASES*Din] (basis-major) and spline_w_flat the
# host-side reshape of [NUM_BASES, Din, Dout] -> [NUM_BASES*Din, Dout], so the
# whole spline path is ONE K=8*Din matmul.
# -----------------------------------------------------------------------------
GRID_SIZE = 5
SPLINE_ORDER = 3
GRID_RANGE = (-1.0, 1.0)
_H = (GRID_RANGE[1] - GRID_RANGE[0]) / GRID_SIZE
GRID_PTS = [
    float(GRID_RANGE[0] + _H * j)
    for j in range(-SPLINE_ORDER, GRID_SIZE + SPLINE_ORDER + 1)
]  # 12 knots
NUM_BASES = GRID_SIZE + SPLINE_ORDER  # 8


def _bspline_bases(x):
    """Cox-de Boor recursion on a static grid. x:[N,D] -> [N, NUM_BASES*D]."""
    bases = [
        jnp.where((x >= GRID_PTS[j]) & (x < GRID_PTS[j + 1]), 1.0, 0.0)
        for j in range(len(GRID_PTS) - 1)
    ]
    for p in range(1, SPLINE_ORDER + 1):
        new_bases = []
        for j in range(len(bases) - 1):
            left = (x - GRID_PTS[j]) / (GRID_PTS[j + p] - GRID_PTS[j]) * bases[j]
            right = (
                (GRID_PTS[j + p + 1] - x)
                / (GRID_PTS[j + p + 1] - GRID_PTS[j + 1])
                * bases[j + 1]
            )
            new_bases.append(left + right)
        bases = new_bases
    return jnp.concatenate(bases, axis=-1)  # basis-major feature layout


def _kan_linear(x, base_w, spline_w_flat):
    out = jnp.dot(
        x * jax.nn.sigmoid(x), base_w, preferred_element_type=jnp.float32
    )
    out = out + jnp.dot(
        _bspline_bases(x), spline_w_flat, preferred_element_type=jnp.float32
    )
    return out


def _epilogue_kernel(h_ref, pw_ref, pb_ref, bw1_ref, sw1_ref, bw2_ref, sw2_ref,
                     o_ref):
    x = h_ref[...]  # [tile, 2H]
    initial = (
        jnp.dot(x, pw_ref[...], preferred_element_type=jnp.float32)
        + pb_ref[...]
    )
    z = _kan_linear(initial, bw1_ref[...], sw1_ref[...])
    residual = _kan_linear(z, bw2_ref[...], sw2_ref[...])
    o_ref[...] = initial + residual


def fused_projection_resnet(h, prep, tile_n=256):
    n, d2h = h.shape
    dout = prep["proj_w_t"].shape[1]
    tn = n if n <= tile_n else tile_n
    grid = (pl.cdiv(n, tn),)

    def full_spec(shape):
        return pl.BlockSpec(shape, lambda i, _n=len(shape): (0,) * _n)

    return pl.pallas_call(
        _epilogue_kernel,
        out_shape=jax.ShapeDtypeStruct((n, dout), jnp.float32),
        grid=grid,
        in_specs=[
            pl.BlockSpec((tn, d2h), lambda i: (i, 0)),
            full_spec(prep["proj_w_t"].shape),
            full_spec(prep["proj_b"].shape),
            full_spec(prep["kan1_base_w"].shape),
            full_spec(prep["kan1_spline_w"].shape),
            full_spec(prep["kan2_base_w"].shape),
            full_spec(prep["kan2_spline_w"].shape),
        ],
        out_specs=pl.BlockSpec((tn, dout), lambda i: (i, 0)),
        compiler_params=pltpu.CompilerParams(
            dimension_semantics=("parallel",)
        ),
    )(h, prep["proj_w_t"], prep["proj_b"], prep["kan1_base_w"],
      prep["kan1_spline_w"], prep["kan2_base_w"], prep["kan2_spline_w"])


# -----------------------------------------------------------------------------
# Parameter initialization (deterministic, PyTorch-like uniform fan-in init)
# and host-side preparation of fused/packed weight layouts.
# -----------------------------------------------------------------------------
def _uniform(key, shape, scale):
    return jax.random.uniform(key, shape, jnp.float32, -scale, scale)


def init_lstm_dir(key, in_dim, hidden):
    k = jax.random.split(key, 4)
    s = 1.0 / np.sqrt(hidden)
    return {
        "w_ih_t": _uniform(k[0], (in_dim, 4 * hidden), s),
        "w_hh_t": _uniform(k[1], (hidden, 4 * hidden), s),
        "b_ih": _uniform(k[2], (1, 4 * hidden), s),
        "b_hh": _uniform(k[3], (1, 4 * hidden), s),
    }


def init_kan_layer(key, din, dout):
    k = jax.random.split(key, 2)
    base_scale = 1.0 / np.sqrt(din)
    spline_scale = 0.1 / np.sqrt(din)
    return {
        "base_w": _uniform(k[0], (din, dout), base_scale),
        "spline_w": _uniform(k[1], (NUM_BASES, din, dout), spline_scale),
    }


def init_params(key, in_channels, out_channels, lstm_hidden, hidden_units):
    keys = jax.random.split(key, 8)
    s_proj = 1.0 / np.sqrt(2 * lstm_hidden)
    return {
        "blstm1": {
            "fwd": init_lstm_dir(keys[0], in_channels, lstm_hidden),
            "bwd": init_lstm_dir(keys[1], in_channels, lstm_hidden),
        },
        "blstm2": {
            "fwd": init_lstm_dir(keys[2], 2 * lstm_hidden, lstm_hidden),
            "bwd": init_lstm_dir(keys[3], 2 * lstm_hidden, lstm_hidden),
        },
        "proj_w_t": _uniform(keys[4], (2 * lstm_hidden, out_channels), s_proj),
        "proj_b": _uniform(keys[5], (1, out_channels), s_proj),
        "kan1": init_kan_layer(keys[6], out_channels, hidden_units),
        "kan2": init_kan_layer(keys[7], hidden_units, out_channels),
    }


def prepare_params(params, lstm_hidden):
    """Build the fused weight layouts consumed by the Pallas kernels."""
    hd = lstm_hidden

    def prep_blstm(layer):
        f, b = layer["fwd"], layer["bwd"]
        # [Din, 8H]: forward gate block (i,f,g,o) then backward gate block.
        w_ih_cat = jnp.concatenate([f["w_ih_t"], b["w_ih_t"]], axis=1)
        # Fold all four biases into the input projection.
        b_cat = jnp.concatenate(
            [f["b_ih"] + f["b_hh"], b["b_ih"] + b["b_hh"]], axis=1
        )
        # Block-diagonal recurrent weights: one matmul drives both directions.
        whh_bd = jnp.zeros((2 * hd, 8 * hd), jnp.float32)
        whh_bd = whh_bd.at[:hd, :4 * hd].set(f["w_hh_t"])
        whh_bd = whh_bd.at[hd:, 4 * hd:].set(b["w_hh_t"])
        return {"w_ih_cat": w_ih_cat, "b_cat": b_cat, "whh_bd": whh_bd}

    def flat_spline(w):  # [NUM_BASES, Din, Dout] -> [NUM_BASES*Din, Dout]
        return w.reshape(-1, w.shape[-1])

    return {
        "blstm1": prep_blstm(params["blstm1"]),
        "blstm2": prep_blstm(params["blstm2"]),
        "proj_w_t": params["proj_w_t"],
        "proj_b": params["proj_b"],
        "kan1_base_w": params["kan1"]["base_w"],
        "kan1_spline_w": flat_spline(params["kan1"]["spline_w"]),
        "kan2_base_w": params["kan2"]["base_w"],
        "kan2_spline_w": flat_spline(params["kan2"]["spline_w"]),
    }


# -----------------------------------------------------------------------------
# Full forward pass
# -----------------------------------------------------------------------------
@jax.jit
def blstm_res_conversion_forward(x, prep):
    """x: [T, B, in_channels] -> [T, B, out_channels]."""
    t_len, batch, _ = x.shape
    h1 = blstm_layer(x, prep["blstm1"])     # [T, B, 2H]
    h2 = blstm_layer(h1, prep["blstm2"])    # [T, B, 2H]
    flat = h2.reshape(t_len * batch, -1)
    final = fused_projection_resnet(flat, prep)   # [T*B, out]
    return final.reshape(t_len, batch, -1)


if __name__ == "__main__":
    # Small, model-consistent shapes.
    T, B = 8, 2
    IN_CHANNELS = 16      # bnf_dim + f0s_dim
    OUT_CHANNELS = 16     # mel dimension
    LSTM_HIDDEN = 32
    HIDDEN_UNITS = 32     # other_params['hidden_units']

    key = jax.random.PRNGKey(0)
    k_x, k_p = jax.random.split(key)
    x = jax.random.normal(k_x, (T, B, IN_CHANNELS), jnp.float32)
    params = init_params(k_p, IN_CHANNELS, OUT_CHANNELS, LSTM_HIDDEN,
                         HIDDEN_UNITS)
    prep = prepare_params(params, LSTM_HIDDEN)

    out = blstm_res_conversion_forward(x, prep)
    out = jax.block_until_ready(out)
    assert out.shape == (T, B, OUT_CHANNELS), out.shape
    assert bool(jnp.all(jnp.isfinite(out)))
    print("KERNEL_OK")
</pallas_src>

<mosaic_0001>
module attributes {stable_mosaic.version = 11 : i64} {
  func.func @_linear_kernel(%arg0: i32, %arg1: memref<16x64xf32, #tpu.memory_space<vmem>>, %arg2: memref<64x256xf32, #tpu.memory_space<vmem>>, %arg3: memref<1x256xf32, #tpu.memory_space<vmem>>, %arg4: memref<16x256xf32, #tpu.memory_space<vmem>>) attributes {dimension_semantics = [#tpu.dimension_semantics<parallel>], iteration_bounds = array<i64: 1>, scalar_prefetch = 0 : i64, scratch_operands = 0 : i64, tpu.core_type = #tpu.core_type<tc>, window_params = [{transform_indices = @transform_0, window_bounds = array<i64: 16, 64>}, {pipeline_mode = #tpu.pipeline_mode<synchronous>, transform_indices = @transform_1, window_bounds = array<i64: 64, 256>}, {pipeline_mode = #tpu.pipeline_mode<synchronous>, transform_indices = @transform_2, window_bounds = array<i64: 1, 256>}, {transform_indices = @transform_3, window_bounds = array<i64: 16, 256>}]} {
    %c0 = arith.constant 0 : index
    %c0_0 = arith.constant 0 : index
    %0 = vector.load %arg1[%c0, %c0_0] : memref<16x64xf32, #tpu.memory_space<vmem>>, vector<16x64xf32>
    %c0_1 = arith.constant 0 : index
    %c0_2 = arith.constant 0 : index
    %1 = vector.load %arg2[%c0_1, %c0_2] : memref<64x256xf32, #tpu.memory_space<vmem>>, vector<64x256xf32>
    %cst = arith.constant dense<0.000000e+00> : vector<16x256xf32>
    %2 = tpu.matmul %0, %1, %cst {dimension_numbers = #tpu.dot_dimension_numbers<[1], [0], [0], [1], [0, 0, 1, 1], [], []>} : vector<16x64xf32>, vector<64x256xf32>, vector<16x256xf32> -> vector<16x256xf32>
    %c0_3 = arith.constant 0 : index
    %c0_4 = arith.constant 0 : index
    %3 = vector.load %arg3[%c0_3, %c0_4] : memref<1x256xf32, #tpu.memory_space<vmem>>, vector<1x256xf32>
    %4 = vector.broadcast %3 : vector<1x256xf32> to vector<16x256xf32>
    %5 = arith.addf %2, %4 : vector<16x256xf32>
    %c0_5 = arith.constant 0 : index
    %c0_6 = arith.constant 0 : index
    %6 = vector.load %arg4[%c0_5, %c0_6] : memref<16x256xf32, #tpu.memory_space<vmem>>, vector<16x256xf32>
    tpu.vector_store %arg4[%c0_5, %c0_6], %5 {strides = array<i32>} : memref<16x256xf32, #tpu.memory_space<vmem>>, vector<16x256xf32>,
    return
  }
  func.func @transform_0(%arg0: i32) -> (i32, i32) {
    %c0_i32 = arith.constant 0 : i32
    %c0_i32_0 = arith.constant 0 : i32
    return %arg0, %c0_i32 : i32, i32
  }
  func.func @transform_1(%arg0: i32) -> (i32, i32) {
    %c0_i32 = arith.constant 0 : i32
    %c0_i32_0 = arith.constant 0 : i32
    %c0_i32_1 = arith.constant 0 : i32
    return %c0_i32, %c0_i32_0 : i32, i32
  }
  func.func @transform_2(%arg0: i32) -> (i32, i32) {
    %c0_i32 = arith.constant 0 : i32
    %c0_i32_0 = arith.constant 0 : i32
    %c0_i32_1 = arith.constant 0 : i32
    return %c0_i32, %c0_i32_0 : i32, i32
  }
  func.func @transform_3(%arg0: i32) -> (i32, i32) {
    %c0_i32 = arith.constant 0 : i32
    %c0_i32_0 = arith.constant 0 : i32
    return %arg0, %c0_i32 : i32, i32
  }
}

module attributes {stable_mosaic.version = 11 : i64} {
  func.func @_linear_kernel(%arg0: i32, %arg1: memref<16x16xf32, #tpu.memory_space<vmem>>, %arg2: memref<16x256xf32, #tpu.memory_space<vmem>>, %arg3: memref<1x256xf32, #tpu.memory_space<vmem>>, %arg4: memref<16x256xf32, #tpu.memory_space<vmem>>) attributes {dimension_semantics = [#tpu.dimension_semantics<parallel>], iteration_bounds = array<i64: 1>, scalar_prefetch = 0 : i64, scratch_operands = 0 : i64, tpu.core_type = #tpu.core_type<tc>, window_params = [{transform_indices = @transform_0, window_bounds = array<i64: 16, 16>}, {pipeline_mode = #tpu.pipeline_mode<synchronous>, transform_indices = @transform_1, window_bounds = array<i64: 16, 256>}, {pipeline_mode = #tpu.pipeline_mode<synchronous>, transform_indices = @transform_2, window_bounds = array<i64: 1, 256>}, {transform_indices = @transform_3, window_bounds = array<i64: 16, 256>}]} {
    %c0 = arith.constant 0 : index
    %c0_0 = arith.constant 0 : index
    %0 = vector.load %arg1[%c0, %c0_0] : memref<16x16xf32, #tpu.memory_space<vmem>>, vector<16x16xf32>
    %c0_1 = arith.constant 0 : index
    %c0_2 = arith.constant 0 : index
    %1 = vector.load %arg2[%c0_1, %c0_2] : memref<16x256xf32, #tpu.memory_space<vmem>>, vector<16x256xf32>
    %cst = arith.constant dense<0.000000e+00> : vector<16x256xf32>
    %2 = tpu.matmul %0, %1, %cst {dimension_numbers = #tpu.dot_dimension_numbers<[1], [0], [0], [1], [0, 0, 1, 1], [], []>} : vector<16x16xf32>, vector<16x256xf32>, vector<16x256xf32> -> vector<16x256xf32>
    %c0_3 = arith.constant 0 : index
    %c0_4 = arith.constant 0 : index
    %3 = vector.load %arg3[%c0_3, %c0_4] : memref<1x256xf32, #tpu.memory_space<vmem>>, vector<1x256xf32>
    %4 = vector.broadcast %3 : vector<1x256xf32> to vector<16x256xf32>
    %5 = arith.addf %2, %4 : vector<16x256xf32>
    %c0_5 = arith.constant 0 : index
    %c0_6 = arith.constant 0 : index
    %6 = vector.load %arg4[%c0_5, %c0_6] : memref<16x256xf32, #tpu.memory_space<vmem>>, vector<16x256xf32>
    tpu.vector_store %arg4[%c0_5, %c0_6], %5 {strides = array<i32>} : memref<16x256xf32, #tpu.memory_space<vmem>>, vector<16x256xf32>,
    return
  }
  func.func @transform_0(%arg0: i32) -> (i32, i32) {
    %c0_i32 = arith.constant 0 : i32
    %c0_i32_0 = arith.constant 0 : i32
    return %arg0, %c0_i32 : i32, i32
  }
  func.func @transform_1(%arg0: i32) -> (i32, i32) {
    %c0_i32 = arith.constant 0 : i32
    %c0_i32_0 = arith.constant 0 : i32
    %c0_i32_1 = arith.constant 0 : i32
    return %c0_i32, %c0_i32_0 : i32, i32
  }
  func.func @transform_2(%arg0: i32) -> (i32, i32) {
    %c0_i32 = arith.constant 0 : i32
    %c0_i32_0 = arith.constant 0 : i32
    %c0_i32_1 = arith.constant 0 : i32
    return %c0_i32, %c0_i32_0 : i32, i32
  }
  func.func @transform_3(%arg0: i32) -> (i32, i32) {
    %c0_i32 = arith.constant 0 : i32
    %c0_i32_0 = arith.constant 0 : i32
    return %arg0, %c0_i32 : i32, i32
  }
}

module attributes {stable_mosaic.version = 11 : i64} {
  func.func @_blstm_kernel(%arg0: memref<8x2x256xf32, #tpu.memory_space<vmem>>, %arg1: memref<64x256xf32, #tpu.memory_space<vmem>>, %arg2: memref<8x2x64xf32, #tpu.memory_space<vmem>>) attributes {dimension_semantics = [], scalar_prefetch = 0 : i64, scratch_operands = 0 : i64, tpu.core_type = #tpu.core_type<tc>} {
    %c0 = arith.constant 0 : index
    %c0_0 = arith.constant 0 : index
    %0 = vector.load %arg1[%c0, %c0_0] : memref<64x256xf32, #tpu.memory_space<vmem>>, vector<64x256xf32>
    %cst = arith.constant 0.000000e+00 : f32
    %1 = vector.broadcast %cst : f32 to vector<2x64xf32>
    %cst_1 = arith.constant 0.000000e+00 : f32
    %2 = vector.broadcast %cst_1 : f32 to vector<2x32xf32>
    %c0_i32 = arith.constant 0 : i32
    %c8_i32 = arith.constant 8 : i32
    %3 = arith.addi %c0_i32, %c8_i32 : i32
    %c1_i32 = arith.constant 1 : i32
    %4:3 = scf.for %arg3 = %c0_i32 to %3 step %c1_i32 iter_args(%arg4 = %1, %arg5 = %2, %arg6 = %2) -> (vector<2x64xf32>, vector<2x32xf32>, vector<2x32xf32>)  : i32 {
      %c7_i32 = arith.constant 7 : i32
      %5 = arith.subi %c7_i32, %arg3 : i32
      %6 = arith.index_cast %arg3 : i32 to index
      %c0_3 = arith.constant 0 : index
      %c0_4 = arith.constant 0 : index
      %7 = vector.load %arg0[%6, %c0_3, %c0_4] : memref<8x2x256xf32, #tpu.memory_space<vmem>>, vector<1x2x256xf32>
      %8 = vector.shape_cast %7 : vector<1x2x256xf32> to vector<2x256xf32>
      %9 = arith.index_cast %5 : i32 to index
      %c0_5 = arith.constant 0 : index
      %c0_6 = arith.constant 0 : index
      %10 = vector.load %arg0[%9, %c0_5, %c0_6] : memref<8x2x256xf32, #tpu.memory_space<vmem>>, vector<1x2x256xf32>
      %11 = vector.shape_cast %10 : vector<1x2x256xf32> to vector<2x256xf32>
      %cst_7 = arith.constant dense<0.000000e+00> : vector<2x256xf32>
      %12 = tpu.matmul %arg4, %0, %cst_7 {dimension_numbers = #tpu.dot_dimension_numbers<[1], [0], [0], [1], [0, 0, 1, 1], [], []>} : vector<2x64xf32>, vector<64x256xf32>, vector<2x256xf32> -> vector<2x256xf32>
      %13 = vector.extract_strided_slice %8 {offsets = [0, 0], sizes = [2, 128], strides = [1, 1]} : vector<2x256xf32> to vector<2x128xf32>
      %14 = vector.extract_strided_slice %12 {offsets = [0, 0], sizes = [2, 128], strides = [1, 1]} : vector<2x256xf32> to vector<2x128xf32>
      %15 = arith.addf %13, %14 : vector<2x128xf32>
      %16 = vector.extract_strided_slice %11 {offsets = [0, 128], sizes = [2, 128], strides = [1, 1]} : vector<2x256xf32> to vector<2x128xf32>
      %17 = vector.extract_strided_slice %12 {offsets = [0, 128], sizes = [2, 128], strides = [1, 1]} : vector<2x256xf32> to vector<2x128xf32>
      %18 = arith.addf %16, %17 : vector<2x128xf32>
      %19 = vector.extract_strided_slice %15 {offsets = [0, 0], sizes = [2, 32], strides = [1, 1]} : vector<2x128xf32> to vector<2x32xf32>
      %20 = arith.negf %19 : vector<2x32xf32>
      %21 = math.exp %20 : vector<2x32xf32>
      %cst_8 = arith.constant 1.000000e+00 : f32
      %22 = vector.broadcast %cst_8 : f32 to vector<2x32xf32>
      %23 = arith.addf %22, %21 : vector<2x32xf32>
      %24 = arith.divf %22, %23 : vector<2x32xf32>
      %25 = vector.extract_strided_slice %15 {offsets = [0, 32], sizes = [2, 32], strides = [1, 1]} : vector<2x128xf32> to vector<2x32xf32>
      %26 = arith.negf %25 : vector<2x32xf32>
      %27 = math.exp %26 : vector<2x32xf32>
      %cst_9 = arith.constant 1.000000e+00 : f32
      %28 = vector.broadcast %cst_9 : f32 to vector<2x32xf32>
      %29 = arith.addf %28, %27 : vector<2x32xf32>
      %30 = arith.divf %28, %29 : vector<2x32xf32>
      %31 = vector.extract_strided_slice %15 {offsets = [0, 64], sizes = [2, 32], strides = [1, 1]} : vector<2x128xf32> to vector<2x32xf32>
      %32 = math.tanh %31 : vector<2x32xf32>
      %33 = vector.extract_strided_slice %15 {offsets = [0, 96], sizes = [2, 32], strides = [1, 1]} : vector<2x128xf32> to vector<2x32xf32>
      %34 = arith.negf %33 : vector<2x32xf32>
      %35 = math.exp %34 : vector<2x32xf32>
      %cst_10 = arith.constant 1.000000e+00 : f32
      %36 = vector.broadcast %cst_10 : f32 to vector<2x32xf32>
      %37 = arith.addf %36, %35 : vector<2x32xf32>
      %38 = arith.divf %36, %37 : vector<2x32xf32>
      %39 = arith.mulf %30, %arg5 : vector<2x32xf32>
      %40 = arith.mulf %24, %32 : vector<2x32xf32>
      %41 = arith.addf %39, %40 : vector<2x32xf32>
      %42 = math.tanh %41 : vector<2x32xf32>
      %43 = arith.mulf %38, %42 : vector<2x32xf32>
      %44 = vector.extract_strided_slice %18 {offsets = [0, 0], sizes = [2, 32], strides = [1, 1]} : vector<2x128xf32> to vector<2x32xf32>
      %45 = arith.negf %44 : vector<2x32xf32>
      %46 = math.exp %45 : vector<2x32xf32>
      %cst_11 = arith.constant 1.000000e+00 : f32
      %47 = vector.broadcast %cst_11 : f32 to vector<2x32xf32>
      %48 = arith.addf %47, %46 : vector<2x32xf32>
      %49 = arith.divf %47, %48 : vector<2x32xf32>
      %50 = vector.extract_strided_slice %18 {offsets = [0, 32], sizes = [2, 32], strides = [1, 1]} : vector<2x128xf32> to vector<2x32xf32>
      %51 = arith.negf %50 : vector<2x32xf32>
      %52 = math.exp %51 : vector<2x32xf32>
      %cst_12 = arith.constant 1.000000e+00 : f32
      %53 = vector.broadcast %cst_12 : f32 to vector<2x32xf32>
      %54 = arith.addf %53, %52 : vector<2x32xf32>
      %55 = arith.divf %53, %54 : vector<2x32xf32>
      %56 = vector.extract_strided_slice %18 {offsets = [0, 64], sizes = [2, 32], strides = [1, 1]} : vector<2x128xf32> to vector<2x32xf32>
      %57 = math.tanh %56 : vector<2x32xf32>
      %58 = vector.extract_strided_slice %18 {offsets = [0, 96], sizes = [2, 32], strides = [1, 1]} : vector<2x128xf32> to vector<2x32xf32>
      %59 = arith.negf %58 : vector<2x32xf32>
      %60 = math.exp %59 : vector<2x32xf32>
      %cst_13 = arith.constant 1.000000e+00 : f32
      %61 = vector.broadcast %cst_13 : f32 to vector<2x32xf32>
      %62 = arith.addf %61, %60 : vector<2x32xf32>
      %63 = arith.divf %61, %62 : vector<2x32xf32>
      %64 = arith.mulf %55, %arg6 : vector<2x32xf32>
      %65 = arith.mulf %49, %57 : vector<2x32xf32>
      %66 = arith.addf %64, %65 : vector<2x32xf32>
      %67 = math.tanh %66 : vector<2x32xf32>
      %68 = arith.mulf %63, %67 : vector<2x32xf32>
      %69 = vector.shape_cast %43 : vector<2x32xf32> to vector<1x2x32xf32>
      %70 = arith.index_cast %arg3 : i32 to index
      %c0_14 = arith.constant 0 : index
      %c0_15 = arith.constant 0 : index
      %71 = vector.load %arg2[%70, %c0_14, %c0_15] : memref<8x2x64xf32, #tpu.memory_space<vmem>>, vector<1x2x32xf32>
      tpu.vector_store %arg2[%70, %c0_14, %c0_15], %69 {strides = array<i32>} : memref<8x2x64xf32, #tpu.memory_space<vmem>>, vector<1x2x32xf32>,
      %72 = vector.shape_cast %68 : vector<2x32xf32> to vector<1x2x32xf32>
      %73 = arith.index_cast %5 : i32 to index
      %c0_16 = arith.constant 0 : index
      %c32 = arith.constant 32 : index
      %74 = vector.load %arg2[%73, %c0_16, %c32] : memref<8x2x64xf32, #tpu.memory_space<vmem>>, vector<1x2x32xf32>
      tpu.vector_store %arg2[%73, %c0_16, %c32], %72 {strides = array<i32>} : memref<8x2x64xf32, #tpu.memory_space<vmem>>, vector<1x2x32xf32>,
      %75 = tpu.concatenate %43, %68 in 1 : vector<2x32xf32>, vector<2x32xf32> -> vector<2x64xf32>
      scf.yield %75, %41, %66 : vector<2x64xf32>, vector<2x32xf32>, vector<2x32xf32>
    }
    %c8_i32_2 = arith.constant 8 : i32
    return
  }
}

module attributes {stable_mosaic.version = 11 : i64} {
  func.func @_epilogue_kernel(%arg0: i32, %arg1: memref<16x64xf32, #tpu.memory_space<vmem>>, %arg2: memref<64x16xf32, #tpu.memory_space<vmem>>, %arg3: memref<1x16xf32, #tpu.memory_space<vmem>>, %arg4: memref<16x32xf32, #tpu.memory_space<vmem>>, %arg5: memref<128x32xf32, #tpu.memory_space<vmem>>, %arg6: memref<32x16xf32, #tpu.memory_space<vmem>>, %arg7: memref<256x16xf32, #tpu.memory_space<vmem>>, %arg8: memref<16x16xf32, #tpu.memory_space<vmem>>) attributes {dimension_semantics = [#tpu.dimension_semantics<parallel>], iteration_bounds = array<i64: 1>, scalar_prefetch = 0 : i64, scratch_operands = 0 : i64, tpu.core_type = #tpu.core_type<tc>, window_params = [{transform_indices = @transform_0, window_bounds = array<i64: 16, 64>}, {pipeline_mode = #tpu.pipeline_mode<synchronous>, transform_indices = @transform_1, window_bounds = array<i64: 64, 16>}, {pipeline_mode = #tpu.pipeline_mode<synchronous>, transform_indices = @transform_2, window_bounds = array<i64: 1, 16>}, {pipeline_mode = #tpu.pipeline_mode<synchronous>, transform_indices = @transform_3, window_bounds = array<i64: 16, 32>}, {pipeline_mode = #tpu.pipeline_mode<synchronous>, transform_indices = @transform_4, window_bounds = array<i64: 128, 32>}, {pipeline_mode = #tpu.pipeline_mode<synchronous>, transform_indices = @transform_5, window_bounds = array<i64: 32, 16>}, {pipeline_mode = #tpu.pipeline_mode<synchronous>, transform_indices = @transform_6, window_bounds = array<i64: 256, 16>}, {transform_indices = @transform_7, window_bounds = array<i64: 16, 16>}]} {
    %c0 = arith.constant 0 : index
    %c0_0 = arith.constant 0 : index
    %0 = vector.load %arg1[%c0, %c0_0] : memref<16x64xf32, #tpu.memory_space<vmem>>, vector<16x64xf32>
    %c0_1 = arith.constant 0 : index
    %c0_2 = arith.constant 0 : index
    %1 = vector.load %arg2[%c0_1, %c0_2] : memref<64x16xf32, #tpu.memory_space<vmem>>, vector<64x16xf32>
    %cst = arith.constant dense<0.000000e+00> : vector<16x16xf32>
    %2 = tpu.matmul %0, %1, %cst {dimension_numbers = #tpu.dot_dimension_numbers<[1], [0], [0], [1], [0, 0, 1, 1], [], []>} : vector<16x64xf32>, vector<64x16xf32>, vector<16x16xf32> -> vector<16x16xf32>
    %c0_3 = arith.constant 0 : index
    %c0_4 = arith.constant 0 : index
    %3 = vector.load %arg3[%c0_3, %c0_4] : memref<1x16xf32, #tpu.memory_space<vmem>>, vector<1x16xf32>
    %4 = vector.broadcast %3 : vector<1x16xf32> to vector<16x16xf32>
    %5 = arith.addf %2, %4 : vector<16x16xf32>
    %c0_5 = arith.constant 0 : index
    %c0_6 = arith.constant 0 : index
    %6 = vector.load %arg4[%c0_5, %c0_6] : memref<16x32xf32, #tpu.memory_space<vmem>>, vector<16x32xf32>
    %c0_7 = arith.constant 0 : index
    %c0_8 = arith.constant 0 : index
    %7 = vector.load %arg5[%c0_7, %c0_8] : memref<128x32xf32, #tpu.memory_space<vmem>>, vector<128x32xf32>
    %8 = arith.negf %5 : vector<16x16xf32>
    %9 = math.exp %8 : vector<16x16xf32>
    %cst_9 = arith.constant 1.000000e+00 : f32
    %10 = vector.broadcast %cst_9 : f32 to vector<16x16xf32>
    %11 = arith.addf %10, %9 : vector<16x16xf32>
    %12 = arith.divf %10, %11 : vector<16x16xf32>
    %13 = arith.mulf %5, %12 : vector<16x16xf32>
    %cst_10 = arith.constant dense<0.000000e+00> : vector<16x32xf32>
    %14 = tpu.matmul %13, %6, %cst_10 {dimension_numbers = #tpu.dot_dimension_numbers<[1], [0], [0], [1], [0, 0, 1, 1], [], []>} : vector<16x16xf32>, vector<16x32xf32>, vector<16x32xf32> -> vector<16x32xf32>
    %cst_11 = arith.constant -2.200000e+00 : f32
    %15 = vector.broadcast %cst_11 : f32 to vector<16x16xf32>
    %16 = arith.cmpf oge, %5, %15 : vector<16x16xf32>
    %cst_12 = arith.constant -1.800000e+00 : f32
    %17 = vector.broadcast %cst_12 : f32 to vector<16x16xf32>
    %18 = arith.cmpf olt, %5, %17 : vector<16x16xf32>
    %19 = arith.andi %16, %18 : vector<16x16xi1>
    %cst_13 = arith.constant 1.000000e+00 : f32
    %cst_14 = arith.constant 0.000000e+00 : f32
    %20 = vector.broadcast %cst_13 : f32 to vector<16x16xf32>
    %21 = vector.broadcast %cst_14 : f32 to vector<16x16xf32>
    %22 = arith.select %19, %20, %21 : vector<16x16xi1>, vector<16x16xf32>
    %cst_15 = arith.constant -1.800000e+00 : f32
    %23 = vector.broadcast %cst_15 : f32 to vector<16x16xf32>
    %24 = arith.cmpf oge, %5, %23 : vector<16x16xf32>
    %cst_16 = arith.constant -1.400000e+00 : f32
    %25 = vector.broadcast %cst_16 : f32 to vector<16x16xf32>
    %26 = arith.cmpf olt, %5, %25 : vector<16x16xf32>
    %27 = arith.andi %24, %26 : vector<16x16xi1>
    %cst_17 = arith.constant 1.000000e+00 : f32
    %cst_18 = arith.constant 0.000000e+00 : f32
    %28 = vector.broadcast %cst_17 : f32 to vector<16x16xf32>
    %29 = vector.broadcast %cst_18 : f32 to vector<16x16xf32>
    %30 = arith.select %27, %28, %29 : vector<16x16xi1>, vector<16x16xf32>
    %cst_19 = arith.constant -1.400000e+00 : f32
    %31 = vector.broadcast %cst_19 : f32 to vector<16x16xf32>
    %32 = arith.cmpf oge, %5, %31 : vector<16x16xf32>
    %cst_20 = arith.constant -1.000000e+00 : f32
    %33 = vector.broadcast %cst_20 : f32 to vector<16x16xf32>
    %34 = arith.cmpf olt, %5, %33 : vector<16x16xf32>
    %35 = arith.andi %32, %34 : vector<16x16xi1>
    %cst_21 = arith.constant 1.000000e+00 : f32
    %cst_22 = arith.constant 0.000000e+00 : f32
    %36 = vector.broadcast %cst_21 : f32 to vector<16x16xf32>
    %37 = vector.broadcast %cst_22 : f32 to vector<16x16xf32>
    %38 = arith.select %35, %36, %37 : vector<16x16xi1>, vector<16x16xf32>
    %cst_23 = arith.constant -1.000000e+00 : f32
    %39 = vector.broadcast %cst_23 : f32 to vector<16x16xf32>
    %40 = arith.cmpf oge, %5, %39 : vector<16x16xf32>
    %cst_24 = arith.constant -6.000000e-01 : f32
    %41 = vector.broadcast %cst_24 : f32 to vector<16x16xf32>
    %42 = arith.cmpf olt, %5, %41 : vector<16x16xf32>
    %43 = arith.andi %40, %42 : vector<16x16xi1>
    %cst_25 = arith.constant 1.000000e+00 : f32
    %cst_26 = arith.constant 0.000000e+00 : f32
    %44 = vector.broadcast %cst_25 : f32 to vector<16x16xf32>
    %45 = vector.broadcast %cst_26 : f32 to vector<16x16xf32>
    %46 = arith.select %43, %44, %45 : vector<16x16xi1>, vector<16x16xf32>
    %cst_27 = arith.constant -6.000000e-01 : f32
    %47 = vector.broadcast %cst_27 : f32 to vector<16x16xf32>
    %48 = arith.cmpf oge, %5, %47 : vector<16x16xf32>
    %cst_28 = arith.constant -2.000000e-01 : f32
    %49 = vector.broadcast %cst_28 : f32 to vector<16x16xf32>
    %50 = arith.cmpf olt, %5, %49 : vector<16x16xf32>
    %51 = arith.andi %48, %50 : vector<16x16xi1>
    %cst_29 = arith.constant 1.000000e+00 : f32
    %cst_30 = arith.constant 0.000000e+00 : f32
    %52 = vector.broadcast %cst_29 : f32 to vector<16x16xf32>
    %53 = vector.broadcast %cst_30 : f32 to vector<16x16xf32>
    %54 = arith.select %51, %52, %53 : vector<16x16xi1>, vector<16x16xf32>
    %cst_31 = arith.constant -2.000000e-01 : f32
    %55 = vector.broadcast %cst_31 : f32 to vector<16x16xf32>
    %56 = arith.cmpf oge, %5, %55 : vector<16x16xf32>
    %cst_32 = arith.constant 2.000000e-01 : f32
    %57 = vector.broadcast %cst_32 : f32 to vector<16x16xf32>
    %58 = arith.cmpf olt, %5, %57 : vector<16x16xf32>
    %59 = arith.andi %56, %58 : vector<16x16xi1>
    %cst_33 = arith.constant 1.000000e+00 : f32
    %cst_34 = arith.constant 0.000000e+00 : f32
    %60 = vector.broadcast %cst_33 : f32 to vector<16x16xf32>
    %61 = vector.broadcast %cst_34 : f32 to vector<16x16xf32>
    %62 = arith.select %59, %60, %61 : vector<16x16xi1>, vector<16x16xf32>
    %cst_35 = arith.constant 2.000000e-01 : f32
    %63 = vector.broadcast %cst_35 : f32 to vector<16x16xf32>
    %64 = arith.cmpf oge, %5, %63 : vector<16x16xf32>
    %cst_36 = arith.constant 6.000000e-01 : f32
    %65 = vector.broadcast %cst_36 : f32 to vector<16x16xf32>
    %66 = arith.cmpf olt, %5, %65 : vector<16x16xf32>
    %67 = arith.andi %64, %66 : vector<16x16xi1>
    %cst_37 = arith.constant 1.000000e+00 : f32
    %cst_38 = arith.constant 0.000000e+00 : f32
    %68 = vector.broadcast %cst_37 : f32 to vector<16x16xf32>
    %69 = vector.broadcast %cst_38 : f32 to vector<16x16xf32>
    %70 = arith.select %67, %68, %69 : vector<16x16xi1>, vector<16x16xf32>
    %cst_39 = arith.constant 6.000000e-01 : f32
    %71 = vector.broadcast %cst_39 : f32 to vector<16x16xf32>
    %72 = arith.cmpf oge, %5, %71 : vector<16x16xf32>
    %cst_40 = arith.constant 1.000000e+00 : f32
    %73 = vector.broadcast %cst_40 : f32 to vector<16x16xf32>
    %74 = arith.cmpf olt, %5, %73 : vector<16x16xf32>
    %75 = arith.andi %72, %74 : vector<16x16xi1>
    %cst_41 = arith.constant 1.000000e+00 : f32
    %cst_42 = arith.constant 0.000000e+00 : f32
    %76 = vector.broadcast %cst_41 : f32 to vector<16x16xf32>
    %77 = vector.broadcast %cst_42 : f32 to vector<16x16xf32>
    %78 = arith.select %75, %76, %77 : vector<16x16xi1>, vector<16x16xf32>
    %cst_43 = arith.constant 1.000000e+00 : f32
    %79 = vector.broadcast %cst_43 : f32 to vector<16x16xf32>
    %80 = arith.cmpf oge, %5, %79 : vector<16x16xf32>
    %cst_44 = arith.constant 1.400000e+00 : f32
    %81 = vector.broadcast %cst_44 : f32 to vector<16x16xf32>
    %82 = arith.cmpf olt, %5, %81 : vector<16x16xf32>
    %83 = arith.andi %80, %82 : vector<16x16xi1>
    %cst_45 = arith.constant 1.000000e+00 : f32
    %cst_46 = arith.constant 0.000000e+00 : f32
    %84 = vector.broadcast %cst_45 : f32 to vector<16x16xf32>
    %85 = vector.broadcast %cst_46 : f32 to vector<16x16xf32>
    %86 = arith.select %83, %84, %85 : vector<16x16xi1>, vector<16x16xf32>
    %cst_47 = arith.constant 1.400000e+00 : f32
    %87 = vector.broadcast %cst_47 : f32 to vector<16x16xf32>
    %88 = arith.cmpf oge, %5, %87 : vector<16x16xf32>
    %cst_48 = arith.constant 1.800000e+00 : f32
    %89 = vector.broadcast %cst_48 : f32 to vector<16x16xf32>
    %90 = arith.cmpf olt, %5, %89 : vector<16x16xf32>
    %91 = arith.andi %88, %90 : vector<16x16xi1>
    %cst_49 = arith.constant 1.000000e+00 : f32
    %cst_50 = arith.constant 0.000000e+00 : f32
    %92 = vector.broadcast %cst_49 : f32 to vector<16x16xf32>
    %93 = vector.broadcast %cst_50 : f32 to vector<16x16xf32>
    %94 = arith.select %91, %92, %93 : vector<16x16xi1>, vector<16x16xf32>
    %cst_51 = arith.constant 1.800000e+00 : f32
    %95 = vector.broadcast %cst_51 : f32 to vector<16x16xf32>
    %96 = arith.cmpf oge, %5, %95 : vector<16x16xf32>
    %cst_52 = arith.constant 2.200000e+00 : f32
    %97 = vector.broadcast %cst_52 : f32 to vector<16x16xf32>
    %98 = arith.cmpf olt, %5, %97 : vector<16x16xf32>
    %99 = arith.andi %96, %98 : vector<16x16xi1>
    %cst_53 = arith.constant 1.000000e+00 : f32
    %cst_54 = arith.constant 0.000000e+00 : f32
    %100 = vector.broadcast %cst_53 : f32 to vector<16x16xf32>
    %101 = vector.broadcast %cst_54 : f32 to vector<16x16xf32>
    %102 = arith.select %99, %100, %101 : vector<16x16xi1>, vector<16x16xf32>
    %cst_55 = arith.constant -2.200000e+00 : f32
    %103 = vector.broadcast %cst_55 : f32 to vector<16x16xf32>
    %104 = arith.subf %5, %103 : vector<16x16xf32>
    %cst_56 = arith.constant 4.000000e-01 : f32
    %105 = vector.broadcast %cst_56 : f32 to vector<16x16xf32>
    %106 = arith.divf %104, %105 : vector<16x16xf32>
    %107 = arith.mulf %106, %22 : vector<16x16xf32>
    %cst_57 = arith.constant -1.400000e+00 : f32
    %108 = vector.broadcast %cst_57 : f32 to vector<16x16xf32>
    %109 = arith.subf %108, %5 : vector<16x16xf32>
    %cst_58 = arith.constant 4.000000e-01 : f32
    %110 = vector.broadcast %cst_58 : f32 to vector<16x16xf32>
    %111 = arith.divf %109, %110 : vector<16x16xf32>
    %112 = arith.mulf %111, %30 : vector<16x16xf32>
    %113 = arith.addf %107, %112 : vector<16x16xf32>
    %cst_59 = arith.constant -1.800000e+00 : f32
    %114 = vector.broadcast %cst_59 : f32 to vector<16x16xf32>
    %115 = arith.subf %5, %114 : vector<16x16xf32>
    %cst_60 = arith.constant 4.000000e-01 : f32
    %116 = vector.broadcast %cst_60 : f32 to vector<16x16xf32>
    %117 = arith.divf %115, %116 : vector<16x16xf32>
    %118 = arith.mulf %117, %30 : vector<16x16xf32>
    %cst_61 = arith.constant -1.000000e+00 : f32
    %119 = vector.broadcast %cst_61 : f32 to vector<16x16xf32>
    %120 = arith.subf %119, %5 : vector<16x16xf32>
    %cst_62 = arith.constant 4.000000e-01 : f32
    %121 = vector.broadcast %cst_62 : f32 to vector<16x16xf32>
    %122 = arith.divf %120, %121 : vector<16x16xf32>
    %123 = arith.mulf %122, %38 : vector<16x16xf32>
    %124 = arith.addf %118, %123 : vector<16x16xf32>
    %cst_63 = arith.constant -1.400000e+00 : f32
    %125 = vector.broadcast %cst_63 : f32 to vector<16x16xf32>
    %126 = arith.subf %5, %125 : vector<16x16xf32>
    %cst_64 = arith.constant 4.000000e-01 : f32
    %127 = vector.broadcast %cst_64 : f32 to vector<16x16xf32>
    %128 = arith.divf %126, %127 : vector<16x16xf32>
    %129 = arith.mulf %128, %38 : vector<16x16xf32>
    %cst_65 = arith.constant -6.000000e-01 : f32
    %130 = vector.broadcast %cst_65 : f32 to vector<16x16xf32>
    %131 = arith.subf %130, %5 : vector<16x16xf32>
    %cst_66 = arith.constant 4.000000e-01 : f32
    %132 = vector.broadcast %cst_66 : f32 to vector<16x16xf32>
    %133 = arith.divf %131, %132 : vector<16x16xf32>
    %134 = arith.mulf %133, %46 : vector<16x16xf32>
    %135 = arith.addf %129, %134 : vector<16x16xf32>
    %cst_67 = arith.constant -1.000000e+00 : f32
    %136 = vector.broadcast %cst_67 : f32 to vector<16x16xf32>
    %137 = arith.subf %5, %136 : vector<16x16xf32>
    %cst_68 = arith.constant 4.000000e-01 : f32
    %138 = vector.broadcast %cst_68 : f32 to vector<16x16xf32>
    %139 = arith.divf %137, %138 : vector<16x16xf32>
    %140 = arith.mulf %139, %46 : vector<16x16xf32>
    %cst_69 = arith.constant -2.000000e-01 : f32
    %141 = vector.broadcast %cst_69 : f32 to vector<16x16xf32>
    %142 = arith.subf %141, %5 : vector<16x16xf32>
    %cst_70 = arith.constant 4.000000e-01 : f32
    %143 = vector.broadcast %cst_70 : f32 to vector<16x16xf32>
    %144 = arith.divf %142, %143 : vector<16x16xf32>
    %145 = arith.mulf %144, %54 : vector<16x16xf32>
    %146 = arith.addf %140, %145 : vector<16x16xf32>
    %cst_71 = arith.constant -6.000000e-01 : f32
    %147 = vector.broadcast %cst_71 : f32 to vector<16x16xf32>
    %148 = arith.subf %5, %147 : vector<16x16xf32>
    %cst_72 = arith.constant 4.000000e-01 : f32
    %149 = vector.broadcast %cst_72 : f32 to vector<16x16xf32>
    %150 = arith.divf %148, %149 : vector<16x16xf32>
    %151 = arith.mulf %150, %54 : vector<16x16xf32>
    %cst_73 = arith.constant 2.000000e-01 : f32
    %152 = vector.broadcast %cst_73 : f32 to vector<16x16xf32>
    %153 = arith.subf %152, %5 : vector<16x16xf32>
    %cst_74 = arith.constant 4.000000e-01 : f32
    %154 = vector.broadcast %cst_74 : f32 to vector<16x16xf32>
    %155 = arith.divf %153, %154 : vector<16x16xf32>
    %156 = arith.mulf %155, %62 : vector<16x16xf32>
    %157 = arith.addf %151, %156 : vector<16x16xf32>
    %cst_75 = arith.constant -2.000000e-01 : f32
    %158 = vector.broadcast %cst_75 : f32 to vector<16x16xf32>
    %159 = arith.subf %5, %158 : vector<16x16xf32>
    %cst_76 = arith.constant 4.000000e-01 : f32
    %160 = vector.broadcast %cst_76 : f32 to vector<16x16xf32>
    %161 = arith.divf %159, %160 : vector<16x16xf32>
    %162 = arith.mulf %161, %62 : vector<16x16xf32>
    %cst_77 = arith.constant 6.000000e-01 : f32
    %163 = vector.broadcast %cst_77 : f32 to vector<16x16xf32>
    %164 = arith.subf %163, %5 : vector<16x16xf32>
    %cst_78 = arith.constant 4.000000e-01 : f32
    %165 = vector.broadcast %cst_78 : f32 to vector<16x16xf32>
    %166 = arith.divf %164, %165 : vector<16x16xf32>
    %167 = arith.mulf %166, %70 : vector<16x16xf32>
    %168 = arith.addf %162, %167 : vector<16x16xf32>
    %cst_79 = arith.constant 2.000000e-01 : f32
    %169 = vector.broadcast %cst_79 : f32 to vector<16x16xf32>
    %170 = arith.subf %5, %169 : vector<16x16xf32>
    %cst_80 = arith.constant 4.000000e-01 : f32
    %171 = vector.broadcast %cst_80 : f32 to vector<16x16xf32>
    %172 = arith.divf %170, %171 : vector<16x16xf32>
    %173 = arith.mulf %172, %70 : vector<16x16xf32>
    %cst_81 = arith.constant 1.000000e+00 : f32
    %174 = vector.broadcast %cst_81 : f32 to vector<16x16xf32>
    %175 = arith.subf %174, %5 : vector<16x16xf32>
    %cst_82 = arith.constant 4.000000e-01 : f32
    %176 = vector.broadcast %cst_82 : f32 to vector<16x16xf32>
    %177 = arith.divf %175, %176 : vector<16x16xf32>
    %178 = arith.mulf %177, %78 : vector<16x16xf32>
    %179 = arith.addf %173, %178 : vector<16x16xf32>
    %cst_83 = arith.constant 6.000000e-01 : f32
    %180 = vector.broadcast %cst_83 : f32 to vector<16x16xf32>
    %181 = arith.subf %5, %180 : vector<16x16xf32>
    %cst_84 = arith.constant 4.000000e-01 : f32
    %182 = vector.broadcast %cst_84 : f32 to vector<16x16xf32>
    %183 = arith.divf %181, %182 : vector<16x16xf32>
    %184 = arith.mulf %183, %78 : vector<16x16xf32>
    %cst_85 = arith.constant 1.400000e+00 : f32
    %185 = vector.broadcast %cst_85 : f32 to vector<16x16xf32>
    %186 = arith.subf %185, %5 : vector<16x16xf32>
    %cst_86 = arith.constant 4.000000e-01 : f32
    %187 = vector.broadcast %cst_86 : f32 to vector<16x16xf32>
    %188 = arith.divf %186, %187 : vector<16x16xf32>
    %189 = arith.mulf %188, %86 : vector<16x16xf32>
    %190 = arith.addf %184, %189 : vector<16x16xf32>
    %cst_87 = arith.constant 1.000000e+00 : f32
    %191 = vector.broadcast %cst_87 : f32 to vector<16x16xf32>
    %192 = arith.subf %5, %191 : vector<16x16xf32>
    %cst_88 = arith.constant 4.000000e-01 : f32
    %193 = vector.broadcast %cst_88 : f32 to vector<16x16xf32>
    %194 = arith.divf %192, %193 : vector<16x16xf32>
    %195 = arith.mulf %194, %86 : vector<16x16xf32>
    %cst_89 = arith.constant 1.800000e+00 : f32
    %196 = vector.broadcast %cst_89 : f32 to vector<16x16xf32>
    %197 = arith.subf %196, %5 : vector<16x16xf32>
    %cst_90 = arith.constant 4.000000e-01 : f32
    %198 = vector.broadcast %cst_90 : f32 to vector<16x16xf32>
    %199 = arith.divf %197, %198 : vector<16x16xf32>
    %200 = arith.mulf %199, %94 : vector<16x16xf32>
    %201 = arith.addf %195, %200 : vector<16x16xf32>
    %cst_91 = arith.constant 1.400000e+00 : f32
    %202 = vector.broadcast %cst_91 : f32 to vector<16x16xf32>
    %203 = arith.subf %5, %202 : vector<16x16xf32>
    %cst_92 = arith.constant 4.000000e-01 : f32
    %204 = vector.broadcast %cst_92 : f32 to vector<16x16xf32>
    %205 = arith.divf %203, %204 : vector<16x16xf32>
    %206 = arith.mulf %205, %94 : vector<16x16xf32>
    %cst_93 = arith.constant 2.200000e+00 : f32
    %207 = vector.broadcast %cst_93 : f32 to vector<16x16xf32>
    %208 = arith.subf %207, %5 : vector<16x16xf32>
    %cst_94 = arith.constant 4.000000e-01 : f32
    %209 = vector.broadcast %cst_94 : f32 to vector<16x16xf32>
    %210 = arith.divf %208, %209 : vector<16x16xf32>
    %211 = arith.mulf %210, %102 : vector<16x16xf32>
    %212 = arith.addf %206, %211 : vector<16x16xf32>
    %cst_95 = arith.constant -2.200000e+00 : f32
    %213 = vector.broadcast %cst_95 : f32 to vector<16x16xf32>
    %214 = arith.subf %5, %213 : vector<16x16xf32>
    %cst_96 = arith.constant 8.000000e-01 : f32
    %215 = vector.broadcast %cst_96 : f32 to vector<16x16xf32>
    %216 = arith.divf %214, %215 : vector<16x16xf32>
    %217 = arith.mulf %216, %113 : vector<16x16xf32>
    %cst_97 = arith.constant -1.000000e+00 : f32
    %218 = vector.broadcast %cst_97 : f32 to vector<16x16xf32>
    %219 = arith.subf %218, %5 : vector<16x16xf32>
    %cst_98 = arith.constant 8.000000e-01 : f32
    %220 = vector.broadcast %cst_98 : f32 to vector<16x16xf32>
    %221 = arith.divf %219, %220 : vector<16x16xf32>
    %222 = arith.mulf %221, %124 : vector<16x16xf32>
    %223 = arith.addf %217, %222 : vector<16x16xf32>
    %cst_99 = arith.constant -1.800000e+00 : f32
    %224 = vector.broadcast %cst_99 : f32 to vector<16x16xf32>
    %225 = arith.subf %5, %224 : vector<16x16xf32>
    %cst_100 = arith.constant 8.000000e-01 : f32
    %226 = vector.broadcast %cst_100 : f32 to vector<16x16xf32>
    %227 = arith.divf %225, %226 : vector<16x16xf32>
    %228 = arith.mulf %227, %124 : vector<16x16xf32>
    %cst_101 = arith.constant -6.000000e-01 : f32
    %229 = vector.broadcast %cst_101 : f32 to vector<16x16xf32>
    %230 = arith.subf %229, %5 : vector<16x16xf32>
    %cst_102 = arith.constant 8.000000e-01 : f32
    %231 = vector.broadcast %cst_102 : f32 to vector<16x16xf32>
    %232 = arith.divf %230, %231 : vector<16x16xf32>
    %233 = arith.mulf %232, %135 : vector<16x16xf32>
    %234 = arith.addf %228, %233 : vector<16x16xf32>
    %cst_103 = arith.constant -1.400000e+00 : f32
    %235 = vector.broadcast %cst_103 : f32 to vector<16x16xf32>
    %236 = arith.subf %5, %235 : vector<16x16xf32>
    %cst_104 = arith.constant 8.000000e-01 : f32
    %237 = vector.broadcast %cst_104 : f32 to vector<16x16xf32>
    %238 = arith.divf %236, %237 : vector<16x16xf32>
    %239 = arith.mulf %238, %135 : vector<16x16xf32>
    %cst_105 = arith.constant -2.000000e-01 : f32
    %240 = vector.broadcast %cst_105 : f32 to vector<16x16xf32>
    %241 = arith.subf %240, %5 : vector<16x16xf32>
    %cst_106 = arith.constant 8.000000e-01 : f32
    %242 = vector.broadcast %cst_106 : f32 to vector<16x16xf32>
    %243 = arith.divf %241, %242 : vector<16x16xf32>
    %244 = arith.mulf %243, %146 : vector<16x16xf32>
    %245 = arith.addf %239, %244 : vector<16x16xf32>
    %cst_107 = arith.constant -1.000000e+00 : f32
    %246 = vector.broadcast %cst_107 : f32 to vector<16x16xf32>
    %247 = arith.subf %5, %246 : vector<16x16xf32>
    %cst_108 = arith.constant 8.000000e-01 : f32
    %248 = vector.broadcast %cst_108 : f32 to vector<16x16xf32>
    %249 = arith.divf %247, %248 : vector<16x16xf32>
    %250 = arith.mulf %249, %146 : vector<16x16xf32>
    %cst_109 = arith.constant 2.000000e-01 : f32
    %251 = vector.broadcast %cst_109 : f32 to vector<16x16xf32>
    %252 = arith.subf %251, %5 : vector<16x16xf32>
    %cst_110 = arith.constant 8.000000e-01 : f32
    %253 = vector.broadcast %cst_110 : f32 to vector<16x16xf32>
    %254 = arith.divf %252, %253 : vector<16x16xf32>
    %255 = arith.mulf %254, %157 : vector<16x16xf32>
    %256 = arith.addf %250, %255 : vector<16x16xf32>
    %cst_111 = arith.constant -6.000000e-01 : f32
    %257 = vector.broadcast %cst_111 : f32 to vector<16x16xf32>
    %258 = arith.subf %5, %257 : vector<16x16xf32>
    %cst_112 = arith.constant 8.000000e-01 : f32
    %259 = vector.broadcast %cst_112 : f32 to vector<16x16xf32>
    %260 = arith.divf %258, %259 : vector<16x16xf32>
    %261 = arith.mulf %260, %157 : vector<16x16xf32>
    %cst_113 = arith.constant 6.000000e-01 : f32
    %262 = vector.broadcast %cst_113 : f32 to vector<16x16xf32>
    %263 = arith.subf %262, %5 : vector<16x16xf32>
    %cst_114 = arith.constant 8.000000e-01 : f32
    %264 = vector.broadcast %cst_114 : f32 to vector<16x16xf32>
    %265 = arith.divf %263, %264 : vector<16x16xf32>
    %266 = arith.mulf %265, %168 : vector<16x16xf32>
    %267 = arith.addf %261, %266 : vector<16x16xf32>
    %cst_115 = arith.constant -2.000000e-01 : f32
    %268 = vector.broadcast %cst_115 : f32 to vector<16x16xf32>
    %269 = arith.subf %5, %268 : vector<16x16xf32>
    %cst_116 = arith.constant 8.000000e-01 : f32
    %270 = vector.broadcast %cst_116 : f32 to vector<16x16xf32>
    %271 = arith.divf %269, %270 : vector<16x16xf32>
    %272 = arith.mulf %271, %168 : vector<16x16xf32>
    %cst_117 = arith.constant 1.000000e+00 : f32
    %273 = vector.broadcast %cst_117 : f32 to vector<16x16xf32>
    %274 = arith.subf %273, %5 : vector<16x16xf32>
    %cst_118 = arith.constant 8.000000e-01 : f32
    %275 = vector.broadcast %cst_118 : f32 to vector<16x16xf32>
    %276 = arith.divf %274, %275 : vector<16x16xf32>
    %277 = arith.mulf %276, %179 : vector<16x16xf32>
    %278 = arith.addf %272, %277 : vector<16x16xf32>
    %cst_119 = arith.constant 2.000000e-01 : f32
    %279 = vector.broadcast %cst_119 : f32 to vector<16x16xf32>
    %280 = arith.subf %5, %279 : vector<16x16xf32>
    %cst_120 = arith.constant 8.000000e-01 : f32
    %281 = vector.broadcast %cst_120 : f32 to vector<16x16xf32>
    %282 = arith.divf %280, %281 : vector<16x16xf32>
    %283 = arith.mulf %282, %179 : vector<16x16xf32>
    %cst_121 = arith.constant 1.400000e+00 : f32
    %284 = vector.broadcast %cst_121 : f32 to vector<16x16xf32>
    %285 = arith.subf %284, %5 : vector<16x16xf32>
    %cst_122 = arith.constant 8.000000e-01 : f32
    %286 = vector.broadcast %cst_122 : f32 to vector<16x16xf32>
    %287 = arith.divf %285, %286 : vector<16x16xf32>
    %288 = arith.mulf %287, %190 : vector<16x16xf32>
    %289 = arith.addf %283, %288 : vector<16x16xf32>
    %cst_123 = arith.constant 6.000000e-01 : f32
    %290 = vector.broadcast %cst_123 : f32 to vector<16x16xf32>
    %291 = arith.subf %5, %290 : vector<16x16xf32>
    %cst_124 = arith.constant 8.000000e-01 : f32
    %292 = vector.broadcast %cst_124 : f32 to vector<16x16xf32>
    %293 = arith.divf %291, %292 : vector<16x16xf32>
    %294 = arith.mulf %293, %190 : vector<16x16xf32>
    %cst_125 = arith.constant 1.800000e+00 : f32
    %295 = vector.broadcast %cst_125 : f32 to vector<16x16xf32>
    %296 = arith.subf %295, %5 : vector<16x16xf32>
    %cst_126 = arith.constant 8.000000e-01 : f32
    %297 = vector.broadcast %cst_126 : f32 to vector<16x16xf32>
    %298 = arith.divf %296, %297 : vector<16x16xf32>
    %299 = arith.mulf %298, %201 : vector<16x16xf32>
    %300 = arith.addf %294, %299 : vector<16x16xf32>
    %cst_127 = arith.constant 1.000000e+00 : f32
    %301 = vector.broadcast %cst_127 : f32 to vector<16x16xf32>
    %302 = arith.subf %5, %301 : vector<16x16xf32>
    %cst_128 = arith.constant 8.000000e-01 : f32
    %303 = vector.broadcast %cst_128 : f32 to vector<16x16xf32>
    %304 = arith.divf %302, %303 : vector<16x16xf32>
    %305 = arith.mulf %304, %201 : vector<16x16xf32>
    %cst_129 = arith.constant 2.200000e+00 : f32
    %306 = vector.broadcast %cst_129 : f32 to vector<16x16xf32>
    %307 = arith.subf %306, %5 : vector<16x16xf32>
    %cst_130 = arith.constant 8.000000e-01 : f32
    %308 = vector.broadcast %cst_130 : f32 to vector<16x16xf32>
    %309 = arith.divf %307, %308 : vector<16x16xf32>
    %310 = arith.mulf %309, %212 : vector<16x16xf32>
    %311 = arith.addf %305, %310 : vector<16x16xf32>
    %cst_131 = arith.constant -2.200000e+00 : f32
    %312 = vector.broadcast %cst_131 : f32 to vector<16x16xf32>
    %313 = arith.subf %5, %312 : vector<16x16xf32>
    %cst_132 = arith.constant 1.200000e+00 : f32
    %314 = vector.broadcast %cst_132 : f32 to vector<16x16xf32>
    %315 = arith.divf %313, %314 : vector<16x16xf32>
    %316 = arith.mulf %315, %223 : vector<16x16xf32>
    %cst_133 = arith.constant -6.000000e-01 : f32
    %317 = vector.broadcast %cst_133 : f32 to vector<16x16xf32>
    %318 = arith.subf %317, %5 : vector<16x16xf32>
    %cst_134 = arith.constant 1.200000e+00 : f32
    %319 = vector.broadcast %cst_134 : f32 to vector<16x16xf32>
    %320 = arith.divf %318, %319 : vector<16x16xf32>
    %321 = arith.mulf %320, %234 : vector<16x16xf32>
    %322 = arith.addf %316, %321 : vector<16x16xf32>
    %cst_135 = arith.constant -1.800000e+00 : f32
    %323 = vector.broadcast %cst_135 : f32 to vector<16x16xf32>
    %324 = arith.subf %5, %323 : vector<16x16xf32>
    %cst_136 = arith.constant 1.200000e+00 : f32
    %325 = vector.broadcast %cst_136 : f32 to vector<16x16xf32>
    %326 = arith.divf %324, %325 : vector<16x16xf32>
    %327 = arith.mulf %326, %234 : vector<16x16xf32>
    %cst_137 = arith.constant -2.000000e-01 : f32
    %328 = vector.broadcast %cst_137 : f32 to vector<16x16xf32>
    %329 = arith.subf %328, %5 : vector<16x16xf32>
    %cst_138 = arith.constant 1.200000e+00 : f32
    %330 = vector.broadcast %cst_138 : f32 to vector<16x16xf32>
    %331 = arith.divf %329, %330 : vector<16x16xf32>
    %332 = arith.mulf %331, %245 : vector<16x16xf32>
    %333 = arith.addf %327, %332 : vector<16x16xf32>
    %cst_139 = arith.constant -1.400000e+00 : f32
    %334 = vector.broadcast %cst_139 : f32 to vector<16x16xf32>
    %335 = arith.subf %5, %334 : vector<16x16xf32>
    %cst_140 = arith.constant 1.200000e+00 : f32
    %336 = vector.broadcast %cst_140 : f32 to vector<16x16xf32>
    %337 = arith.divf %335, %336 : vector<16x16xf32>
    %338 = arith.mulf %337, %245 : vector<16x16xf32>
    %cst_141 = arith.constant 2.000000e-01 : f32
    %339 = vector.broadcast %cst_141 : f32 to vector<16x16xf32>
    %340 = arith.subf %339, %5 : vector<16x16xf32>
    %cst_142 = arith.constant 1.200000e+00 : f32
    %341 = vector.broadcast %cst_142 : f32 to vector<16x16xf32>
    %342 = arith.divf %340, %341 : vector<16x16xf32>
    %343 = arith.mulf %342, %256 : vector<16x16xf32>
    %344 = arith.addf %338, %343 : vector<16x16xf32>
    %cst_143 = arith.constant -1.000000e+00 : f32
    %345 = vector.broadcast %cst_143 : f32 to vector<16x16xf32>
    %346 = arith.subf %5, %345 : vector<16x16xf32>
    %cst_144 = arith.constant 1.200000e+00 : f32
    %347 = vector.broadcast %cst_144 : f32 to vector<16x16xf32>
    %348 = arith.divf %346, %347 : vector<16x16xf32>
    %349 = arith.mulf %348, %256 : vector<16x16xf32>
    %cst_145 = arith.constant 6.000000e-01 : f32
    %350 = vector.broadcast %cst_145 : f32 to vector<16x16xf32>
    %351 = arith.subf %350, %5 : vector<16x16xf32>
    %cst_146 = arith.constant 1.200000e+00 : f32
    %352 = vector.broadcast %cst_146 : f32 to vector<16x16xf32>
    %353 = arith.divf %351, %352 : vector<16x16xf32>
    %354 = arith.mulf %353, %267 : vector<16x16xf32>
    %355 = arith.addf %349, %354 : vector<16x16xf32>
    %cst_147 = arith.constant -6.000000e-01 : f32
    %356 = vector.broadcast %cst_147 : f32 to vector<16x16xf32>
    %357 = arith.subf %5, %356 : vector<16x16xf32>
    %cst_148 = arith.constant 1.200000e+00 : f32
    %358 = vector.broadcast %cst_148 : f32 to vector<16x16xf32>
    %359 = arith.divf %357, %358 : vector<16x16xf32>
    %360 = arith.mulf %359, %267 : vector<16x16xf32>
    %cst_149 = arith.constant 1.000000e+00 : f32
    %361 = vector.broadcast %cst_149 : f32 to vector<16x16xf32>
    %362 = arith.subf %361, %5 : vector<16x16xf32>
    %cst_150 = arith.constant 1.200000e+00 : f32
    %363 = vector.broadcast %cst_150 : f32 to vector<16x16xf32>
    %364 = arith.divf %362, %363 : vector<16x16xf32>
    %365 = arith.mulf %364, %278 : vector<16x16xf32>
    %366 = arith.addf %360, %365 : vector<16x16xf32>
    %cst_151 = arith.constant -2.000000e-01 : f32
    %367 = vector.broadcast %cst_151 : f32 to vector<16x16xf32>
    %368 = arith.subf %5, %367 : vector<16x16xf32>
    %cst_152 = arith.constant 1.200000e+00 : f32
    %369 = vector.broadcast %cst_152 : f32 to vector<16x16xf32>
    %370 = arith.divf %368, %369 : vector<16x16xf32>
    %371 = arith.mulf %370, %278 : vector<16x16xf32>
    %cst_153 = arith.constant 1.400000e+00 : f32
    %372 = vector.broadcast %cst_153 : f32 to vector<16x16xf32>
    %373 = arith.subf %372, %5 : vector<16x16xf32>
    %cst_154 = arith.constant 1.200000e+00 : f32
    %374 = vector.broadcast %cst_154 : f32 to vector<16x16xf32>
    %375 = arith.divf %373, %374 : vector<16x16xf32>
    %376 = arith.mulf %375, %289 : vector<16x16xf32>
    %377 = arith.addf %371, %376 : vector<16x16xf32>
    %cst_155 = arith.constant 2.000000e-01 : f32
    %378 = vector.broadcast %cst_155 : f32 to vector<16x16xf32>
    %379 = arith.subf %5, %378 : vector<16x16xf32>
    %cst_156 = arith.constant 1.200000e+00 : f32
    %380 = vector.broadcast %cst_156 : f32 to vector<16x16xf32>
    %381 = arith.divf %379, %380 : vector<16x16xf32>
    %382 = arith.mulf %381, %289 : vector<16x16xf32>
    %cst_157 = arith.constant 1.800000e+00 : f32
    %383 = vector.broadcast %cst_157 : f32 to vector<16x16xf32>
    %384 = arith.subf %383, %5 : vector<16x16xf32>
    %cst_158 = arith.constant 1.200000e+00 : f32
    %385 = vector.broadcast %cst_158 : f32 to vector<16x16xf32>
    %386 = arith.divf %384, %385 : vector<16x16xf32>
    %387 = arith.mulf %386, %300 : vector<16x16xf32>
    %388 = arith.addf %382, %387 : vector<16x16xf32>
    %cst_159 = arith.constant 6.000000e-01 : f32
    %389 = vector.broadcast %cst_159 : f32 to vector<16x16xf32>
    %390 = arith.subf %5, %389 : vector<16x16xf32>
    %cst_160 = arith.constant 1.200000e+00 : f32
    %391 = vector.broadcast %cst_160 : f32 to vector<16x16xf32>
    %392 = arith.divf %390, %391 : vector<16x16xf32>
    %393 = arith.mulf %392, %300 : vector<16x16xf32>
    %cst_161 = arith.constant 2.200000e+00 : f32
    %394 = vector.broadcast %cst_161 : f32 to vector<16x16xf32>
    %395 = arith.subf %394, %5 : vector<16x16xf32>
    %cst_162 = arith.constant 1.200000e+00 : f32
    %396 = vector.broadcast %cst_162 : f32 to vector<16x16xf32>
    %397 = arith.divf %395, %396 : vector<16x16xf32>
    %398 = arith.mulf %397, %311 : vector<16x16xf32>
    %399 = arith.addf %393, %398 : vector<16x16xf32>
    %400 = tpu.concatenate %322, %333, %344, %355, %366, %377, %388, %399 in 1 : vector<16x16xf32>, vector<16x16xf32>, vector<16x16xf32>, vector<16x16xf32>, vector<16x16xf32>, vector<16x16xf32>, vector<16x16xf32>, vector<16x16xf32> -> vector<16x128xf32>
    %cst_163 = arith.constant dense<0.000000e+00> : vector<16x32xf32>
    %401 = tpu.matmul %400, %7, %cst_163 {dimension_numbers = #tpu.dot_dimension_numbers<[1], [0], [0], [1], [0, 0, 1, 1], [], []>} : vector<16x128xf32>, vector<128x32xf32>, vector<16x32xf32> -> vector<16x32xf32>
    %402 = arith.addf %14, %401 : vector<16x32xf32>
    %c0_164 = arith.constant 0 : index
    %c0_165 = arith.constant 0 : index
    %403 = vector.load %arg6[%c0_164, %c0_165] : memref<32x16xf32, #tpu.memory_space<vmem>>, vector<32x16xf32>
    %c0_166 = arith.constant 0 : index
    %c0_167 = arith.constant 0 : index
    %404 = vector.load %arg7[%c0_166, %c0_167] : memref<256x16xf32, #tpu.memory_space<vmem>>, vector<256x16xf32>
    %405 = arith.negf %402 : vector<16x32xf32>
    %406 = math.exp %405 : vector<16x32xf32>
    %cst_168 = arith.constant 1.000000e+00 : f32
    %407 = vector.broadcast %cst_168 : f32 to vector<16x32xf32>
    %408 = arith.addf %407, %406 : vector<16x32xf32>
    %409 = arith.divf %407, %408 : vector<16x32xf32>
    %410 = arith.mulf %402, %409 : vector<16x32xf32>
    %cst_169 = arith.constant dense<0.000000e+00> : vector<16x16xf32>
    %411 = tpu.matmul %410, %403, %cst_169 {dimension_numbers = #tpu.dot_dimension_numbers<[1], [0], [0], [1], [0, 0, 1, 1], [], []>} : vector<16x32xf32>, vector<32x16xf32>, vector<16x16xf32> -> vector<16x16xf32>
    %cst_170 = arith.constant -2.200000e+00 : f32
    %412 = vector.broadcast %cst_170 : f32 to vector<16x32xf32>
    %413 = arith.cmpf oge, %402, %412 : vector<16x32xf32>
    %cst_171 = arith.constant -1.800000e+00 : f32
    %414 = vector.broadcast %cst_171 : f32 to vector<16x32xf32>
    %415 = arith.cmpf olt, %402, %414 : vector<16x32xf32>
    %416 = arith.andi %413, %415 : vector<16x32xi1>
    %cst_172 = arith.constant 1.000000e+00 : f32
    %cst_173 = arith.constant 0.000000e+00 : f32
    %417 = vector.broadcast %cst_172 : f32 to vector<16x32xf32>
    %418 = vector.broadcast %cst_173 : f32 to vector<16x32xf32>
    %419 = arith.select %416, %417, %418 : vector<16x32xi1>, vector<16x32xf32>
    %cst_174 = arith.constant -1.800000e+00 : f32
    %420 = vector.broadcast %cst_174 : f32 to vector<16x32xf32>
    %421 = arith.cmpf oge, %402, %420 : vector<16x32xf32>
    %cst_175 = arith.constant -1.400000e+00 : f32
    %422 = vector.broadcast %cst_175 : f32 to vector<16x32xf32>
    %423 = arith.cmpf olt, %402, %422 : vector<16x32xf32>
    %424 = arith.andi %421, %423 : vector<16x32xi1>
    %cst_176 = arith.constant 1.000000e+00 : f32
    %cst_177 = arith.constant 0.000000e+00 : f32
    %425 = vector.broadcast %cst_176 : f32 to vector<16x32xf32>
    %426 = vector.broadcast %cst_177 : f32 to vector<16x32xf32>
    %427 = arith.select %424, %425, %426 : vector<16x32xi1>, vector<16x32xf32>
    %cst_178 = arith.constant -1.400000e+00 : f32
    %428 = vector.broadcast %cst_178 : f32 to vector<16x32xf32>
    %429 = arith.cmpf oge, %402, %428 : vector<16x32xf32>
    %cst_179 = arith.constant -1.000000e+00 : f32
    %430 = vector.broadcast %cst_179 : f32 to vector<16x32xf32>
    %431 = arith.cmpf olt, %402, %430 : vector<16x32xf32>
    %432 = arith.andi %429, %431 : vector<16x32xi1>
    %cst_180 = arith.constant 1.000000e+00 : f32
    %cst_181 = arith.constant 0.000000e+00 : f32
    %433 = vector.broadcast %cst_180 : f32 to vector<16x32xf32>
    %434 = vector.broadcast %cst_181 : f32 to vector<16x32xf32>
    %435 = arith.select %432, %433, %434 : vector<16x32xi1>, vector<16x32xf32>
    %cst_182 = arith.constant -1.000000e+00 : f32
    %436 = vector.broadcast %cst_182 : f32 to vector<16x32xf32>
    %437 = arith.cmpf oge, %402, %436 : vector<16x32xf32>
    %cst_183 = arith.constant -6.000000e-01 : f32
    %438 = vector.broadcast %cst_183 : f32 to vector<16x32xf32>
    %439 = arith.cmpf olt, %402, %438 : vector<16x32xf32>
    %440 = arith.andi %437, %439 : vector<16x32xi1>
    %cst_184 = arith.constant 1.000000e+00 : f32
    %cst_185 = arith.constant 0.000000e+00 : f32
    %441 = vector.broadcast %cst_184 : f32 to vector<16x32xf32>
    %442 = vector.broadcast %cst_185 : f32 to vector<16x32xf32>
    %443 = arith.select %440, %441, %442 : vector<16x32xi1>, vector<16x32xf32>
    %cst_186 = arith.constant -6.000000e-01 : f32
    %444 = vector.broadcast %cst_186 : f32 to vector<16x32xf32>
    %445 = arith.cmpf oge, %402, %444 : vector<16x32xf32>
    %cst_187 = arith.constant -2.000000e-01 : f32
    %446 = vector.broadcast %cst_187 : f32 to vector<16x32xf32>
    %447 = arith.cmpf olt, %402, %446 : vector<16x32xf32>
    %448 = arith.andi %445, %447 : vector<16x32xi1>
    %cst_188 = arith.constant 1.000000e+00 : f32
    %cst_189 = arith.constant 0.000000e+00 : f32
    %449 = vector.broadcast %cst_188 : f32 to vector<16x32xf32>
    %450 = vector.broadcast %cst_189 : f32 to vector<16x32xf32>
    %451 = arith.select %448, %449, %450 : vector<16x32xi1>, vector<16x32xf32>
    %cst_190 = arith.constant -2.000000e-01 : f32
    %452 = vector.broadcast %cst_190 : f32 to vector<16x32xf32>
    %453 = arith.cmpf oge, %402, %452 : vector<16x32xf32>
    %cst_191 = arith.constant 2.000000e-01 : f32
    %454 = vector.broadcast %cst_191 : f32 to vector<16x32xf32>
    %455 = arith.cmpf olt, %402, %454 : vector<16x32xf32>
    %456 = arith.andi %453, %455 : vector<16x32xi1>
    %cst_192 = arith.constant 1.000000e+00 : f32
    %cst_193 = arith.constant 0.000000e+00 : f32
    %457 = vector.broadcast %cst_192 : f32 to vector<16x32xf32>
    %458 = vector.broadcast %cst_193 : f32 to vector<16x32xf32>
    %459 = arith.select %456, %457, %458 : vector<16x32xi1>, vector<16x32xf32>
    %cst_194 = arith.constant 2.000000e-01 : f32
    %460 = vector.broadcast %cst_194 : f32 to vector<16x32xf32>
    %461 = arith.cmpf oge, %402, %460 : vector<16x32xf32>
    %cst_195 = arith.constant 6.000000e-01 : f32
    %462 = vector.broadcast %cst_195 : f32 to vector<16x32xf32>
    %463 = arith.cmpf olt, %402, %462 : vector<16x32xf32>
    %464 = arith.andi %461, %463 : vector<16x32xi1>
    %cst_196 = arith.constant 1.000000e+00 : f32
    %cst_197 = arith.constant 0.000000e+00 : f32
    %465 = vector.broadcast %cst_196 : f32 to vector<16x32xf32>
    %466 = vector.broadcast %cst_197 : f32 to vector<16x32xf32>
    %467 = arith.select %464, %465, %466 : vector<16x32xi1>, vector<16x32xf32>
    %cst_198 = arith.constant 6.000000e-01 : f32
    %468 = vector.broadcast %cst_198 : f32 to vector<16x32xf32>
    %469 = arith.cmpf oge, %402, %468 : vector<16x32xf32>
    %cst_199 = arith.constant 1.000000e+00 : f32
    %470 = vector.broadcast %cst_199 : f32 to vector<16x32xf32>
    %471 = arith.cmpf olt, %402, %470 : vector<16x32xf32>
    %472 = arith.andi %469, %471 : vector<16x32xi1>
    %cst_200 = arith.constant 1.000000e+00 : f32
    %cst_201 = arith.constant 0.000000e+00 : f32
    %473 = vector.broadcast %cst_200 : f32 to vector<16x32xf32>
    %474 = vector.broadcast %cst_201 : f32 to vector<16x32xf32>
    %475 = arith.select %472, %473, %474 : vector<16x32xi1>, vector<16x32xf32>
    %cst_202 = arith.constant 1.000000e+00 : f32
    %476 = vector.broadcast %cst_202 : f32 to vector<16x32xf32>
    %477 = arith.cmpf oge, %402, %476 : vector<16x32xf32>
    %cst_203 = arith.constant 1.400000e+00 : f32
    %478 = vector.broadcast %cst_203 : f32 to vector<16x32xf32>
    %479 = arith.cmpf olt, %402, %478 : vector<16x32xf32>
    %480 = arith.andi %477, %479 : vector<16x32xi1>
    %cst_204 = arith.constant 1.000000e+00 : f32
    %cst_205 = arith.constant 0.000000e+00 : f32
    %481 = vector.broadcast %cst_204 : f32 to vector<16x32xf32>
    %482 = vector.broadcast %cst_205 : f32 to vector<16x32xf32>
    %483 = arith.select %480, %481, %482 : vector<16x32xi1>, vector<16x32xf32>
    %cst_206 = arith.constant 1.400000e+00 : f32
    %484 = vector.broadcast %cst_206 : f32 to vector<16x32xf32>
    %485 = arith.cmpf oge, %402, %484 : vector<16x32xf32>
    %cst_207 = arith.constant 1.800000e+00 : f32
    %486 = vector.broadcast %cst_207 : f32 to vector<16x32xf32>
    %487 = arith.cmpf olt, %402, %486 : vector<16x32xf32>
    %488 = arith.andi %485, %487 : vector<16x32xi1>
    %cst_208 = arith.constant 1.000000e+00 : f32
    %cst_209 = arith.constant 0.000000e+00 : f32
    %489 = vector.broadcast %cst_208 : f32 to vector<16x32xf32>
    %490 = vector.broadcast %cst_209 : f32 to vector<16x32xf32>
    %491 = arith.select %488, %489, %490 : vector<16x32xi1>, vector<16x32xf32>
    %cst_210 = arith.constant 1.800000e+00 : f32
    %492 = vector.broadcast %cst_210 : f32 to vector<16x32xf32>
    %493 = arith.cmpf oge, %402, %492 : vector<16x32xf32>
    %cst_211 = arith.constant 2.200000e+00 : f32
    %494 = vector.broadcast %cst_211 : f32 to vector<16x32xf32>
    %495 = arith.cmpf olt, %402, %494 : vector<16x32xf32>
    %496 = arith.andi %493, %495 : vector<16x32xi1>
    %cst_212 = arith.constant 1.000000e+00 : f32
    %cst_213 = arith.constant 0.000000e+00 : f32
    %497 = vector.broadcast %cst_212 : f32 to vector<16x32xf32>
    %498 = vector.broadcast %cst_213 : f32 to vector<16x32xf32>
    %499 = arith.select %496, %497, %498 : vector<16x32xi1>, vector<16x32xf32>
    %cst_214 = arith.constant -2.200000e+00 : f32
    %500 = vector.broadcast %cst_214 : f32 to vector<16x32xf32>
    %501 = arith.subf %402, %500 : vector<16x32xf32>
    %cst_215 = arith.constant 4.000000e-01 : f32
    %502 = vector.broadcast %cst_215 : f32 to vector<16x32xf32>
    %503 = arith.divf %501, %502 : vector<16x32xf32>
    %504 = arith.mulf %503, %419 : vector<16x32xf32>
    %cst_216 = arith.constant -1.400000e+00 : f32
    %505 = vector.broadcast %cst_216 : f32 to vector<16x32xf32>
    %506 = arith.subf %505, %402 : vector<16x32xf32>
    %cst_217 = arith.constant 4.000000e-01 : f32
    %507 = vector.broadcast %cst_217 : f32 to vector<16x32xf32>
    %508 = arith.divf %506, %507 : vector<16x32xf32>
    %509 = arith.mulf %508, %427 : vector<16x32xf32>
    %510 = arith.addf %504, %509 : vector<16x32xf32>
    %cst_218 = arith.constant -1.800000e+00 : f32
    %511 = vector.broadcast %cst_218 : f32 to vector<16x32xf32>
    %512 = arith.subf %402, %511 : vector<16x32xf32>
    %cst_219 = arith.constant 4.000000e-01 : f32
    %513 = vector.broadcast %cst_219 : f32 to vector<16x32xf32>
    %514 = arith.divf %512, %513 : vector<16x32xf32>
    %515 = arith.mulf %514, %427 : vector<16x32xf32>
    %cst_220 = arith.constant -1.000000e+00 : f32
    %516 = vector.broadcast %cst_220 : f32 to vector<16x32xf32>
    %517 = arith.subf %516, %402 : vector<16x32xf32>
    %cst_221 = arith.constant 4.000000e-01 : f32
    %518 = vector.broadcast %cst_221 : f32 to vector<16x32xf32>
    %519 = arith.divf %517, %518 : vector<16x32xf32>
    %520 = arith.mulf %519, %435 : vector<16x32xf32>
    %521 = arith.addf %515, %520 : vector<16x32xf32>
    %cst_222 = arith.constant -1.400000e+00 : f32
    %522 = vector.broadcast %cst_222 : f32 to vector<16x32xf32>
    %523 = arith.subf %402, %522 : vector<16x32xf32>
    %cst_223 = arith.constant 4.000000e-01 : f32
    %524 = vector.broadcast %cst_223 : f32 to vector<16x32xf32>
    %525 = arith.divf %523, %524 : vector<16x32xf32>
    %526 = arith.mulf %525, %435 : vector<16x32xf32>
    %cst_224 = arith.constant -6.000000e-01 : f32
    %527 = vector.broadcast %cst_224 : f32 to vector<16x32xf32>
    %528 = arith.subf %527, %402 : vector<16x32xf32>
    %cst_225 = arith.constant 4.000000e-01 : f32
    %529 = vector.broadcast %cst_225 : f32 to vector<16x32xf32>
    %530 = arith.divf %528, %529 : vector<16x32xf32>
    %531 = arith.mulf %530, %443 : vector<16x32xf32>
    %532 = arith.addf %526, %531 : vector<16x32xf32>
    %cst_226 = arith.constant -1.000000e+00 : f32
    %533 = vector.broadcast %cst_226 : f32 to vector<16x32xf32>
    %534 = arith.subf %402, %533 : vector<16x32xf32>
    %cst_227 = arith.constant 4.000000e-01 : f32
    %535 = vector.broadcast %cst_227 : f32 to vector<16x32xf32>
    %536 = arith.divf %534, %535 : vector<16x32xf32>
    %537 = arith.mulf %536, %443 : vector<16x32xf32>
    %cst_228 = arith.constant -2.000000e-01 : f32
    %538 = vector.broadcast %cst_228 : f32 to vector<16x32xf32>
    %539 = arith.subf %538, %402 : vector<16x32xf32>
    %cst_229 = arith.constant 4.000000e-01 : f32
    %540 = vector.broadcast %cst_229 : f32 to vector<16x32xf32>
    %541 = arith.divf %539, %540 : vector<16x32xf32>
    %542 = arith.mulf %541, %451 : vector<16x32xf32>
    %543 = arith.addf %537, %542 : vector<16x32xf32>
    %cst_230 = arith.constant -6.000000e-01 : f32
    %544 = vector.broadcast %cst_230 : f32 to vector<16x32xf32>
    %545 = arith.subf %402, %544 : vector<16x32xf32>
    %cst_231 = arith.constant 4.000000e-01 : f32
    %546 = vector.broadcast %cst_231 : f32 to vector<16x32xf32>
    %547 = arith.divf %545, %546 : vector<16x32xf32>
    %548 = arith.mulf %547, %451 : vector<16x32xf32>
    %cst_232 = arith.constant 2.000000e-01 : f32
    %549 = vector.broadcast %cst_232 : f32 to vector<16x32xf32>
    %550 = arith.subf %549, %402 : vector<16x32xf32>
    %cst_233 = arith.constant 4.000000e-01 : f32
    %551 = vector.broadcast %cst_233 : f32 to vector<16x32xf32>
    %552 = arith.divf %550, %551 : vector<16x32xf32>
    %553 = arith.mulf %552, %459 : vector<16x32xf32>
    %554 = arith.addf %548, %553 : vector<16x32xf32>
    %cst_234 = arith.constant -2.000000e-01 : f32
    %555 = vector.broadcast %cst_234 : f32 to vector<16x32xf32>
    %556 = arith.subf %402, %555 : vector<16x32xf32>
    %cst_235 = arith.constant 4.000000e-01 : f32
    %557 = vector.broadcast %cst_235 : f32 to vector<16x32xf32>
    %558 = arith.divf %556, %557 : vector<16x32xf32>
    %559 = arith.mulf %558, %459 : vector<16x32xf32>
    %cst_236 = arith.constant 6.000000e-01 : f32
    %560 = vector.broadcast %cst_236 : f32 to vector<16x32xf32>
    %561 = arith.subf %560, %402 : vector<16x32xf32>
    %cst_237 = arith.constant 4.000000e-01 : f32
    %562 = vector.broadcast %cst_237 : f32 to vector<16x32xf32>
    %563 = arith.divf %561, %562 : vector<16x32xf32>
    %564 = arith.mulf %563, %467 : vector<16x32xf32>
    %565 = arith.addf %559, %564 : vector<16x32xf32>
    %cst_238 = arith.constant 2.000000e-01 : f32
    %566 = vector.broadcast %cst_238 : f32 to vector<16x32xf32>
    %567 = arith.subf %402, %566 : vector<16x32xf32>
    %cst_239 = arith.constant 4.000000e-01 : f32
    %568 = vector.broadcast %cst_239 : f32 to vector<16x32xf32>
    %569 = arith.divf %567, %568 : vector<16x32xf32>
    %570 = arith.mulf %569, %467 : vector<16x32xf32>
    %cst_240 = arith.constant 1.000000e+00 : f32
    %571 = vector.broadcast %cst_240 : f32 to vector<16x32xf32>
    %572 = arith.subf %571, %402 : vector<16x32xf32>
    %cst_241 = arith.constant 4.000000e-01 : f32
    %573 = vector.broadcast %cst_241 : f32 to vector<16x32xf32>
    %574 = arith.divf %572, %573 : vector<16x32xf32>
    %575 = arith.mulf %574, %475 : vector<16x32xf32>
    %576 = arith.addf %570, %575 : vector<16x32xf32>
    %cst_242 = arith.constant 6.000000e-01 : f32
    %577 = vector.broadcast %cst_242 : f32 to vector<16x32xf32>
    %578 = arith.subf %402, %577 : vector<16x32xf32>
    %cst_243 = arith.constant 4.000000e-01 : f32
    %579 = vector.broadcast %cst_243 : f32 to vector<16x32xf32>
    %580 = arith.divf %578, %579 : vector<16x32xf32>
    %581 = arith.mulf %580, %475 : vector<16x32xf32>
    %cst_244 = arith.constant 1.400000e+00 : f32
    %582 = vector.broadcast %cst_244 : f32 to vector<16x32xf32>
    %583 = arith.subf %582, %402 : vector<16x32xf32>
    %cst_245 = arith.constant 4.000000e-01 : f32
    %584 = vector.broadcast %cst_245 : f32 to vector<16x32xf32>
    %585 = arith.divf %583, %584 : vector<16x32xf32>
    %586 = arith.mulf %585, %483 : vector<16x32xf32>
    %587 = arith.addf %581, %586 : vector<16x32xf32>
    %cst_246 = arith.constant 1.000000e+00 : f32
    %588 = vector.broadcast %cst_246 : f32 to vector<16x32xf32>
    %589 = arith.subf %402, %588 : vector<16x32xf32>
    %cst_247 = arith.constant 4.000000e-01 : f32
    %590 = vector.broadcast %cst_247 : f32 to vector<16x32xf32>
    %591 = arith.divf %589, %590 : vector<16x32xf32>
    %592 = arith.mulf %591, %483 : vector<16x32xf32>
    %cst_248 = arith.constant 1.800000e+00 : f32
    %593 = vector.broadcast %cst_248 : f32 to vector<16x32xf32>
    %594 = arith.subf %593, %402 : vector<16x32xf32>
    %cst_249 = arith.constant 4.000000e-01 : f32
    %595 = vector.broadcast %cst_249 : f32 to vector<16x32xf32>
    %596 = arith.divf %594, %595 : vector<16x32xf32>
    %597 = arith.mulf %596, %491 : vector<16x32xf32>
    %598 = arith.addf %592, %597 : vector<16x32xf32>
    %cst_250 = arith.constant 1.400000e+00 : f32
    %599 = vector.broadcast %cst_250 : f32 to vector<16x32xf32>
    %600 = arith.subf %402, %599 : vector<16x32xf32>
    %cst_251 = arith.constant 4.000000e-01 : f32
    %601 = vector.broadcast %cst_251 : f32 to vector<16x32xf32>
    %602 = arith.divf %600, %601 : vector<16x32xf32>
    %603 = arith.mulf %602, %491 : vector<16x32xf32>
    %cst_252 = arith.constant 2.200000e+00 : f32
    %604 = vector.broadcast %cst_252 : f32 to vector<16x32xf32>
    %605 = arith.subf %604, %402 : vector<16x32xf32>
    %cst_253 = arith.constant 4.000000e-01 : f32
    %606 = vector.broadcast %cst_253 : f32 to vector<16x32xf32>
    %607 = arith.divf %605, %606 : vector<16x32xf32>
    %608 = arith.mulf %607, %499 : vector<16x32xf32>
    %609 = arith.addf %603, %608 : vector<16x32xf32>
    %cst_254 = arith.constant -2.200000e+00 : f32
    %610 = vector.broadcast %cst_254 : f32 to vector<16x32xf32>
    %611 = arith.subf %402, %610 : vector<16x32xf32>
    %cst_255 = arith.constant 8.000000e-01 : f32
    %612 = vector.broadcast %cst_255 : f32 to vector<16x32xf32>
    %613 = arith.divf %611, %612 : vector<16x32xf32>
    %614 = arith.mulf %613, %510 : vector<16x32xf32>
    %cst_256 = arith.constant -1.000000e+00 : f32
    %615 = vector.broadcast %cst_256 : f32 to vector<16x32xf32>
    %616 = arith.subf %615, %402 : vector<16x32xf32>
    %cst_257 = arith.constant 8.000000e-01 : f32
    %617 = vector.broadcast %cst_257 : f32 to vector<16x32xf32>
    %618 = arith.divf %616, %617 : vector<16x32xf32>
    %619 = arith.mulf %618, %521 : vector<16x32xf32>
    %620 = arith.addf %614, %619 : vector<16x32xf32>
    %cst_258 = arith.constant -1.800000e+00 : f32
    %621 = vector.broadcast %cst_258 : f32 to vector<16x32xf32>
    %622 = arith.subf %402, %621 : vector<16x32xf32>
    %cst_259 = arith.constant 8.000000e-01 : f32
    %623 = vector.broadcast %cst_259 : f32 to vector<16x32xf32>
    %624 = arith.divf %622, %623 : vector<16x32xf32>
    %625 = arith.mulf %624, %521 : vector<16x32xf32>
    %cst_260 = arith.constant -6.000000e-01 : f32
    %626 = vector.broadcast %cst_260 : f32 to vector<16x32xf32>
    %627 = arith.subf %626, %402 : vector<16x32xf32>
    %cst_261 = arith.constant 8.000000e-01 : f32
    %628 = vector.broadcast %cst_261 : f32 to vector<16x32xf32>
    %629 = arith.divf %627, %628 : vector<16x32xf32>
    %630 = arith.mulf %629, %532 : vector<16x32xf32>
    %631 = arith.addf %625, %630 : vector<16x32xf32>
    %cst_262 = arith.constant -1.400000e+00 : f32
    %632 = vector.broadcast %cst_262 : f32 to vector<16x32xf32>
    %633 = arith.subf %402, %632 : vector<16x32xf32>
    %cst_263 = arith.constant 8.000000e-01 : f32
    %634 = vector.broadcast %cst_263 : f32 to vector<16x32xf32>
    %635 = arith.divf %633, %634 : vector<16x32xf32>
    %636 = arith.mulf %635, %532 : vector<16x32xf32>
    %cst_264 = arith.constant -2.000000e-01 : f32
    %637 = vector.broadcast %cst_264 : f32 to vector<16x32xf32>
    %638 = arith.subf %637, %402 : vector<16x32xf32>
    %cst_265 = arith.constant 8.000000e-01 : f32
    %639 = vector.broadcast %cst_265 : f32 to vector<16x32xf32>
    %640 = arith.divf %638, %639 : vector<16x32xf32>
    %641 = arith.mulf %640, %543 : vector<16x32xf32>
    %642 = arith.addf %636, %641 : vector<16x32xf32>
    %cst_266 = arith.constant -1.000000e+00 : f32
    %643 = vector.broadcast %cst_266 : f32 to vector<16x32xf32>
    %644 = arith.subf %402, %643 : vector<16x32xf32>
    %cst_267 = arith.constant 8.000000e-01 : f32
    %645 = vector.broadcast %cst_267 : f32 to vector<16x32xf32>
    %646 = arith.divf %644, %645 : vector<16x32xf32>
    %647 = arith.mulf %646, %543 : vector<16x32xf32>
    %cst_268 = arith.constant 2.000000e-01 : f32
    %648 = vector.broadcast %cst_268 : f32 to vector<16x32xf32>
    %649 = arith.subf %648, %402 : vector<16x32xf32>
    %cst_269 = arith.constant 8.000000e-01 : f32
    %650 = vector.broadcast %cst_269 : f32 to vector<16x32xf32>
    %651 = arith.divf %649, %650 : vector<16x32xf32>
    %652 = arith.mulf %651, %554 : vector<16x32xf32>
    %653 = arith.addf %647, %652 : vector<16x32xf32>
    %cst_270 = arith.constant -6.000000e-01 : f32
    %654 = vector.broadcast %cst_270 : f32 to vector<16x32xf32>
    %655 = arith.subf %402, %654 : vector<16x32xf32>
    %cst_271 = arith.constant 8.000000e-01 : f32
    %656 = vector.broadcast %cst_271 : f32 to vector<16x32xf32>
    %657 = arith.divf %655, %656 : vector<16x32xf32>
    %658 = arith.mulf %657, %554 : vector<16x32xf32>
    %cst_272 = arith.constant 6.000000e-01 : f32
    %659 = vector.broadcast %cst_272 : f32 to vector<16x32xf32>
    %660 = arith.subf %659, %402 : vector<16x32xf32>
    %cst_273 = arith.constant 8.000000e-01 : f32
    %661 = vector.broadcast %cst_273 : f32 to vector<16x32xf32>
    %662 = arith.divf %660, %661 : vector<16x32xf32>
    %663 = arith.mulf %662, %565 : vector<16x32xf32>
    %664 = arith.addf %658, %663 : vector<16x32xf32>
    %cst_274 = arith.constant -2.000000e-01 : f32
    %665 = vector.broadcast %cst_274 : f32 to vector<16x32xf32>
    %666 = arith.subf %402, %665 : vector<16x32xf32>
    %cst_275 = arith.constant 8.000000e-01 : f32
    %667 = vector.broadcast %cst_275 : f32 to vector<16x32xf32>
    %668 = arith.divf %666, %667 : vector<16x32xf32>
    %669 = arith.mulf %668, %565 : vector<16x32xf32>
    %cst_276 = arith.constant 1.000000e+00 : f32
    %670 = vector.broadcast %cst_276 : f32 to vector<16x32xf32>
    %671 = arith.subf %670, %402 : vector<16x32xf32>
    %cst_277 = arith.constant 8.000000e-01 : f32
    %672 = vector.broadcast %cst_277 : f32 to vector<16x32xf32>
    %673 = arith.divf %671, %672 : vector<16x32xf32>
    %674 = arith.mulf %673, %576 : vector<16x32xf32>
    %675 = arith.addf %669, %674 : vector<16x32xf32>
    %cst_278 = arith.constant 2.000000e-01 : f32
    %676 = vector.broadcast %cst_278 : f32 to vector<16x32xf32>
    %677 = arith.subf %402, %676 : vector<16x32xf32>
    %cst_279 = arith.constant 8.000000e-01 : f32
    %678 = vector.broadcast %cst_279 : f32 to vector<16x32xf32>
    %679 = arith.divf %677, %678 : vector<16x32xf32>
    %680 = arith.mulf %679, %576 : vector<16x32xf32>
    %cst_280 = arith.constant 1.400000e+00 : f32
    %681 = vector.broadcast %cst_280 : f32 to vector<16x32xf32>
    %682 = arith.subf %681, %402 : vector<16x32xf32>
    %cst_281 = arith.constant 8.000000e-01 : f32
    %683 = vector.broadcast %cst_281 : f32 to vector<16x32xf32>
    %684 = arith.divf %682, %683 : vector<16x32xf32>
    %685 = arith.mulf %684, %587 : vector<16x32xf32>
    %686 = arith.addf %680, %685 : vector<16x32xf32>
    %cst_282 = arith.constant 6.000000e-01 : f32
    %687 = vector.broadcast %cst_282 : f32 to vector<16x32xf32>
    %688 = arith.subf %402, %687 : vector<16x32xf32>
    %cst_283 = arith.constant 8.000000e-01 : f32
    %689 = vector.broadcast %cst_283 : f32 to vector<16x32xf32>
    %690 = arith.divf %688, %689 : vector<16x32xf32>
    %691 = arith.mulf %690, %587 : vector<16x32xf32>
    %cst_284 = arith.constant 1.800000e+00 : f32
    %692 = vector.broadcast %cst_284 : f32 to vector<16x32xf32>
    %693 = arith.subf %692, %402 : vector<16x32xf32>
    %cst_285 = arith.constant 8.000000e-01 : f32
    %694 = vector.broadcast %cst_285 : f32 to vector<16x32xf32>
    %695 = arith.divf %693, %694 : vector<16x32xf32>
    %696 = arith.mulf %695, %598 : vector<16x32xf32>
    %697 = arith.addf %691, %696 : vector<16x32xf32>
    %cst_286 = arith.constant 1.000000e+00 : f32
    %698 = vector.broadcast %cst_286 : f32 to vector<16x32xf32>
    %699 = arith.subf %402, %698 : vector<16x32xf32>
    %cst_287 = arith.constant 8.000000e-01 : f32
    %700 = vector.broadcast %cst_287 : f32 to vector<16x32xf32>
    %701 = arith.divf %699, %700 : vector<16x32xf32>
    %702 = arith.mulf %701, %598 : vector<16x32xf32>
    %cst_288 = arith.constant 2.200000e+00 : f32
    %703 = vector.broadcast %cst_288 : f32 to vector<16x32xf32>
    %704 = arith.subf %703, %402 : vector<16x32xf32>
    %cst_289 = arith.constant 8.000000e-01 : f32
    %705 = vector.broadcast %cst_289 : f32 to vector<16x32xf32>
    %706 = arith.divf %704, %705 : vector<16x32xf32>
    %707 = arith.mulf %706, %609 : vector<16x32xf32>
    %708 = arith.addf %702, %707 : vector<16x32xf32>
    %cst_290 = arith.constant -2.200000e+00 : f32
    %709 = vector.broadcast %cst_290 : f32 to vector<16x32xf32>
    %710 = arith.subf %402, %709 : vector<16x32xf32>
    %cst_291 = arith.constant 1.200000e+00 : f32
    %711 = vector.broadcast %cst_291 : f32 to vector<16x32xf32>
    %712 = arith.divf %710, %711 : vector<16x32xf32>
    %713 = arith.mulf %712, %620 : vector<16x32xf32>
    %cst_292 = arith.constant -6.000000e-01 : f32
    %714 = vector.broadcast %cst_292 : f32 to vector<16x32xf32>
    %715 = arith.subf %714, %402 : vector<16x32xf32>
    %cst_293 = arith.constant 1.200000e+00 : f32
    %716 = vector.broadcast %cst_293 : f32 to vector<16x32xf32>
    %717 = arith.divf %715, %716 : vector<16x32xf32>
    %718 = arith.mulf %717, %631 : vector<16x32xf32>
    %719 = arith.addf %713, %718 : vector<16x32xf32>
    %cst_294 = arith.constant -1.800000e+00 : f32
    %720 = vector.broadcast %cst_294 : f32 to vector<16x32xf32>
    %721 = arith.subf %402, %720 : vector<16x32xf32>
    %cst_295 = arith.constant 1.200000e+00 : f32
    %722 = vector.broadcast %cst_295 : f32 to vector<16x32xf32>
    %723 = arith.divf %721, %722 : vector<16x32xf32>
    %724 = arith.mulf %723, %631 : vector<16x32xf32>
    %cst_296 = arith.constant -2.000000e-01 : f32
    %725 = vector.broadcast %cst_296 : f32 to vector<16x32xf32>
    %726 = arith.subf %725, %402 : vector<16x32xf32>
    %cst_297 = arith.constant 1.200000e+00 : f32
    %727 = vector.broadcast %cst_297 : f32 to vector<16x32xf32>
    %728 = arith.divf %726, %727 : vector<16x32xf32>
    %729 = arith.mulf %728, %642 : vector<16x32xf32>
    %730 = arith.addf %724, %729 : vector<16x32xf32>
    %cst_298 = arith.constant -1.400000e+00 : f32
    %731 = vector.broadcast %cst_298 : f32 to vector<16x32xf32>
    %732 = arith.subf %402, %731 : vector<16x32xf32>
    %cst_299 = arith.constant 1.200000e+00 : f32
    %733 = vector.broadcast %cst_299 : f32 to vector<16x32xf32>
    %734 = arith.divf %732, %733 : vector<16x32xf32>
    %735 = arith.mulf %734, %642 : vector<16x32xf32>
    %cst_300 = arith.constant 2.000000e-01 : f32
    %736 = vector.broadcast %cst_300 : f32 to vector<16x32xf32>
    %737 = arith.subf %736, %402 : vector<16x32xf32>
    %cst_301 = arith.constant 1.200000e+00 : f32
    %738 = vector.broadcast %cst_301 : f32 to vector<16x32xf32>
    %739 = arith.divf %737, %738 : vector<16x32xf32>
    %740 = arith.mulf %739, %653 : vector<16x32xf32>
    %741 = arith.addf %735, %740 : vector<16x32xf32>
    %cst_302 = arith.constant -1.000000e+00 : f32
    %742 = vector.broadcast %cst_302 : f32 to vector<16x32xf32>
    %743 = arith.subf %402, %742 : vector<16x32xf32>
    %cst_303 = arith.constant 1.200000e+00 : f32
    %744 = vector.broadcast %cst_303 : f32 to vector<16x32xf32>
    %745 = arith.divf %743, %744 : vector<16x32xf32>
    %746 = arith.mulf %745, %653 : vector<16x32xf32>
    %cst_304 = arith.constant 6.000000e-01 : f32
    %747 = vector.broadcast %cst_304 : f32 to vector<16x32xf32>
    %748 = arith.subf %747, %402 : vector<16x32xf32>
    %cst_305 = arith.constant 1.200000e+00 : f32
    %749 = vector.broadcast %cst_305 : f32 to vector<16x32xf32>
    %750 = arith.divf %748, %749 : vector<16x32xf32>
    %751 = arith.mulf %750, %664 : vector<16x32xf32>
    %752 = arith.addf %746, %751 : vector<16x32xf32>
    %cst_306 = arith.constant -6.000000e-01 : f32
    %753 = vector.broadcast %cst_306 : f32 to vector<16x32xf32>
    %754 = arith.subf %402, %753 : vector<16x32xf32>
    %cst_307 = arith.constant 1.200000e+00 : f32
    %755 = vector.broadcast %cst_307 : f32 to vector<16x32xf32>
    %756 = arith.divf %754, %755 : vector<16x32xf32>
    %757 = arith.mulf %756, %664 : vector<16x32xf32>
    %cst_308 = arith.constant 1.000000e+00 : f32
    %758 = vector.broadcast %cst_308 : f32 to vector<16x32xf32>
    %759 = arith.subf %758, %402 : vector<16x32xf32>
    %cst_309 = arith.constant 1.200000e+00 : f32
    %760 = vector.broadcast %cst_309 : f32 to vector<16x32xf32>
    %761 = arith.divf %759, %760 : vector<16x32xf32>
    %762 = arith.mulf %761, %675 : vector<16x32xf32>
    %763 = arith.addf %757, %762 : vector<16x32xf32>
    %cst_310 = arith.constant -2.000000e-01 : f32
    %764 = vector.broadcast %cst_310 : f32 to vector<16x32xf32>
    %765 = arith.subf %402, %764 : vector<16x32xf32>
    %cst_311 = arith.constant 1.200000e+00 : f32
    %766 = vector.broadcast %cst_311 : f32 to vector<16x32xf32>
    %767 = arith.divf %765, %766 : vector<16x32xf32>
    %768 = arith.mulf %767, %675 : vector<16x32xf32>
    %cst_312 = arith.constant 1.400000e+00 : f32
    %769 = vector.broadcast %cst_312 : f32 to vector<16x32xf32>
    %770 = arith.subf %769, %402 : vector<16x32xf32>
    %cst_313 = arith.constant 1.200000e+00 : f32
    %771 = vector.broadcast %cst_313 : f32 to vector<16x32xf32>
    %772 = arith.divf %770, %771 : vector<16x32xf32>
    %773 = arith.mulf %772, %686 : vector<16x32xf32>
    %774 = arith.addf %768, %773 : vector<16x32xf32>
    %cst_314 = arith.constant 2.000000e-01 : f32
    %775 = vector.broadcast %cst_314 : f32 to vector<16x32xf32>
    %776 = arith.subf %402, %775 : vector<16x32xf32>
    %cst_315 = arith.constant 1.200000e+00 : f32
    %777 = vector.broadcast %cst_315 : f32 to vector<16x32xf32>
    %778 = arith.divf %776, %777 : vector<16x32xf32>
    %779 = arith.mulf %778, %686 : vector<16x32xf32>
    %cst_316 = arith.constant 1.800000e+00 : f32
    %780 = vector.broadcast %cst_316 : f32 to vector<16x32xf32>
    %781 = arith.subf %780, %402 : vector<16x32xf32>
    %cst_317 = arith.constant 1.200000e+00 : f32
    %782 = vector.broadcast %cst_317 : f32 to vector<16x32xf32>
    %783 = arith.divf %781, %782 : vector<16x32xf32>
    %784 = arith.mulf %783, %697 : vector<16x32xf32>
    %785 = arith.addf %779, %784 : vector<16x32xf32>
    %cst_318 = arith.constant 6.000000e-01 : f32
    %786 = vector.broadcast %cst_318 : f32 to vector<16x32xf32>
    %787 = arith.subf %402, %786 : vector<16x32xf32>
    %cst_319 = arith.constant 1.200000e+00 : f32
    %788 = vector.broadcast %cst_319 : f32 to vector<16x32xf32>
    %789 = arith.divf %787, %788 : vector<16x32xf32>
    %790 = arith.mulf %789, %697 : vector<16x32xf32>
    %cst_320 = arith.constant 2.200000e+00 : f32
    %791 = vector.broadcast %cst_320 : f32 to vector<16x32xf32>
    %792 = arith.subf %791, %402 : vector<16x32xf32>
    %cst_321 = arith.constant 1.200000e+00 : f32
    %793 = vector.broadcast %cst_321 : f32 to vector<16x32xf32>
    %794 = arith.divf %792, %793 : vector<16x32xf32>
    %795 = arith.mulf %794, %708 : vector<16x32xf32>
    %796 = arith.addf %790, %795 : vector<16x32xf32>
    %797 = tpu.concatenate %719, %730, %741, %752, %763, %774, %785, %796 in 1 : vector<16x32xf32>, vector<16x32xf32>, vector<16x32xf32>, vector<16x32xf32>, vector<16x32xf32>, vector<16x32xf32>, vector<16x32xf32>, vector<16x32xf32> -> vector<16x256xf32>
    %cst_322 = arith.constant dense<0.000000e+00> : vector<16x16xf32>
    %798 = tpu.matmul %797, %404, %cst_322 {dimension_numbers = #tpu.dot_dimension_numbers<[1], [0], [0], [1], [0, 0, 1, 1], [], []>} : vector<16x256xf32>, vector<256x16xf32>, vector<16x16xf32> -> vector<16x16xf32>
    %799 = arith.addf %411, %798 : vector<16x16xf32>
    %800 = arith.addf %5, %799 : vector<16x16xf32>
    %c0_323 = arith.constant 0 : index
    %c0_324 = arith.constant 0 : index
    %801 = vector.load %arg8[%c0_323, %c0_324] : memref<16x16xf32, #tpu.memory_space<vmem>>, vector<16x16xf32>
    tpu.vector_store %arg8[%c0_323, %c0_324], %800 {strides = array<i32>} : memref<16x16xf32, #tpu.memory_space<vmem>>, vector<16x16xf32>,
    return
  }
  func.func @transform_0(%arg0: i32) -> (i32, i32) {
    %c0_i32 = arith.constant 0 : i32
    %c0_i32_0 = arith.constant 0 : i32
    return %arg0, %c0_i32 : i32, i32
  }
  func.func @transform_1(%arg0: i32) -> (i32, i32) {
    %c0_i32 = arith.constant 0 : i32
    %c0_i32_0 = arith.constant 0 : i32
    %c0_i32_1 = arith.constant 0 : i32
    return %c0_i32, %c0_i32_0 : i32, i32
  }
  func.func @transform_2(%arg0: i32) -> (i32, i32) {
    %c0_i32 = arith.constant 0 : i32
    %c0_i32_0 = arith.constant 0 : i32
    %c0_i32_1 = arith.constant 0 : i32
    return %c0_i32, %c0_i32_0 : i32, i32
  }
  func.func @transform_3(%arg0: i32) -> (i32, i32) {
    %c0_i32 = arith.constant 0 : i32
    %c0_i32_0 = arith.constant 0 : i32
    %c0_i32_1 = arith.constant 0 : i32
    return %c0_i32, %c0_i32_0 : i32, i32
  }
  func.func @transform_4(%arg0: i32) -> (i32, i32) {
    %c0_i32 = arith.constant 0 : i32
    %c0_i32_0 = arith.constant 0 : i32
    %c0_i32_1 = arith.constant 0 : i32
    return %c0_i32, %c0_i32_0 : i32, i32
  }
  func.func @transform_5(%arg0: i32) -> (i32, i32) {
    %c0_i32 = arith.constant 0 : i32
    %c0_i32_0 = arith.constant 0 : i32
    %c0_i32_1 = arith.constant 0 : i32
    return %c0_i32, %c0_i32_0 : i32, i32
  }
  func.func @transform_6(%arg0: i32) -> (i32, i32) {
    %c0_i32 = arith.constant 0 : i32
    %c0_i32_0 = arith.constant 0 : i32
    %c0_i32_1 = arith.constant 0 : i32
    return %c0_i32, %c0_i32_0 : i32, i32
  }
  func.func @transform_7(%arg0: i32) -> (i32, i32) {
    %c0_i32 = arith.constant 0 : i32
    %c0_i32_0 = arith.constant 0 : i32
    return %arg0, %c0_i32 : i32, i32
  }
}

</mosaic_0001>

<llo_original>
// kernel: blstm_res_conversion_forward.5
$region0: #{blstm_res_conversion_forward.5}
  #allocation0 [shape = 'u32[]', space=smem, size = 0x4, offset = 0x4, fixed_abs, tag = 'smem constant byte address 0x4 - core index']
  #allocation1 [shape = 'u32[144,128]{1,0:T(1,128)}', space=vmem, size = 0x12000, scoped, tag = 'internal scratch']
  %s0 = inlined_call_operand.hbm [shape: f32[16,16], index: 0, kind: input, shape index: {}]
  %s1 = inlined_call_operand.hbm [shape: f32[16,256], index: 1, kind: input, shape index: {}]
  %s2 = inlined_call_operand.hbm [shape: f32[1,256], index: 2, kind: input, shape index: {}]
  %s3 = inlined_call_operand.vmem [shape: f32[16,256], index: 3, kind: output, shape index: {}]
  %s4 = sld [smem:[#allocation0]]
  $region34: #{blstm_res_conversion_forward.5} parent=0
    _
  %s6 = ssub.s32 1, %s4
  %s7 = scalar_select 0, %s6, %s4
  $region1: #{blstm_res_conversion_forward.5} parent=0
    #allocation2 [shape = 'u8[8192]{0}', space=vmem, size = 0x2000, scoped, tag = 'input window, operand 0, single buffered']
    #allocation3 [shape = 's32[1]{0}', space=sflag, size = 0x4, scoped, tag = 'scoped memory for blstm_res_conversion_forward.5']
    #allocation4 [shape = 'u8[16384]{0}', space=vmem, size = 0x4000, scoped, tag = 'input window, operand 1, single buffered']
    #allocation5 [shape = 's32[1]{0}', space=sflag, size = 0x4, scoped, tag = 'scoped memory for blstm_res_conversion_forward.5']
    #allocation6 [shape = 'u8[1024]{0}', space=vmem, size = 0x400, scoped, tag = 'input window, operand 2, single buffered']
    %8 = vsyncpa [#allocation3], 0
    %9 = vsyncpa [#allocation5], 0
    // Predicated region
    $region2: #{blstm_res_conversion_forward.5} parent=1 // pred_check
      _
    $region3: #{blstm_res_conversion_forward.5} parent=1 // pred_check_branch
      %11 = sbr.rel (0) target = $region5
    $region4: #{blstm_res_conversion_forward.5} parent=1 // pred_region
      %s13 = ssub.s32 256, 256
      %14 = vsyncadd [#allocation3], %s13
      %s15 = sshll.u32 [#allocation2], 4
      %s16 = int_to_ptr.vmem [resolvable:$true] %s15
      %21 = dma.hbm_to_vmem [thread:$0]  %s0, 256, %s16, [#allocation3], 128, 128, 8
    $region5: #{blstm_res_conversion_forward.5} parent=1 // pred_fallthru
      _
    // Predicated region
    $region6: #{blstm_res_conversion_forward.5} parent=1 // pred_check
      _
    $region7: #{blstm_res_conversion_forward.5} parent=1 // pred_check_branch
      %23 = sbr.rel (0) target = $region9
    $region8: #{blstm_res_conversion_forward.5} parent=1 // pred_region
      %s25 = ssub.s32 512, 512
      %26 = vsyncadd [#allocation5], %s25
      %s27 = sshll.u32 [#allocation4], 4
      %s28 = int_to_ptr.vmem [resolvable:$true] %s27
      %33 = dma.hbm_to_vmem [thread:$0]  %s1, 512, %s28, [#allocation5], 256, 256, 16
    $region9: #{blstm_res_conversion_forward.5} parent=1 // pred_fallthru
      _
    // Predicated region
    $region10: #{blstm_res_conversion_forward.5} parent=1 // pred_check
      _
    $region11: #{blstm_res_conversion_forward.5} parent=1 // pred_check_branch
      %35 = sbr.rel (0) target = $region13
    $region12: #{blstm_res_conversion_forward.5} parent=1 // pred_region
      %s37 = ssub.s32 32, 32
      %38 = vsyncadd [#allocation5], %s37
      %s40 = sshll.u32 [#allocation6], 4
      %s41 = int_to_ptr.vmem [resolvable:$true] %s40
      %43 = dma.hbm_to_vmem [thread:$0]  %s2, 32, %s41, [#allocation5]
    $region13: #{blstm_res_conversion_forward.5} parent=1 // pred_fallthru
      _
    // Predicated region
    $region14: #{blstm_res_conversion_forward.5} parent=1 // pred_check
      _
    $region15: #{blstm_res_conversion_forward.5} parent=1 // pred_check_branch
      %45 = sbr.rel (0) target = $region17
    $region16: #{blstm_res_conversion_forward.5} parent=1 // pred_region
      %46 = dma.done [#allocation3], 256
    $region17: #{blstm_res_conversion_forward.5} parent=1 // pred_fallthru
      _
    // Predicated region
    $region18: #{blstm_res_conversion_forward.5} parent=1 // pred_check
      _
    $region19: #{blstm_res_conversion_forward.5} parent=1 // pred_check_branch
      %48 = sbr.rel (0) target = $region21
    $region20: #{blstm_res_conversion_forward.5} parent=1 // pred_region
      %49 = dma.done [#allocation5], 512
    $region21: #{blstm_res_conversion_forward.5} parent=1 // pred_fallthru
      _
    // Predicated region
    $region22: #{blstm_res_conversion_forward.5} parent=1 // pred_check
      _
    $region23: #{blstm_res_conversion_forward.5} parent=1 // pred_check_branch
      %51 = sbr.rel (0) target = $region25
    $region24: #{blstm_res_conversion_forward.5} parent=1 // pred_region
      %52 = dma.done [#allocation5], 32
    $region25: #{blstm_res_conversion_forward.5} parent=1 // pred_fallthru
      _
    %v53 = vld [vmem:[#allocation2] sm:$0xff]
    %v54 = vld [vmem:[#allocation2 + $0x8] sm:$0xff]
    %v55 = vld [vmem:[#allocation4] sm:$0xff]
    %v56 = vld [vmem:[#allocation4 + $0x8] sm:$0xff]
    %v57 = vld [vmem:[#allocation4 + $0x10] sm:$0xff]
    %v58 = vld [vmem:[#allocation4 + $0x18] sm:$0xff]
    %v59 = vld [vmem:[#allocation6] sm:$0x3]
    %v61 = vlaneseq
    %v62 = vshrl.u32 %v61, 7
    %v63 = vsub.s32 0, %v62
    %v64 = vrot.slane %v59, %v63
    %v65 = vlaneseq
    %v66 = vshrl.u32 %v65, 7
    %v67 = vsub.s32 1, %v66
    %v68 = vrot.slane %v59, %v67
    %vm71 = vcmask 130048
    %v73 = vsel %vm71, %v53, 0
    %v76 = vsel %vm71, %v54, 0
    %78 = vmatprep.subr.mxu0 %v56
    %79 = vmatpush1.msra.mxu0 %v55
    %80 = vmatprep.subr.mxu0 %v58
    %81 = vmatpush1.msra.mxu0 %v57
    %82 = vmatprep.subr.mxu0 0.0
    %83 = vmatpush1.msra.mxu0 0.0
    %84 = vmatprep.subr.mxu0 0.0
    %85 = vmatpush1.msra.mxu0 0.0
    %86 = vmatprep.subr.mxu0 0.0
    %87 = vmatpush1.msra.mxu0 0.0
    %88 = vmatprep.subr.mxu0 0.0
    %89 = vmatpush1.msra.mxu0 0.0
    %90 = vmatprep.subr.mxu0 0.0
    %91 = vmatpush1.msra.mxu0 0.0
    %92 = vmatprep.subr.mxu0 0.0
    %93 = vmatpush1.msra.mxu0 0.0
    %94 = vmatprep.subr.mxu0 0.0
    %95 = vmatpush1.msra.mxu0 0.0
    %96 = vmatprep.subr.mxu0 0.0
    %97 = vmatpush1.msra.mxu0 0.0
    %98 = vmatprep.subr.mxu0 0.0
    %99 = vmatpush1.msra.mxu0 0.0
    %100 = vmatprep.subr.mxu0 0.0
    %101 = vmatpush1.msra.mxu0 0.0
    %102 = vmatprep.subr.mxu0 0.0
    %103 = vmatpush1.msra.mxu0 0.0
    %104 = vmatprep.subr.mxu0 0.0
    %105 = vmatpush1.msra.mxu0 0.0
    %106 = vmatprep.subr.mxu0 0.0
    %107 = vmatpush1.msra.mxu0 0.0
    %108 = vmatprep.subr.mxu0 0.0
    %109 = vmatpush1.msra.mxu0 0.0
    %110 = vmatprep.subr.mxu0 0.0
    %111 = vmatpush1.msra.mxu0 0.0
    %112 = vmatprep.subr.mxu0 0.0
    %113 = vmatpush1.msra.mxu0 0.0
    %114 = vmatprep.subr.mxu0 0.0
    %115 = vmatpush1.msra.mxu0 0.0
    %116 = vmatprep.subr.mxu0 0.0
    %117 = vmatpush1.msra.mxu0 0.0
    %118 = vmatprep.subr.mxu0 0.0
    %119 = vmatpush1.msra.mxu0 0.0
    %120 = vmatprep.subr.mxu0 0.0
    %121 = vmatpush1.msra.mxu0 0.0
    %122 = vmatprep.subr.mxu0 0.0
    %123 = vmatpush1.msra.mxu0 0.0
    %124 = vmatprep.subr.mxu0 0.0
    %125 = vmatpush1.msra.mxu0 0.0
    %126 = vmatprep.subr.mxu0 0.0
    %127 = vmatpush1.msra.mxu0 0.0
    %128 = vmatprep.subr.mxu0 0.0
    %129 = vmatpush1.msra.mxu0 0.0
    %130 = vmatprep.subr.mxu0 0.0
    %131 = vmatpush1.msra.mxu0 0.0
    %132 = vmatprep.subr.mxu0 0.0
    %133 = vmatpush1.msra.mxu0 0.0
    %134 = vmatprep.subr.mxu0 0.0
    %135 = vmatpush1.msra.mxu0 0.0
    %136 = vmatprep.subr.mxu0 0.0
    %137 = vmatpush1.msra.mxu0 0.0
    %138 = vmatprep.subr.mxu0 0.0
    %139 = vmatpush1.msra.mxu0 0.0
    %140 = vmatprep.subr.mxu0 0.0
    %141 = vmatpush1.msra.mxu0 0.0
    %142 = vmatprep.mubr.f32.mxu0 0.0
    %143 = vmatmul.mubr.f32.gmra.mrb[0].mxu0 %v73
    %v144 = vpop.f32.mrb[0].mxu0
    %v145 = vadd.f32 %v64, %v144
    %v146 = vpop.f32.mrb[0].mxu0
    %v147 = vadd.f32 %v68, %v146
    %148 = vmatprep.mubr.f32.mxu0 0.0
    %149 = vmatmul.mubr.f32.gmra.mrb[0].mxu0 %v76
    %v150 = vpop.f32.mrb[0].mxu0
    %v151 = vadd.f32 %v64, %v150
    %v152 = vpop.f32.mrb[0].mxu0
    %v153 = vadd.f32 %v68, %v152
    %154 = vdwg.mxu0
    %155 = vst [vmem:[%s3] sm:$0xff] %v145
    %156 = vst [vmem:[%s3 + $0x8] sm:$0xff] %v147
    %157 = vst [vmem:[%s3 + $0x10] sm:$0xff] %v151
    %158 = vst [vmem:[%s3 + $0x18] sm:$0xff] %v153
    // Predicated region
    $region26: #{blstm_res_conversion_forward.5} parent=1 // pred_check
      _
    $region27: #{blstm_res_conversion_forward.5} parent=1 // pred_check_branch
      %160 = sbr.rel (0) target = $region29
    $region28: #{blstm_res_conversion_forward.5} parent=1 // pred_region
      _
    $region29: #{blstm_res_conversion_forward.5} parent=1 // pred_fallthru
      _
    // Predicated region
    $region30: #{blstm_res_conversion_forward.5} parent=1 // pred_check
      _
    $region31: #{blstm_res_conversion_forward.5} parent=1 // pred_check_branch
      %162 = sbr.rel (0) target = $region33
    $region32: #{blstm_res_conversion_forward.5} parent=1 // pred_region
      _
    $region33: #{blstm_res_conversion_forward.5} parent=1 // pred_fallthru
      _
    %163 = vsyncpa [#allocation3], 1
    %164 = vsyncpa [#allocation5], 1

// kernel: blstm_res_conversion_forward.7
$region0: #{blstm_res_conversion_forward.7}
  #allocation0 [shape = 'u32[]', space=smem, size = 0x4, offset = 0x4, fixed_abs, tag = 'smem constant byte address 0x4 - core index']
  #allocation1 [shape = 'u32[144,128]{1,0:T(1,128)}', space=vmem, size = 0x12000, scoped, tag = 'internal scratch']
  %s0 = inlined_call_operand.vmem [shape: f32[16,64], index: 0, kind: input, shape index: {}]
  %s1 = inlined_call_operand.vmem [shape: f32[64,256], index: 1, kind: input, shape index: {}]
  %s2 = inlined_call_operand.vmem [shape: f32[1,256], index: 2, kind: input, shape index: {}]
  %s3 = inlined_call_operand.vmem [shape: f32[16,256], index: 3, kind: output, shape index: {}]
  %s4 = sld [smem:[#allocation0]]
  $region22: #{blstm_res_conversion_forward.7} parent=0
    _
  %s6 = ssub.s32 1, %s4
  %s7 = scalar_select 0, %s6, %s4
  // Predicated region
  $region2: #{blstm_res_conversion_forward.7} parent=0 // pred_check
    _
  $region3: #{blstm_res_conversion_forward.7} parent=0 // pred_check_branch
    %9 = sbr.rel (0) target = $region5
  $region4: #{blstm_res_conversion_forward.7} parent=0 // pred_region
    _
  $region5: #{blstm_res_conversion_forward.7} parent=0 // pred_fallthru
    _
  // Predicated region
  $region6: #{blstm_res_conversion_forward.7} parent=0 // pred_check
    _
  $region7: #{blstm_res_conversion_forward.7} parent=0 // pred_check_branch
    %11 = sbr.rel (0) target = $region9
  $region8: #{blstm_res_conversion_forward.7} parent=0 // pred_region
    _
  $region9: #{blstm_res_conversion_forward.7} parent=0 // pred_fallthru
    _
  // Predicated region
  $region10: #{blstm_res_conversion_forward.7} parent=0 // pred_check
    _
  $region11: #{blstm_res_conversion_forward.7} parent=0 // pred_check_branch
    %13 = sbr.rel (0) target = $region13
  $region12: #{blstm_res_conversion_forward.7} parent=0 // pred_region
    _
  $region13: #{blstm_res_conversion_forward.7} parent=0 // pred_fallthru
    _
  %v14 = vld [vmem:[%s0] sm:$0xff]
  %v15 = vld [vmem:[%s0 + $0x8] sm:$0xff]
  %v16 = vld [vmem:[%s1] sm:$0xff]
  %v17 = vld [vmem:[%s1 + $0x8] sm:$0xff]
  %v18 = vld [vmem:[%s1 + $0x10] sm:$0xff]
  %v19 = vld [vmem:[%s1 + $0x18] sm:$0xff]
  %v20 = vld [vmem:[%s1 + $0x20] sm:$0xff]
  %v21 = vld [vmem:[%s1 + $0x28] sm:$0xff]
  %v22 = vld [vmem:[%s1 + $0x30] sm:$0xff]
  %v23 = vld [vmem:[%s1 + $0x38] sm:$0xff]
  %v24 = vld [vmem:[%s1 + $0x40] sm:$0xff]
  %v25 = vld [vmem:[%s1 + $0x48] sm:$0xff]
  %v26 = vld [vmem:[%s1 + $0x50] sm:$0xff]
  %v27 = vld [vmem:[%s1 + $0x58] sm:$0xff]
  %v28 = vld [vmem:[%s1 + $0x60] sm:$0xff]
  %v29 = vld [vmem:[%s1 + $0x68] sm:$0xff]
  %v30 = vld [vmem:[%s1 + $0x70] sm:$0xff]
  %v31 = vld [vmem:[%s1 + $0x78] sm:$0xff]
  %v32 = vld [vmem:[%s2] sm:$0x3]
  %v34 = vlaneseq
  %v35 = vshrl.u32 %v34, 7
  %v36 = vsub.s32 0, %v35
  %v37 = vrot.slane %v32, %v36
  %v38 = vlaneseq
  %v39 = vshrl.u32 %v38, 7
  %v40 = vsub.s32 1, %v39
  %v41 = vrot.slane %v32, %v40
  %vm44 = vcmask 523264
  %v46 = vsel %vm44, %v14, 0
  %v49 = vsel %vm44, %v15, 0
  %51 = vmatprep.subr.mxu0 %v17
  %52 = vmatpush1.msra.mxu0 %v16
  %53 = vmatprep.subr.mxu0 %v19
  %54 = vmatpush1.msra.mxu0 %v18
  %55 = vmatprep.subr.mxu0 %v21
  %56 = vmatpush1.msra.mxu0 %v20
  %57 = vmatprep.subr.mxu0 %v23
  %58 = vmatpush1.msra.mxu0 %v22
  %59 = vmatprep.subr.mxu0 %v25
  %60 = vmatpush1.msra.mxu0 %v24
  %61 = vmatprep.subr.mxu0 %v27
  %62 = vmatpush1.msra.mxu0 %v26
  %63 = vmatprep.subr.mxu0 %v29
  %64 = vmatpush1.msra.mxu0 %v28
  %65 = vmatprep.subr.mxu0 %v31
  %66 = vmatpush1.msra.mxu0 %v30
  %67 = vmatprep.subr.mxu0 0.0
  %68 = vmatpush1.msra.mxu0 0.0
  %69 = vmatprep.subr.mxu0 0.0
  %70 = vmatpush1.msra.mxu0 0.0
  %71 = vmatprep.subr.mxu0 0.0
  %72 = vmatpush1.msra.mxu0 0.0
  %73 = vmatprep.subr.mxu0 0.0
  %74 = vmatpush1.msra.mxu0 0.0
  %75 = vmatprep.subr.mxu0 0.0
  %76 = vmatpush1.msra.mxu0 0.0
  %77 = vmatprep.subr.mxu0 0.0
  %78 = vmatpush1.msra.mxu0 0.0
  %79 = vmatprep.subr.mxu0 0.0
  %80 = vmatpush1.msra.mxu0 0.0
  %81 = vmatprep.subr.mxu0 0.0
  %82 = vmatpush1.msra.mxu0 0.0
  %83 = vmatprep.subr.mxu0 0.0
  %84 = vmatpush1.msra.mxu0 0.0
  %85 = vmatprep.subr.mxu0 0.0
  %86 = vmatpush1.msra.mxu0 0.0
  %87 = vmatprep.subr.mxu0 0.0
  %88 = vmatpush1.msra.mxu0 0.0
  %89 = vmatprep.subr.mxu0 0.0
  %90 = vmatpush1.msra.mxu0 0.0
  %91 = vmatprep.subr.mxu0 0.0
  %92 = vmatpush1.msra.mxu0 0.0
  %93 = vmatprep.subr.mxu0 0.0
  %94 = vmatpush1.msra.mxu0 0.0
  %95 = vmatprep.subr.mxu0 0.0
  %96 = vmatpush1.msra.mxu0 0.0
  %97 = vmatprep.subr.mxu0 0.0
  %98 = vmatpush1.msra.mxu0 0.0
  %99 = vmatprep.subr.mxu0 0.0
  %100 = vmatpush1.msra.mxu0 0.0
  %101 = vmatprep.subr.mxu0 0.0
  %102 = vmatpush1.msra.mxu0 0.0
  %103 = vmatprep.subr.mxu0 0.0
  %104 = vmatpush1.msra.mxu0 0.0
  %105 = vmatprep.subr.mxu0 0.0
  %106 = vmatpush1.msra.mxu0 0.0
  %107 = vmatprep.subr.mxu0 0.0
  %108 = vmatpush1.msra.mxu0 0.0
  %109 = vmatprep.subr.mxu0 0.0
  %110 = vmatpush1.msra.mxu0 0.0
  %111 = vmatprep.subr.mxu0 0.0
  %112 = vmatpush1.msra.mxu0 0.0
  %113 = vmatprep.subr.mxu0 0.0
  %114 = vmatpush1.msra.mxu0 0.0
  %115 = vmatprep.mubr.f32.mxu0 0.0
  %116 = vmatmul.mubr.f32.gmra.mrb[0].mxu0 %v46
  %v117 = vpop.f32.mrb[0].mxu0
  %v118 = vadd.f32 %v37, %v117
  %v119 = vpop.f32.mrb[0].mxu0
  %v120 = vadd.f32 %v41, %v119
  %121 = vmatprep.mubr.f32.mxu0 0.0
  %122 = vmatmul.mubr.f32.gmra.mrb[0].mxu0 %v49
  %v123 = vpop.f32.mrb[0].mxu0
  %v124 = vadd.f32 %v37, %v123
  %v125 = vpop.f32.mrb[0].mxu0
  %v126 = vadd.f32 %v41, %v125
  %127 = vdwg.mxu0
  %128 = vst [vmem:[%s3] sm:$0xff] %v118
  %129 = vst [vmem:[%s3 + $0x8] sm:$0xff] %v120
  %130 = vst [vmem:[%s3 + $0x10] sm:$0xff] %v124
  %131 = vst [vmem:[%s3 + $0x18] sm:$0xff] %v126
  // Predicated region
  $region14: #{blstm_res_conversion_forward.7} parent=0 // pred_check
    _
  $region15: #{blstm_res_conversion_forward.7} parent=0 // pred_check_branch
    %133 = sbr.rel (0) target = $region17
  $region16: #{blstm_res_conversion_forward.7} parent=0 // pred_region
    _
  $region17: #{blstm_res_conversion_forward.7} parent=0 // pred_fallthru
    _
  // Predicated region
  $region18: #{blstm_res_conversion_forward.7} parent=0 // pred_check
    _
  $region19: #{blstm_res_conversion_forward.7} parent=0 // pred_check_branch
    %135 = sbr.rel (0) target = $region21
  $region20: #{blstm_res_conversion_forward.7} parent=0 // pred_region
    _
  $region21: #{blstm_res_conversion_forward.7} parent=0 // pred_fallthru
    _

// kernel: blstm_res_conversion_forward.6
$region0: #{blstm_res_conversion_forward.6}
  #allocation0 [shape = 'u32[]', space=smem, size = 0x4, offset = 0x4, fixed_abs, tag = 'smem constant byte address 0x4 - core index']
  #allocation1 [shape = 'u32[144,128]{1,0:T(1,128)}', space=vmem, size = 0x12000, scoped, tag = 'internal scratch']
  %s0 = inlined_call_operand.vmem [shape: f32[8,2,256], index: 0, kind: input, shape index: {}]
  %s1 = inlined_call_operand.vmem [shape: f32[64,256], index: 1, kind: input, shape index: {}]
  %s2 = inlined_call_operand.vmem [shape: f32[8,2,64], index: 2, kind: output, shape index: {}]
  %s3 = sld [smem:[#allocation0]]
  $region25: #{blstm_res_conversion_forward.6} parent=0
    _
  %s5 = ssub.s32 1, %s3
  %s6 = scalar_select 0, %s5, %s3
  // Predicated region
  $region2: #{blstm_res_conversion_forward.6} parent=0 // pred_check
    _
  $region3: #{blstm_res_conversion_forward.6} parent=0 // pred_check_branch
    %8 = sbr.rel (0) target = $region5
  $region4: #{blstm_res_conversion_forward.6} parent=0 // pred_region
    _
  $region5: #{blstm_res_conversion_forward.6} parent=0 // pred_fallthru
    _
  // Predicated region
  $region6: #{blstm_res_conversion_forward.6} parent=0 // pred_check
    _
  $region7: #{blstm_res_conversion_forward.6} parent=0 // pred_check_branch
    %10 = sbr.rel (0) target = $region9
  $region8: #{blstm_res_conversion_forward.6} parent=0 // pred_region
    _
  $region9: #{blstm_res_conversion_forward.6} parent=0 // pred_fallthru
    _
  %v11 = vld [vmem:[%s1] sm:$0xff]
  %v12 = vld [vmem:[%s1 + $0x8] sm:$0xff]
  %v13 = vld [vmem:[%s1 + $0x10] sm:$0xff]
  %v14 = vld [vmem:[%s1 + $0x18] sm:$0xff]
  %v15 = vld [vmem:[%s1 + $0x20] sm:$0xff]
  %v16 = vld [vmem:[%s1 + $0x28] sm:$0xff]
  %v17 = vld [vmem:[%s1 + $0x30] sm:$0xff]
  %v18 = vld [vmem:[%s1 + $0x38] sm:$0xff]
  %v19 = vld [vmem:[%s1 + $0x40] sm:$0xff]
  %v20 = vld [vmem:[%s1 + $0x48] sm:$0xff]
  %v21 = vld [vmem:[%s1 + $0x50] sm:$0xff]
  %v22 = vld [vmem:[%s1 + $0x58] sm:$0xff]
  %v23 = vld [vmem:[%s1 + $0x60] sm:$0xff]
  %v24 = vld [vmem:[%s1 + $0x68] sm:$0xff]
  %v25 = vld [vmem:[%s1 + $0x70] sm:$0xff]
  %v26 = vld [vmem:[%s1 + $0x78] sm:$0xff]
  loop: start=0, step=1, limit=8
  $region10: #{blstm_res_conversion_forward.6} parent=0 // loop_pre_header
    _
  $region11: #{blstm_res_conversion_forward.6} parent=0 // loop_header
    %s28 = sphi 0, %s32
    %p29 = scmp.ge.s32.totalorder %s28, 8
    %v33 = vphi 0.0, %v202
    %v34 = vphi 0.0, %v142
    %v35 = vphi 0.0, %v166
  $region12: #{blstm_res_conversion_forward.6} parent=0 // loop_header_branch
    %31 = sbr.rel (%p29) target = $region16
  $region13: #{blstm_res_conversion_forward.6} parent=0 // loop_body
    %s36 = ssub.s32 7, %s28
    %s37 = smul.u32 %s28, 2
    %s38 = smul.addr %s37, 2
    %s39 = scalar_lea.vmem %s0, %s38
    %v40 = vld [vmem:[%s39] sm:$0xf]
    %s41 = smul.u32 %s36, 2
    %s42 = smul.addr %s41, 2
    %s43 = scalar_lea.vmem %s0, %s42
    %v44 = vld [vmem:[%s43] sm:$0xf]
    %vm45 = vcmask 523264
    %v47 = vsel %vm45, %v33, 0
    %49 = vmatprep.subr.mxu0 %v12
    %50 = vmatpush1.msra.mxu0 %v11
    %51 = vmatprep.subr.mxu0 %v14
    %52 = vmatpush1.msra.mxu0 %v13
    %53 = vmatprep.subr.mxu0 %v16
    %54 = vmatpush1.msra.mxu0 %v15
    %55 = vmatprep.subr.mxu0 %v18
    %56 = vmatpush1.msra.mxu0 %v17
    %57 = vmatprep.subr.mxu0 %v20
    %58 = vmatpush1.msra.mxu0 %v19
    %59 = vmatprep.subr.mxu0 %v22
    %60 = vmatpush1.msra.mxu0 %v21
    %61 = vmatprep.subr.mxu0 %v24
    %62 = vmatpush1.msra.mxu0 %v23
    %63 = vmatprep.subr.mxu0 %v26
    %64 = vmatpush1.msra.mxu0 %v25
    %65 = vmatprep.subr.mxu0 0.0
    %66 = vmatpush1.msra.mxu0 0.0
    %67 = vmatprep.subr.mxu0 0.0
    %68 = vmatpush1.msra.mxu0 0.0
    %69 = vmatprep.subr.mxu0 0.0
    %70 = vmatpush1.msra.mxu0 0.0
    %71 = vmatprep.subr.mxu0 0.0
    %72 = vmatpush1.msra.mxu0 0.0
    %73 = vmatprep.subr.mxu0 0.0
    %74 = vmatpush1.msra.mxu0 0.0
    %75 = vmatprep.subr.mxu0 0.0
    %76 = vmatpush1.msra.mxu0 0.0
    %77 = vmatprep.subr.mxu0 0.0
    %78 = vmatpush1.msra.mxu0 0.0
    %79 = vmatprep.subr.mxu0 0.0
    %80 = vmatpush1.msra.mxu0 0.0
    %81 = vmatprep.subr.mxu0 0.0
    %82 = vmatpush1.msra.mxu0 0.0
    %83 = vmatprep.subr.mxu0 0.0
    %84 = vmatpush1.msra.mxu0 0.0
    %85 = vmatprep.subr.mxu0 0.0
    %86 = vmatpush1.msra.mxu0 0.0
    %87 = vmatprep.subr.mxu0 0.0
    %88 = vmatpush1.msra.mxu0 0.0
    %89 = vmatprep.subr.mxu0 0.0
    %90 = vmatpush1.msra.mxu0 0.0
    %91 = vmatprep.subr.mxu0 0.0
    %92 = vmatpush1.msra.mxu0 0.0
    %93 = vmatprep.subr.mxu0 0.0
    %94 = vmatpush1.msra.mxu0 0.0
    %95 = vmatprep.subr.mxu0 0.0
    %96 = vmatpush1.msra.mxu0 0.0
    %97 = vmatprep.subr.mxu0 0.0
    %98 = vmatpush1.msra.mxu0 0.0
    %99 = vmatprep.subr.mxu0 0.0
    %100 = vmatpush1.msra.mxu0 0.0
    %101 = vmatprep.subr.mxu0 0.0
    %102 = vmatpush1.msra.mxu0 0.0
    %103 = vmatprep.subr.mxu0 0.0
    %104 = vmatpush1.msra.mxu0 0.0
    %105 = vmatprep.subr.mxu0 0.0
    %106 = vmatpush1.msra.mxu0 0.0
    %107 = vmatprep.subr.mxu0 0.0
    %108 = vmatpush1.msra.mxu0 0.0
    %109 = vmatprep.subr.mxu0 0.0
    %110 = vmatpush1.msra.mxu0 0.0
    %111 = vmatprep.subr.mxu0 0.0
    %112 = vmatpush1.msra.mxu0 0.0
    %113 = vmatprep.mubr.f32.mxu0 0.0
    %114 = vmatmul.mubr.f32.gmra.mrb[0].mxu0 %v47
    %v115 = vpop.f32.mrb[0].mxu0
    %v116 = vadd.f32 0.0, %v115
    %v117 = vpop.f32.mrb[0].mxu0
    %v118 = vadd.f32 0.0, %v117
    %119 = vdwg.mxu0
    %v120 = vadd.f32 %v40, %v116
    %v122 = vrot.slane %v44, 2
    %v124 = vadd.f32 %v122, %v118
    %v125 = vxor.u32 %v120, 2147483648
    %v126 = vmul.f32 %v125, 1.442695
    %v127 = vpow.pop %v126
    %v128 = vadd.f32 %v127, 1.0
    %v129 = vrcp.pop %v128
    %v130 = vmul.f32 1.0, %v129
    %v131 = vtanh.pop %v120
    %v132 = vmul.f32 %v130, %v34
    %134 = vrot.lane.b32.xlu0 %v131, 64
    %v135 = vpop.permute.xlu0 %134
    %v137 = vmul.f32 %v130, %v135
    %139 = vrot.lane.b32.xlu0 %v137, 32
    %v140 = vpop.permute.xlu0 %139
    %v142 = vadd.f32 %v132, %v140
    %v143 = vtanh.pop %v142
    %145 = vrot.lane.b32.xlu0 %v143, 64
    %v146 = vpop.permute.xlu0 %145
    %v148 = vmul.f32 %v130, %v146
    %v149 = vxor.u32 %v124, 2147483648
    %v150 = vmul.f32 %v149, 1.442695
    %v151 = vpow.pop %v150
    %v152 = vadd.f32 %v151, 1.0
    %v153 = vrcp.pop %v152
    %v154 = vmul.f32 1.0, %v153
    %v155 = vtanh.pop %v124
    %v156 = vmul.f32 %v154, %v35
    %158 = vrot.lane.b32.xlu0 %v155, 64
    %v159 = vpop.permute.xlu0 %158
    %v161 = vmul.f32 %v154, %v159
    %163 = vrot.lane.b32.xlu0 %v161, 32
    %v164 = vpop.permute.xlu0 %163
    %v166 = vadd.f32 %v156, %v164
    %v167 = vtanh.pop %v166
    %169 = vrot.lane.b32.xlu0 %v167, 64
    %v170 = vpop.permute.xlu0 %169
    %v172 = vmul.f32 %v154, %v170
    %v175 = vunpack.c.l.s4 1983009808
    %v176 = vunpack.c.0.s8 %v175
    %v177 = vlaneseq
    %v178 = vshrl.u32 %v177, 7
    %v179 = vsub.s32 %v176, %v178
    %v180 = vrot.slane %v148, %v179
    %181 = vrot.lane.b32.xlu0 %v180, 32
    %v182 = vpop.permute.xlu0 %181
    %s184 = scalar_lea.vmem %s2, %s37
    %vm185 = vcmask 254976
    %186 = vst.msk [vmem:[%s184] sm:$0x3] %vm185, %v182
    %v189 = vunpack.c.l.s4 1983009808
    %v190 = vunpack.c.0.s8 %v189
    %v191 = vlaneseq
    %v192 = vshrl.u32 %v191, 7
    %v193 = vsub.s32 %v190, %v192
    %v194 = vrot.slane %v172, %v193
    %195 = vrot.lane.b32.xlu0 %v194, 64
    %v196 = vpop.permute.xlu0 %195
    %s198 = scalar_lea.vmem %s2, %s41
    %vm199 = vcmask 517376
    %200 = vst.msk [vmem:[%s198] sm:$0x3] %vm199, %v196
    %vm201 = vcmask 261120
    %v202 = vsel %vm201, %v182, %v196
  $region14: #{blstm_res_conversion_forward.6} parent=0 // loop_footer
    %s32 = sadd.s32 1, %s28
  $region15: #{blstm_res_conversion_forward.6} parent=0 // loop_footer_branch
    %27 = sbr.rel target = $region11
  $region16: #{blstm_res_conversion_forward.6} parent=0 // loop_exit
    _
  // Predicated region
  $region17: #{blstm_res_conversion_forward.6} parent=0 // pred_check
    _
  $region18: #{blstm_res_conversion_forward.6} parent=0 // pred_check_branch
    %204 = sbr.rel (0) target = $region20
  $region19: #{blstm_res_conversion_forward.6} parent=0 // pred_region
    _
  $region20: #{blstm_res_conversion_forward.6} parent=0 // pred_fallthru
    _
  // Predicated region
  $region21: #{blstm_res_conversion_forward.6} parent=0 // pred_check
    _
  $region22: #{blstm_res_conversion_forward.6} parent=0 // pred_check_branch
    %206 = sbr.rel (0) target = $region24
  $region23: #{blstm_res_conversion_forward.6} parent=0 // pred_region
    _
  $region24: #{blstm_res_conversion_forward.6} parent=0 // pred_fallthru
    _

// kernel: blstm_res_conversion_forward.9
$region0: #{blstm_res_conversion_forward.9}
  #allocation0 [shape = 'u32[]', space=smem, size = 0x4, offset = 0x4, fixed_abs, tag = 'smem constant byte address 0x4 - core index']
  #allocation1 [shape = 'u32[144,128]{1,0:T(1,128)}', space=vmem, size = 0x12000, scoped, tag = 'internal scratch']
  %s0 = inlined_call_operand.vmem [shape: f32[16,64], index: 0, kind: input, shape index: {}]
  %s1 = inlined_call_operand.vmem [shape: f32[64,16], index: 1, kind: input, shape index: {}]
  %s2 = inlined_call_operand.vmem [shape: f32[1,16], index: 2, kind: input, shape index: {}]
  %s3 = inlined_call_operand.vmem [shape: f32[16,32], index: 3, kind: input, shape index: {}]
  %s4 = inlined_call_operand.vmem [shape: f32[128,32], index: 4, kind: input, shape index: {}]
  %s5 = inlined_call_operand.vmem [shape: f32[32,16], index: 5, kind: input, shape index: {}]
  %s6 = inlined_call_operand.vmem [shape: f32[256,16], index: 6, kind: input, shape index: {}]
  %s7 = inlined_call_operand.hbm [shape: f32[16,16], index: 7, kind: output, shape index: {}]
  %s8 = sld [smem:[#allocation0]]
  $region38: #{blstm_res_conversion_forward.9} parent=0
    _
  %s10 = ssub.s32 1, %s8
  %s11 = scalar_select 0, %s10, %s8
  $region1: #{blstm_res_conversion_forward.9} parent=0
    #allocation2 [shape = 'u8[8192]{0}', space=vmem, size = 0x2000, scoped, tag = 'output window, operand 0, single buffered']
    #allocation3 [shape = 's32[1]{0}', space=sflag, size = 0x4, scoped, tag = 'scoped memory for blstm_res_conversion_forward.9']
    %12 = vsyncpa [#allocation3], 0
    // Predicated region
    $region2: #{blstm_res_conversion_forward.9} parent=1 // pred_check
      _
    $region3: #{blstm_res_conversion_forward.9} parent=1 // pred_check_branch
      %14 = sbr.rel (0) target = $region5
    $region4: #{blstm_res_conversion_forward.9} parent=1 // pred_region
      _
    $region5: #{blstm_res_conversion_forward.9} parent=1 // pred_fallthru
      _
    // Predicated region
    $region6: #{blstm_res_conversion_forward.9} parent=1 // pred_check
      _
    $region7: #{blstm_res_conversion_forward.9} parent=1 // pred_check_branch
      %16 = sbr.rel (0) target = $region9
    $region8: #{blstm_res_conversion_forward.9} parent=1 // pred_region
      _
    $region9: #{blstm_res_conversion_forward.9} parent=1 // pred_fallthru
      _
    // Predicated region
    $region10: #{blstm_res_conversion_forward.9} parent=1 // pred_check
      _
    $region11: #{blstm_res_conversion_forward.9} parent=1 // pred_check_branch
      %18 = sbr.rel (0) target = $region13
    $region12: #{blstm_res_conversion_forward.9} parent=1 // pred_region
      _
    $region13: #{blstm_res_conversion_forward.9} parent=1 // pred_fallthru
      _
    // Predicated region
    $region14: #{blstm_res_conversion_forward.9} parent=1 // pred_check
      _
    $region15: #{blstm_res_conversion_forward.9} parent=1 // pred_check_branch
      %20 = sbr.rel (0) target = $region17
    $region16: #{blstm_res_conversion_forward.9} parent=1 // pred_region
      _
    $region17: #{blstm_res_conversion_forward.9} parent=1 // pred_fallthru
      _
    // Predicated region
    $region18: #{blstm_res_conversion_forward.9} parent=1 // pred_check
      _
    $region19: #{blstm_res_conversion_forward.9} parent=1 // pred_check_branch
      %22 = sbr.rel (0) target = $region21
    $region20: #{blstm_res_conversion_forward.9} parent=1 // pred_region
      _
    $region21: #{blstm_res_conversion_forward.9} parent=1 // pred_fallthru
      _
    // Predicated region
    $region22: #{blstm_res_conversion_forward.9} parent=1 // pred_check
      _
    $region23: #{blstm_res_conversion_forward.9} parent=1 // pred_check_branch
      %24 = sbr.rel (0) target = $region25
    $region24: #{blstm_res_conversion_forward.9} parent=1 // pred_region
      _
    $region25: #{blstm_res_conversion_forward.9} parent=1 // pred_fallthru
      _
    // Predicated region
    $region26: #{blstm_res_conversion_forward.9} parent=1 // pred_check
      _
    $region27: #{blstm_res_conversion_forward.9} parent=1 // pred_check_branch
      %26 = sbr.rel (0) target = $region29
    $region28: #{blstm_res_conversion_forward.9} parent=1 // pred_region
      _
    $region29: #{blstm_res_conversion_forward.9} parent=1 // pred_fallthru
      _
    %v27 = vld [vmem:[%s0] sm:$0xff]
    %v28 = vld [vmem:[%s0 + $0x8] sm:$0xff]
    %v29 = vld [vmem:[%s1] sm:$0xff]
    %v30 = vld [vmem:[%s1 + $0x8] sm:$0xff]
    %v31 = vld [vmem:[%s1 + $0x10] sm:$0xff]
    %v32 = vld [vmem:[%s1 + $0x18] sm:$0xff]
    %v33 = vld [vmem:[%s1 + $0x20] sm:$0xff]
    %v34 = vld [vmem:[%s1 + $0x28] sm:$0xff]
    %v35 = vld [vmem:[%s1 + $0x30] sm:$0xff]
    %v36 = vld [vmem:[%s1 + $0x38] sm:$0xff]
    %v37 = vld [vmem:[%s2] sm:$0x1]
    %v39 = vlaneseq
    %v40 = vshrl.u32 %v39, 7
    %v41 = vsub.s32 0, %v40
    %v42 = vrot.slane %v37, %v41
    %vm44 = vcmask 523264
    %v46 = vsel %vm44, %v27, 0
    %v49 = vsel %vm44, %v28, 0
    %51 = vmatprep.subr.mxu0 0.0
    %52 = vmatpush1.msra.mxu0 %v29
    %53 = vmatprep.subr.mxu0 0.0
    %54 = vmatpush1.msra.mxu0 %v30
    %55 = vmatprep.subr.mxu0 0.0
    %56 = vmatpush1.msra.mxu0 %v31
    %57 = vmatprep.subr.mxu0 0.0
    %58 = vmatpush1.msra.mxu0 %v32
    %59 = vmatprep.subr.mxu0 0.0
    %60 = vmatpush1.msra.mxu0 %v33
    %61 = vmatprep.subr.mxu0 0.0
    %62 = vmatpush1.msra.mxu0 %v34
    %63 = vmatprep.subr.mxu0 0.0
    %64 = vmatpush1.msra.mxu0 %v35
    %65 = vmatprep.subr.mxu0 0.0
    %66 = vmatpush1.msra.mxu0 %v36
    %67 = vmatprep.subr.mxu0 0.0
    %68 = vmatpush1.msra.mxu0 0.0
    %69 = vmatprep.subr.mxu0 0.0
    %70 = vmatpush1.msra.mxu0 0.0
    %71 = vmatprep.subr.mxu0 0.0
    %72 = vmatpush1.msra.mxu0 0.0
    %73 = vmatprep.subr.mxu0 0.0
    %74 = vmatpush1.msra.mxu0 0.0
    %75 = vmatprep.subr.mxu0 0.0
    %76 = vmatpush1.msra.mxu0 0.0
    %77 = vmatprep.subr.mxu0 0.0
    %78 = vmatpush1.msra.mxu0 0.0
    %79 = vmatprep.subr.mxu0 0.0
    %80 = vmatpush1.msra.mxu0 0.0
    %81 = vmatprep.subr.mxu0 0.0
    %82 = vmatpush1.msra.mxu0 0.0
    %83 = vmatprep.subr.mxu0 0.0
    %84 = vmatpush1.msra.mxu0 0.0
    %85 = vmatprep.subr.mxu0 0.0
    %86 = vmatpush1.msra.mxu0 0.0
    %87 = vmatprep.subr.mxu0 0.0
    %88 = vmatpush1.msra.mxu0 0.0
    %89 = vmatprep.subr.mxu0 0.0
    %90 = vmatpush1.msra.mxu0 0.0
    %91 = vmatprep.subr.mxu0 0.0
    %92 = vmatpush1.msra.mxu0 0.0
    %93 = vmatprep.subr.mxu0 0.0
    %94 = vmatpush1.msra.mxu0 0.0
    %95 = vmatprep.subr.mxu0 0.0
    %96 = vmatpush1.msra.mxu0 0.0
    %97 = vmatprep.subr.mxu0 0.0
    %98 = vmatpush1.msra.mxu0 0.0
    %99 = vmatprep.subr.mxu0 0.0
    %100 = vmatpush1.msra.mxu0 0.0
    %101 = vmatprep.subr.mxu0 0.0
    %102 = vmatpush1.msra.mxu0 0.0
    %103 = vmatprep.subr.mxu0 0.0
    %104 = vmatpush1.msra.mxu0 0.0
    %105 = vmatprep.subr.mxu0 0.0
    %106 = vmatpush1.msra.mxu0 0.0
    %107 = vmatprep.subr.mxu0 0.0
    %108 = vmatpush1.msra.mxu0 0.0
    %109 = vmatprep.subr.mxu0 0.0
    %110 = vmatpush1.msra.mxu0 0.0
    %111 = vmatprep.subr.mxu0 0.0
    %112 = vmatpush1.msra.mxu0 0.0
    %113 = vmatprep.subr.mxu0 0.0
    %114 = vmatpush1.msra.mxu0 0.0
    %115 = vmatprep.mubr.f32.mxu0 0.0
    %116 = vmatmul.mubr.f32.gmra.mrb[0].mxu0 %v46
    %v117 = vpop.f32.mrb[0].mxu0
    %v118 = vadd.f32 %v42, %v117
    %v119 = vpop.f32.mrb[0].mxu0
    %120 = vmatprep.mubr.f32.mxu0 0.0
    %121 = vmatmul.mubr.f32.gmra.mrb[0].mxu0 %v49
    %v122 = vpop.f32.mrb[0].mxu0
    %v123 = vadd.f32 %v42, %v122
    %v124 = vpop.f32.mrb[0].mxu0
    %125 = vdwg.mxu0
    %v126 = vld [vmem:[%s3] sm:$0xff]
    %v127 = vld [vmem:[%s3 + $0x8] sm:$0xff]
    %v128 = vld [vmem:[%s4] sm:$0xff]
    %v129 = vld [vmem:[%s4 + $0x8] sm:$0xff]
    %v130 = vld [vmem:[%s4 + $0x10] sm:$0xff]
    %v131 = vld [vmem:[%s4 + $0x18] sm:$0xff]
    %v132 = vld [vmem:[%s4 + $0x20] sm:$0xff]
    %v133 = vld [vmem:[%s4 + $0x28] sm:$0xff]
    %v134 = vld [vmem:[%s4 + $0x30] sm:$0xff]
    %v135 = vld [vmem:[%s4 + $0x38] sm:$0xff]
    %v136 = vld [vmem:[%s4 + $0x40] sm:$0xff]
    %v137 = vld [vmem:[%s4 + $0x48] sm:$0xff]
    %v138 = vld [vmem:[%s4 + $0x50] sm:$0xff]
    %v139 = vld [vmem:[%s4 + $0x58] sm:$0xff]
    %v140 = vld [vmem:[%s4 + $0x60] sm:$0xff]
    %v141 = vld [vmem:[%s4 + $0x68] sm:$0xff]
    %v142 = vld [vmem:[%s4 + $0x70] sm:$0xff]
    %v143 = vld [vmem:[%s4 + $0x78] sm:$0xff]
    %v144 = vxor.u32 %v118, 2147483648
    %v145 = vxor.u32 %v123, 2147483648
    %v146 = vmul.f32 %v144, 1.442695
    %v147 = vpow.pop %v146
    %v148 = vmul.f32 %v145, 1.442695
    %v149 = vpow.pop %v148
    %v150 = vadd.f32 %v147, 1.0
    %v151 = vadd.f32 %v149, 1.0
    %v152 = vrcp.pop %v150
    %v153 = vmul.f32 1.0, %v152
    %v154 = vrcp.pop %v151
    %v155 = vmul.f32 1.0, %v154
    %v156 = vmul.f32 %v118, %v153
    %v157 = vmul.f32 %v123, %v155
    %vm158 = vcmp.ge.f32.partialorder %v118, -2.2
    %vm159 = vcmp.ge.f32.partialorder %v123, -2.2
    %vm160 = vcmp.lt.f32.partialorder %v118, -1.8
    %vm161 = vcmp.lt.f32.partialorder %v123, -1.8
    %vm162 = vmand %vm158, %vm160
    %vm163 = vmand %vm159, %vm161
    %v164 = vsel %vm162, 1.0, 0.0
    %v165 = vsel %vm163, 1.0, 0.0
    %vm166 = vcmp.ge.f32.partialorder %v118, -1.8
    %vm167 = vcmp.ge.f32.partialorder %v123, -1.8
    %vm168 = vcmp.lt.f32.partialorder %v118, -1.4
    %vm169 = vcmp.lt.f32.partialorder %v123, -1.4
    %vm170 = vmand %vm166, %vm168
    %vm171 = vmand %vm167, %vm169
    %v172 = vsel %vm170, 1.0, 0.0
    %v173 = vsel %vm171, 1.0, 0.0
    %vm174 = vcmp.ge.f32.partialorder %v118, -1.4
    %vm175 = vcmp.ge.f32.partialorder %v123, -1.4
    %vm176 = vcmp.lt.f32.partialorder %v118, -1.0
    %vm177 = vcmp.lt.f32.partialorder %v123, -1.0
    %vm178 = vmand %vm174, %vm176
    %vm179 = vmand %vm175, %vm177
    %v180 = vsel %vm178, 1.0, 0.0
    %v181 = vsel %vm179, 1.0, 0.0
    %vm182 = vcmp.ge.f32.partialorder %v118, -1.0
    %vm183 = vcmp.ge.f32.partialorder %v123, -1.0
    %vm184 = vcmp.lt.f32.partialorder %v118, -0.6
    %vm185 = vcmp.lt.f32.partialorder %v123, -0.6
    %vm186 = vmand %vm182, %vm184
    %vm187 = vmand %vm183, %vm185
    %v188 = vsel %vm186, 1.0, 0.0
    %v189 = vsel %vm187, 1.0, 0.0
    %vm190 = vcmp.ge.f32.partialorder %v118, -0.6
    %vm191 = vcmp.ge.f32.partialorder %v123, -0.6
    %vm192 = vcmp.lt.f32.partialorder %v118, -0.2
    %vm193 = vcmp.lt.f32.partialorder %v123, -0.2
    %vm194 = vmand %vm190, %vm192
    %vm195 = vmand %vm191, %vm193
    %v196 = vsel %vm194, 1.0, 0.0
    %v197 = vsel %vm195, 1.0, 0.0
    %vm198 = vcmp.ge.f32.partialorder %v118, -0.2
    %vm199 = vcmp.ge.f32.partialorder %v123, -0.2
    %vm200 = vcmp.lt.f32.partialorder %v118, 0.2
    %vm201 = vcmp.lt.f32.partialorder %v123, 0.2
    %vm202 = vmand %vm198, %vm200
    %vm203 = vmand %vm199, %vm201
    %v204 = vsel %vm202, 1.0, 0.0
    %v205 = vsel %vm203, 1.0, 0.0
    %vm206 = vcmp.ge.f32.partialorder %v118, 0.2
    %vm207 = vcmp.ge.f32.partialorder %v123, 0.2
    %vm208 = vcmp.lt.f32.partialorder %v118, 0.6
    %vm209 = vcmp.lt.f32.partialorder %v123, 0.6
    %vm210 = vmand %vm206, %vm208
    %vm211 = vmand %vm207, %vm209
    %v212 = vsel %vm210, 1.0, 0.0
    %v213 = vsel %vm211, 1.0, 0.0
    %vm214 = vcmp.ge.f32.partialorder %v118, 0.6
    %vm215 = vcmp.ge.f32.partialorder %v123, 0.6
    %vm216 = vcmp.lt.f32.partialorder %v118, 1.0
    %vm217 = vcmp.lt.f32.partialorder %v123, 1.0
    %vm218 = vmand %vm214, %vm216
    %vm219 = vmand %vm215, %vm217
    %v220 = vsel %vm218, 1.0, 0.0
    %v221 = vsel %vm219, 1.0, 0.0
    %vm222 = vcmp.ge.f32.partialorder %v118, 1.0
    %vm223 = vcmp.ge.f32.partialorder %v123, 1.0
    %vm224 = vcmp.lt.f32.partialorder %v118, 1.4
    %vm225 = vcmp.lt.f32.partialorder %v123, 1.4
    %vm226 = vmand %vm222, %vm224
    %vm227 = vmand %vm223, %vm225
    %v228 = vsel %vm226, 1.0, 0.0
    %v229 = vsel %vm227, 1.0, 0.0
    %vm230 = vcmp.ge.f32.partialorder %v118, 1.4
    %vm231 = vcmp.ge.f32.partialorder %v123, 1.4
    %vm232 = vcmp.lt.f32.partialorder %v118, 1.8
    %vm233 = vcmp.lt.f32.partialorder %v123, 1.8
    %vm234 = vmand %vm230, %vm232
    %vm235 = vmand %vm231, %vm233
    %v236 = vsel %vm234, 1.0, 0.0
    %v237 = vsel %vm235, 1.0, 0.0
    %vm238 = vcmp.ge.f32.partialorder %v118, 1.8
    %vm239 = vcmp.ge.f32.partialorder %v123, 1.8
    %vm240 = vcmp.lt.f32.partialorder %v118, 2.2
    %vm241 = vcmp.lt.f32.partialorder %v123, 2.2
    %vm242 = vmand %vm238, %vm240
    %vm243 = vmand %vm239, %vm241
    %v244 = vsel %vm242, 1.0, 0.0
    %v245 = vsel %vm243, 1.0, 0.0
    %v246 = vsub.f32 %v118, -2.2
    %v247 = vsub.f32 %v123, -2.2
    %v248 = vrcp.pop 0.4
    %v249 = vmul.f32 %v246, %v248
    %v250 = vmul.f32 %v247, %v248
    %v251 = vmul.f32 %v249, %v164
    %v252 = vmul.f32 %v250, %v165
    %v253 = vsub.f32 -1.4, %v118
    %v254 = vsub.f32 -1.4, %v123
    %v255 = vmul.f32 %v253, %v248
    %v256 = vmul.f32 %v254, %v248
    %v257 = vmul.f32 %v255, %v172
    %v258 = vmul.f32 %v256, %v173
    %v259 = vadd.f32 %v251, %v257
    %v260 = vadd.f32 %v252, %v258
    %v261 = vsub.f32 %v118, -1.8
    %v262 = vsub.f32 %v123, -1.8
    %v263 = vmul.f32 %v261, %v248
    %v264 = vmul.f32 %v262, %v248
    %v265 = vmul.f32 %v263, %v172
    %v266 = vmul.f32 %v264, %v173
    %v267 = vsub.f32 -1.0, %v118
    %v268 = vsub.f32 -1.0, %v123
    %v269 = vmul.f32 %v267, %v248
    %v270 = vmul.f32 %v268, %v248
    %v271 = vmul.f32 %v269, %v180
    %v272 = vmul.f32 %v270, %v181
    %v273 = vadd.f32 %v265, %v271
    %v274 = vadd.f32 %v266, %v272
    %v275 = vsub.f32 %v118, -1.4
    %v276 = vsub.f32 %v123, -1.4
    %v277 = vmul.f32 %v275, %v248
    %v278 = vmul.f32 %v276, %v248
    %v279 = vmul.f32 %v277, %v180
    %v280 = vmul.f32 %v278, %v181
    %v281 = vsub.f32 -0.6, %v118
    %v282 = vsub.f32 -0.6, %v123
    %v283 = vmul.f32 %v281, %v248
    %v284 = vmul.f32 %v282, %v248
    %v285 = vmul.f32 %v283, %v188
    %v286 = vmul.f32 %v284, %v189
    %v287 = vadd.f32 %v279, %v285
    %v288 = vadd.f32 %v280, %v286
    %v289 = vsub.f32 %v118, -1.0
    %v290 = vsub.f32 %v123, -1.0
    %v291 = vmul.f32 %v289, %v248
    %v292 = vmul.f32 %v290, %v248
    %v293 = vmul.f32 %v291, %v188
    %v294 = vmul.f32 %v292, %v189
    %v295 = vsub.f32 -0.2, %v118
    %v296 = vsub.f32 -0.2, %v123
    %v297 = vmul.f32 %v295, %v248
    %v298 = vmul.f32 %v296, %v248
    %v299 = vmul.f32 %v297, %v196
    %v300 = vmul.f32 %v298, %v197
    %v301 = vadd.f32 %v293, %v299
    %v302 = vadd.f32 %v294, %v300
    %v303 = vsub.f32 %v118, -0.6
    %v304 = vsub.f32 %v123, -0.6
    %v305 = vmul.f32 %v303, %v248
    %v306 = vmul.f32 %v304, %v248
    %v307 = vmul.f32 %v305, %v196
    %v308 = vmul.f32 %v306, %v197
    %v309 = vsub.f32 0.2, %v118
    %v310 = vsub.f32 0.2, %v123
    %v311 = vmul.f32 %v309, %v248
    %v312 = vmul.f32 %v310, %v248
    %v313 = vmul.f32 %v311, %v204
    %v314 = vmul.f32 %v312, %v205
    %v315 = vadd.f32 %v307, %v313
    %v316 = vadd.f32 %v308, %v314
    %v317 = vsub.f32 %v118, -0.2
    %v318 = vsub.f32 %v123, -0.2
    %v319 = vmul.f32 %v317, %v248
    %v320 = vmul.f32 %v318, %v248
    %v321 = vmul.f32 %v319, %v204
    %v322 = vmul.f32 %v320, %v205
    %v323 = vsub.f32 0.6, %v118
    %v324 = vsub.f32 0.6, %v123
    %v325 = vmul.f32 %v323, %v248
    %v326 = vmul.f32 %v324, %v248
    %v327 = vmul.f32 %v325, %v212
    %v328 = vmul.f32 %v326, %v213
    %v329 = vadd.f32 %v321, %v327
    %v330 = vadd.f32 %v322, %v328
    %v331 = vsub.f32 %v118, 0.2
    %v332 = vsub.f32 %v123, 0.2
    %v333 = vmul.f32 %v331, %v248
    %v334 = vmul.f32 %v332, %v248
    %v335 = vmul.f32 %v333, %v212
    %v336 = vmul.f32 %v334, %v213
    %v337 = vsub.f32 1.0, %v118
    %v338 = vsub.f32 1.0, %v123
    %v339 = vmul.f32 %v337, %v248
    %v340 = vmul.f32 %v338, %v248
    %v341 = vmul.f32 %v339, %v220
    %v342 = vmul.f32 %v340, %v221
    %v343 = vadd.f32 %v335, %v341
    %v344 = vadd.f32 %v336, %v342
    %v345 = vsub.f32 %v118, 0.6
    %v346 = vsub.f32 %v123, 0.6
    %v347 = vmul.f32 %v345, %v248
    %v348 = vmul.f32 %v346, %v248
    %v349 = vmul.f32 %v347, %v220
    %v350 = vmul.f32 %v348, %v221
    %v351 = vsub.f32 1.4, %v118
    %v352 = vsub.f32 1.4, %v123
    %v353 = vmul.f32 %v351, %v248
    %v354 = vmul.f32 %v352, %v248
    %v355 = vmul.f32 %v353, %v228
    %v356 = vmul.f32 %v354, %v229
    %v357 = vadd.f32 %v349, %v355
    %v358 = vadd.f32 %v350, %v356
    %v359 = vsub.f32 %v118, 1.0
    %v360 = vsub.f32 %v123, 1.0
    %v361 = vmul.f32 %v359, %v248
    %v362 = vmul.f32 %v360, %v248
    %v363 = vmul.f32 %v361, %v228
    %v364 = vmul.f32 %v362, %v229
    %v365 = vsub.f32 1.8, %v118
    %v366 = vsub.f32 1.8, %v123
    %v367 = vmul.f32 %v365, %v248
    %v368 = vmul.f32 %v366, %v248
    %v369 = vmul.f32 %v367, %v236
    %v370 = vmul.f32 %v368, %v237
    %v371 = vadd.f32 %v363, %v369
    %v372 = vadd.f32 %v364, %v370
    %v373 = vsub.f32 %v118, 1.4
    %v374 = vsub.f32 %v123, 1.4
    %v375 = vmul.f32 %v373, %v248
    %v376 = vmul.f32 %v374, %v248
    %v377 = vmul.f32 %v375, %v236
    %v378 = vmul.f32 %v376, %v237
    %v379 = vsub.f32 2.2, %v118
    %v380 = vsub.f32 2.2, %v123
    %v381 = vmul.f32 %v379, %v248
    %v382 = vmul.f32 %v380, %v248
    %v383 = vmul.f32 %v381, %v244
    %v384 = vmul.f32 %v382, %v245
    %v385 = vadd.f32 %v377, %v383
    %v386 = vadd.f32 %v378, %v384
    %v387 = vrcp.pop 0.8
    %v388 = vmul.f32 %v246, %v387
    %v389 = vmul.f32 %v247, %v387
    %v390 = vmul.f32 %v388, %v259
    %v391 = vmul.f32 %v389, %v260
    %v392 = vmul.f32 %v267, %v387
    %v393 = vmul.f32 %v268, %v387
    %v394 = vmul.f32 %v392, %v273
    %v395 = vmul.f32 %v393, %v274
    %v396 = vadd.f32 %v390, %v394
    %v397 = vadd.f32 %v391, %v395
    %v398 = vmul.f32 %v261, %v387
    %v399 = vmul.f32 %v262, %v387
    %v400 = vmul.f32 %v398, %v273
    %v401 = vmul.f32 %v399, %v274
    %v402 = vmul.f32 %v281, %v387
    %v403 = vmul.f32 %v282, %v387
    %v404 = vmul.f32 %v402, %v287
    %v405 = vmul.f32 %v403, %v288
    %v406 = vadd.f32 %v400, %v404
    %v407 = vadd.f32 %v401, %v405
    %v408 = vmul.f32 %v275, %v387
    %v409 = vmul.f32 %v276, %v387
    %v410 = vmul.f32 %v408, %v287
    %v411 = vmul.f32 %v409, %v288
    %v412 = vmul.f32 %v295, %v387
    %v413 = vmul.f32 %v296, %v387
    %v414 = vmul.f32 %v412, %v301
    %v415 = vmul.f32 %v413, %v302
    %v416 = vadd.f32 %v410, %v414
    %v417 = vadd.f32 %v411, %v415
    %v418 = vmul.f32 %v289, %v387
    %v419 = vmul.f32 %v290, %v387
    %v420 = vmul.f32 %v418, %v301
    %v421 = vmul.f32 %v419, %v302
    %v422 = vmul.f32 %v309, %v387
    %v423 = vmul.f32 %v310, %v387
    %v424 = vmul.f32 %v422, %v315
    %v425 = vmul.f32 %v423, %v316
    %v426 = vadd.f32 %v420, %v424
    %v427 = vadd.f32 %v421, %v425
    %v428 = vmul.f32 %v303, %v387
    %v429 = vmul.f32 %v304, %v387
    %v430 = vmul.f32 %v428, %v315
    %v431 = vmul.f32 %v429, %v316
    %v432 = vmul.f32 %v323, %v387
    %v433 = vmul.f32 %v324, %v387
    %v434 = vmul.f32 %v432, %v329
    %v435 = vmul.f32 %v433, %v330
    %v436 = vadd.f32 %v430, %v434
    %v437 = vadd.f32 %v431, %v435
    %v438 = vmul.f32 %v317, %v387
    %v439 = vmul.f32 %v318, %v387
    %v440 = vmul.f32 %v438, %v329
    %v441 = vmul.f32 %v439, %v330
    %v442 = vmul.f32 %v337, %v387
    %v443 = vmul.f32 %v338, %v387
    %v444 = vmul.f32 %v442, %v343
    %v445 = vmul.f32 %v443, %v344
    %v446 = vadd.f32 %v440, %v444
    %v447 = vadd.f32 %v441, %v445
    %v448 = vmul.f32 %v331, %v387
    %v449 = vmul.f32 %v332, %v387
    %v450 = vmul.f32 %v448, %v343
    %v451 = vmul.f32 %v449, %v344
    %v452 = vmul.f32 %v351, %v387
    %v453 = vmul.f32 %v352, %v387
    %v454 = vmul.f32 %v452, %v357
    %v455 = vmul.f32 %v453, %v358
    %v456 = vadd.f32 %v450, %v454
    %v457 = vadd.f32 %v451, %v455
    %v458 = vmul.f32 %v345, %v387
    %v459 = vmul.f32 %v346, %v387
    %v460 = vmul.f32 %v458, %v357
    %v461 = vmul.f32 %v459, %v358
    %v462 = vmul.f32 %v365, %v387
    %v463 = vmul.f32 %v366, %v387
    %v464 = vmul.f32 %v462, %v371
    %v465 = vmul.f32 %v463, %v372
    %v466 = vadd.f32 %v460, %v464
    %v467 = vadd.f32 %v461, %v465
    %v468 = vmul.f32 %v359, %v387
    %v469 = vmul.f32 %v360, %v387
    %v470 = vmul.f32 %v468, %v371
    %v471 = vmul.f32 %v469, %v372
    %v472 = vmul.f32 %v379, %v387
    %v473 = vmul.f32 %v380, %v387
    %v474 = vmul.f32 %v472, %v385
    %v475 = vmul.f32 %v473, %v386
    %v476 = vadd.f32 %v470, %v474
    %v477 = vadd.f32 %v471, %v475
    %v478 = vrcp.pop 1.2
    %v479 = vmul.f32 %v246, %v478
    %v480 = vmul.f32 %v247, %v478
    %v481 = vmul.f32 %v479, %v396
    %v482 = vmul.f32 %v480, %v397
    %v483 = vmul.f32 %v281, %v478
    %v484 = vmul.f32 %v282, %v478
    %v485 = vmul.f32 %v483, %v406
    %v486 = vmul.f32 %v484, %v407
    %v487 = vadd.f32 %v481, %v485
    %v488 = vadd.f32 %v482, %v486
    %v489 = vmul.f32 %v261, %v478
    %v490 = vmul.f32 %v262, %v478
    %v491 = vmul.f32 %v489, %v406
    %v492 = vmul.f32 %v490, %v407
    %v493 = vmul.f32 %v295, %v478
    %v494 = vmul.f32 %v296, %v478
    %v495 = vmul.f32 %v493, %v416
    %v496 = vmul.f32 %v494, %v417
    %v497 = vadd.f32 %v491, %v495
    %v498 = vadd.f32 %v492, %v496
    %v499 = vmul.f32 %v275, %v478
    %v500 = vmul.f32 %v276, %v478
    %v501 = vmul.f32 %v499, %v416
    %v502 = vmul.f32 %v500, %v417
    %v503 = vmul.f32 %v309, %v478
    %v504 = vmul.f32 %v310, %v478
    %v505 = vmul.f32 %v503, %v426
    %v506 = vmul.f32 %v504, %v427
    %v507 = vadd.f32 %v501, %v505
    %v508 = vadd.f32 %v502, %v506
    %v509 = vmul.f32 %v289, %v478
    %v510 = vmul.f32 %v290, %v478
    %v511 = vmul.f32 %v509, %v426
    %v512 = vmul.f32 %v510, %v427
    %v513 = vmul.f32 %v323, %v478
    %v514 = vmul.f32 %v324, %v478
    %v515 = vmul.f32 %v513, %v436
    %v516 = vmul.f32 %v514, %v437
    %v517 = vadd.f32 %v511, %v515
    %v518 = vadd.f32 %v512, %v516
    %v519 = vmul.f32 %v303, %v478
    %v520 = vmul.f32 %v304, %v478
    %v521 = vmul.f32 %v519, %v436
    %v522 = vmul.f32 %v520, %v437
    %v523 = vmul.f32 %v337, %v478
    %v524 = vmul.f32 %v338, %v478
    %v525 = vmul.f32 %v523, %v446
    %v526 = vmul.f32 %v524, %v447
    %v527 = vadd.f32 %v521, %v525
    %v528 = vadd.f32 %v522, %v526
    %v529 = vmul.f32 %v317, %v478
    %v530 = vmul.f32 %v318, %v478
    %v531 = vmul.f32 %v529, %v446
    %v532 = vmul.f32 %v530, %v447
    %v533 = vmul.f32 %v351, %v478
    %v534 = vmul.f32 %v352, %v478
    %v535 = vmul.f32 %v533, %v456
    %v536 = vmul.f32 %v534, %v457
    %v537 = vadd.f32 %v531, %v535
    %v538 = vadd.f32 %v532, %v536
    %v539 = vmul.f32 %v331, %v478
    %v540 = vmul.f32 %v332, %v478
    %v541 = vmul.f32 %v539, %v456
    %v542 = vmul.f32 %v540, %v457
    %v543 = vmul.f32 %v365, %v478
    %v544 = vmul.f32 %v366, %v478
    %v545 = vmul.f32 %v543, %v466
    %v546 = vmul.f32 %v544, %v467
    %v547 = vadd.f32 %v541, %v545
    %v548 = vadd.f32 %v542, %v546
    %v549 = vmul.f32 %v345, %v478
    %v550 = vmul.f32 %v346, %v478
    %v551 = vmul.f32 %v549, %v466
    %v552 = vmul.f32 %v550, %v467
    %v553 = vmul.f32 %v379, %v478
    %v554 = vmul.f32 %v380, %v478
    %v555 = vmul.f32 %v553, %v476
    %v556 = vmul.f32 %v554, %v477
    %v557 = vadd.f32 %v551, %v555
    %v558 = vadd.f32 %v552, %v556
    %561 = vrot.lane.b32.xlu0 %v497, 16
    %v562 = vpop.permute.xlu0 %561
    %563 = vrot.lane.b32.xlu0 %v498, 16
    %v564 = vpop.permute.xlu0 %563
    %569 = vrot.lane.b32.xlu0 %v507, 32
    %v570 = vpop.permute.xlu0 %569
    %571 = vrot.lane.b32.xlu0 %v508, 32
    %v572 = vpop.permute.xlu0 %571
    %577 = vrot.lane.b32.xlu0 %v517, 48
    %v578 = vpop.permute.xlu0 %577
    %579 = vrot.lane.b32.xlu0 %v518, 48
    %v580 = vpop.permute.xlu0 %579
    %585 = vrot.lane.b32.xlu0 %v527, 64
    %v586 = vpop.permute.xlu0 %585
    %587 = vrot.lane.b32.xlu0 %v528, 64
    %v588 = vpop.permute.xlu0 %587
    %593 = vrot.lane.b32.xlu0 %v537, 80
    %v594 = vpop.permute.xlu0 %593
    %595 = vrot.lane.b32.xlu0 %v538, 80
    %v596 = vpop.permute.xlu0 %595
    %601 = vrot.lane.b32.xlu0 %v547, 96
    %v602 = vpop.permute.xlu0 %601
    %603 = vrot.lane.b32.xlu0 %v548, 96
    %v604 = vpop.permute.xlu0 %603
    %609 = vrot.lane.b32.xlu0 %v557, 112
    %v610 = vpop.permute.xlu0 %609
    %611 = vrot.lane.b32.xlu0 %v558, 112
    %v612 = vpop.permute.xlu0 %611
    %vm615 = vcmask 130048
    %v616 = vsel %vm615, %v487, %v562
    %v617 = vsel %vm615, %v488, %v564
    %vm618 = vcmask 261120
    %v619 = vsel %vm618, %v616, %v570
    %v620 = vsel %vm618, %v617, %v572
    %vm621 = vcmask 392192
    %v622 = vsel %vm621, %v619, %v578
    %v623 = vsel %vm621, %v620, %v580
    %v624 = vsel %vm44, %v622, %v586
    %v625 = vsel %vm44, %v623, %v588
    %vm626 = vcmask 654336
    %v627 = vsel %vm626, %v624, %v594
    %v628 = vsel %vm626, %v625, %v596
    %vm629 = vcmask 785408
    %v630 = vsel %vm629, %v627, %v602
    %v631 = vsel %vm629, %v628, %v604
    %vm632 = vcmask 916480
    %v633 = vsel %vm632, %v630, %v610
    %v634 = vsel %vm632, %v631, %v612
    %635 = vmatprep.subr.mxu0 0.0
    %636 = vmatpush1.msra.mxu0 %v128
    %637 = vmatprep.subr.mxu0 0.0
    %638 = vmatpush1.msra.mxu0 %v129
    %639 = vmatprep.subr.mxu0 0.0
    %640 = vmatpush1.msra.mxu0 %v130
    %641 = vmatprep.subr.mxu0 0.0
    %642 = vmatpush1.msra.mxu0 %v131
    %643 = vmatprep.subr.mxu0 0.0
    %644 = vmatpush1.msra.mxu0 %v132
    %645 = vmatprep.subr.mxu0 0.0
    %646 = vmatpush1.msra.mxu0 %v133
    %647 = vmatprep.subr.mxu0 0.0
    %648 = vmatpush1.msra.mxu0 %v134
    %649 = vmatprep.subr.mxu0 0.0
    %650 = vmatpush1.msra.mxu0 %v135
    %651 = vmatprep.subr.mxu0 0.0
    %652 = vmatpush1.msra.mxu0 %v136
    %653 = vmatprep.subr.mxu0 0.0
    %654 = vmatpush1.msra.mxu0 %v137
    %655 = vmatprep.subr.mxu0 0.0
    %656 = vmatpush1.msra.mxu0 %v138
    %657 = vmatprep.subr.mxu0 0.0
    %658 = vmatpush1.msra.mxu0 %v139
    %659 = vmatprep.subr.mxu0 0.0
    %660 = vmatpush1.msra.mxu0 %v140
    %661 = vmatprep.subr.mxu0 0.0
    %662 = vmatpush1.msra.mxu0 %v141
    %663 = vmatprep.subr.mxu0 0.0
    %664 = vmatpush1.msra.mxu0 %v142
    %665 = vmatprep.subr.mxu0 0.0
    %666 = vmatpush1.msra.mxu0 %v143
    %667 = vmatprep.subr.mxu0 0.0
    %668 = vmatpush1.msra.mxu0 0.0
    %669 = vmatprep.subr.mxu0 0.0
    %670 = vmatpush1.msra.mxu0 0.0
    %671 = vmatprep.subr.mxu0 0.0
    %672 = vmatpush1.msra.mxu0 0.0
    %673 = vmatprep.subr.mxu0 0.0
    %674 = vmatpush1.msra.mxu0 0.0
    %675 = vmatprep.subr.mxu0 0.0
    %676 = vmatpush1.msra.mxu0 0.0
    %677 = vmatprep.subr.mxu0 0.0
    %678 = vmatpush1.msra.mxu0 0.0
    %679 = vmatprep.subr.mxu0 0.0
    %680 = vmatpush1.msra.mxu0 0.0
    %681 = vmatprep.subr.mxu0 0.0
    %682 = vmatpush1.msra.mxu0 0.0
    %683 = vmatprep.subr.mxu0 0.0
    %684 = vmatpush1.msra.mxu0 0.0
    %685 = vmatprep.subr.mxu0 0.0
    %686 = vmatpush1.msra.mxu0 0.0
    %687 = vmatprep.subr.mxu0 0.0
    %688 = vmatpush1.msra.mxu0 0.0
    %689 = vmatprep.subr.mxu0 0.0
    %690 = vmatpush1.msra.mxu0 0.0
    %691 = vmatprep.subr.mxu0 0.0
    %692 = vmatpush1.msra.mxu0 0.0
    %693 = vmatprep.subr.mxu0 0.0
    %694 = vmatpush1.msra.mxu0 0.0
    %695 = vmatprep.subr.mxu0 0.0
    %696 = vmatpush1.msra.mxu0 0.0
    %697 = vmatprep.subr.mxu0 0.0
    %698 = vmatpush1.msra.mxu0 0.0
    %699 = vmatprep.mubr.f32.mxu0 0.0
    %700 = vmatmul.mubr.f32.gmra.mrb[0].mxu0 %v633
    %v701 = vpop.f32.mrb[0].mxu0
    %v702 = vadd.f32 0.0, %v701
    %v703 = vpop.f32.mrb[0].mxu0
    %704 = vmatprep.mubr.f32.mxu0 0.0
    %705 = vmatmul.mubr.f32.gmra.mrb[0].mxu0 %v634
    %v706 = vpop.f32.mrb[0].mxu0
    %v707 = vadd.f32 0.0, %v706
    %v708 = vpop.f32.mrb[0].mxu0
    %709 = vdwg.mxu0
    %v711 = vsel %vm615, %v156, 0
    %v714 = vsel %vm615, %v157, 0
    %716 = vmatprep.subr.mxu0 0.0
    %717 = vmatpush1.msra.mxu0 %v126
    %718 = vmatprep.subr.mxu0 0.0
    %719 = vmatpush1.msra.mxu0 %v127
    %720 = vmatprep.subr.mxu0 0.0
    %721 = vmatpush1.msra.mxu0 0.0
    %722 = vmatprep.subr.mxu0 0.0
    %723 = vmatpush1.msra.mxu0 0.0
    %724 = vmatprep.subr.mxu0 0.0
    %725 = vmatpush1.msra.mxu0 0.0
    %726 = vmatprep.subr.mxu0 0.0
    %727 = vmatpush1.msra.mxu0 0.0
    %728 = vmatprep.subr.mxu0 0.0
    %729 = vmatpush1.msra.mxu0 0.0
    %730 = vmatprep.subr.mxu0 0.0
    %731 = vmatpush1.msra.mxu0 0.0
    %732 = vmatprep.subr.mxu0 0.0
    %733 = vmatpush1.msra.mxu0 0.0
    %734 = vmatprep.subr.mxu0 0.0
    %735 = vmatpush1.msra.mxu0 0.0
    %736 = vmatprep.subr.mxu0 0.0
    %737 = vmatpush1.msra.mxu0 0.0
    %738 = vmatprep.subr.mxu0 0.0
    %739 = vmatpush1.msra.mxu0 0.0
    %740 = vmatprep.subr.mxu0 0.0
    %741 = vmatpush1.msra.mxu0 0.0
    %742 = vmatprep.subr.mxu0 0.0
    %743 = vmatpush1.msra.mxu0 0.0
    %744 = vmatprep.subr.mxu0 0.0
    %745 = vmatpush1.msra.mxu0 0.0
    %746 = vmatprep.subr.mxu0 0.0
    %747 = vmatpush1.msra.mxu0 0.0
    %748 = vmatprep.subr.mxu0 0.0
    %749 = vmatpush1.msra.mxu0 0.0
    %750 = vmatprep.subr.mxu0 0.0
    %751 = vmatpush1.msra.mxu0 0.0
    %752 = vmatprep.subr.mxu0 0.0
    %753 = vmatpush1.msra.mxu0 0.0
    %754 = vmatprep.subr.mxu0 0.0
    %755 = vmatpush1.msra.mxu0 0.0
    %756 = vmatprep.subr.mxu0 0.0
    %757 = vmatpush1.msra.mxu0 0.0
    %758 = vmatprep.subr.mxu0 0.0
    %759 = vmatpush1.msra.mxu0 0.0
    %760 = vmatprep.subr.mxu0 0.0
    %761 = vmatpush1.msra.mxu0 0.0
    %762 = vmatprep.subr.mxu0 0.0
    %763 = vmatpush1.msra.mxu0 0.0
    %764 = vmatprep.subr.mxu0 0.0
    %765 = vmatpush1.msra.mxu0 0.0
    %766 = vmatprep.subr.mxu0 0.0
    %767 = vmatpush1.msra.mxu0 0.0
    %768 = vmatprep.subr.mxu0 0.0
    %769 = vmatpush1.msra.mxu0 0.0
    %770 = vmatprep.subr.mxu0 0.0
    %771 = vmatpush1.msra.mxu0 0.0
    %772 = vmatprep.subr.mxu0 0.0
    %773 = vmatpush1.msra.mxu0 0.0
    %774 = vmatprep.subr.mxu0 0.0
    %775 = vmatpush1.msra.mxu0 0.0
    %776 = vmatprep.subr.mxu0 0.0
    %777 = vmatpush1.msra.mxu0 0.0
    %778 = vmatprep.subr.mxu0 0.0
    %779 = vmatpush1.msra.mxu0 0.0
    %780 = vmatprep.mubr.f32.mxu0 0.0
    %781 = vmatmul.mubr.f32.gmra.mrb[0].mxu0 %v711
    %v782 = vpop.f32.mrb[0].mxu0
    %v783 = vadd.f32 %v702, %v782
    %v784 = vpop.f32.mrb[0].mxu0
    %785 = vmatprep.mubr.f32.mxu0 0.0
    %786 = vmatmul.mubr.f32.gmra.mrb[0].mxu0 %v714
    %v787 = vpop.f32.mrb[0].mxu0
    %v788 = vadd.f32 %v707, %v787
    %v789 = vpop.f32.mrb[0].mxu0
    %790 = vdwg.mxu0
    %v791 = vld [vmem:[%s5] sm:$0xff]
    %v792 = vld [vmem:[%s5 + $0x8] sm:$0xff]
    %v793 = vld [vmem:[%s5 + $0x10] sm:$0xff]
    %v794 = vld [vmem:[%s5 + $0x18] sm:$0xff]
    %v795 = vld [vmem:[%s6] sm:$0xff]
    %v796 = vld [vmem:[%s6 + $0x8] sm:$0xff]
    %v797 = vld [vmem:[%s6 + $0x10] sm:$0xff]
    %v798 = vld [vmem:[%s6 + $0x18] sm:$0xff]
    %v799 = vld [vmem:[%s6 + $0x20] sm:$0xff]
    %v800 = vld [vmem:[%s6 + $0x28] sm:$0xff]
    %v801 = vld [vmem:[%s6 + $0x30] sm:$0xff]
    %v802 = vld [vmem:[%s6 + $0x38] sm:$0xff]
    %v803 = vld [vmem:[%s6 + $0x40] sm:$0xff]
    %v804 = vld [vmem:[%s6 + $0x48] sm:$0xff]
    %v805 = vld [vmem:[%s6 + $0x50] sm:$0xff]
    %v806 = vld [vmem:[%s6 + $0x58] sm:$0xff]
    %v807 = vld [vmem:[%s6 + $0x60] sm:$0xff]
    %v808 = vld [vmem:[%s6 + $0x68] sm:$0xff]
    %v809 = vld [vmem:[%s6 + $0x70] sm:$0xff]
    %v810 = vld [vmem:[%s6 + $0x78] sm:$0xff]
    %v811 = vld [vmem:[%s6 + $0x80] sm:$0xff]
    %v812 = vld [vmem:[%s6 + $0x88] sm:$0xff]
    %v813 = vld [vmem:[%s6 + $0x90] sm:$0xff]
    %v814 = vld [vmem:[%s6 + $0x98] sm:$0xff]
    %v815 = vld [vmem:[%s6 + $0xa0] sm:$0xff]
    %v816 = vld [vmem:[%s6 + $0xa8] sm:$0xff]
    %v817 = vld [vmem:[%s6 + $0xb0] sm:$0xff]
    %v818 = vld [vmem:[%s6 + $0xb8] sm:$0xff]
    %v819 = vld [vmem:[%s6 + $0xc0] sm:$0xff]
    %v820 = vld [vmem:[%s6 + $0xc8] sm:$0xff]
    %v821 = vld [vmem:[%s6 + $0xd0] sm:$0xff]
    %v822 = vld [vmem:[%s6 + $0xd8] sm:$0xff]
    %v823 = vld [vmem:[%s6 + $0xe0] sm:$0xff]
    %v824 = vld [vmem:[%s6 + $0xe8] sm:$0xff]
    %v825 = vld [vmem:[%s6 + $0xf0] sm:$0xff]
    %v826 = vld [vmem:[%s6 + $0xf8] sm:$0xff]
    %v827 = vxor.u32 %v783, 2147483648
    %v828 = vxor.u32 %v788, 2147483648
    %v829 = vmul.f32 %v827, 1.442695
    %v830 = vpow.pop %v829
    %v831 = vmul.f32 %v828, 1.442695
    %v832 = vpow.pop %v831
    %v833 = vadd.f32 %v830, 1.0
    %v834 = vadd.f32 %v832, 1.0
    %v835 = vrcp.pop %v833
    %v836 = vmul.f32 1.0, %v835
    %v837 = vrcp.pop %v834
    %v838 = vmul.f32 1.0, %v837
    %v839 = vmul.f32 %v783, %v836
    %v840 = vmul.f32 %v788, %v838
    %vm841 = vcmp.ge.f32.partialorder %v783, -2.2
    %vm842 = vcmp.ge.f32.partialorder %v788, -2.2
    %vm843 = vcmp.lt.f32.partialorder %v783, -1.8
    %vm844 = vcmp.lt.f32.partialorder %v788, -1.8
    %vm845 = vmand %vm841, %vm843
    %vm846 = vmand %vm842, %vm844
    %v847 = vsel %vm845, 1.0, 0.0
    %v848 = vsel %vm846, 1.0, 0.0
    %vm849 = vcmp.ge.f32.partialorder %v783, -1.8
    %vm850 = vcmp.ge.f32.partialorder %v788, -1.8
    %vm851 = vcmp.lt.f32.partialorder %v783, -1.4
    %vm852 = vcmp.lt.f32.partialorder %v788, -1.4
    %vm853 = vmand %vm849, %vm851
    %vm854 = vmand %vm850, %vm852
    %v855 = vsel %vm853, 1.0, 0.0
    %v856 = vsel %vm854, 1.0, 0.0
    %vm857 = vcmp.ge.f32.partialorder %v783, -1.4
    %vm858 = vcmp.ge.f32.partialorder %v788, -1.4
    %vm859 = vcmp.lt.f32.partialorder %v783, -1.0
    %vm860 = vcmp.lt.f32.partialorder %v788, -1.0
    %vm861 = vmand %vm857, %vm859
    %vm862 = vmand %vm858, %vm860
    %v863 = vsel %vm861, 1.0, 0.0
    %v864 = vsel %vm862, 1.0, 0.0
    %vm865 = vcmp.ge.f32.partialorder %v783, -1.0
    %vm866 = vcmp.ge.f32.partialorder %v788, -1.0
    %vm867 = vcmp.lt.f32.partialorder %v783, -0.6
    %vm868 = vcmp.lt.f32.partialorder %v788, -0.6
    %vm869 = vmand %vm865, %vm867
    %vm870 = vmand %vm866, %vm868
    %v871 = vsel %vm869, 1.0, 0.0
    %v872 = vsel %vm870, 1.0, 0.0
    %vm873 = vcmp.ge.f32.partialorder %v783, -0.6
    %vm874 = vcmp.ge.f32.partialorder %v788, -0.6
    %vm875 = vcmp.lt.f32.partialorder %v783, -0.2
    %vm876 = vcmp.lt.f32.partialorder %v788, -0.2
    %vm877 = vmand %vm873, %vm875
    %vm878 = vmand %vm874, %vm876
    %v879 = vsel %vm877, 1.0, 0.0
    %v880 = vsel %vm878, 1.0, 0.0
    %vm881 = vcmp.ge.f32.partialorder %v783, -0.2
    %vm882 = vcmp.ge.f32.partialorder %v788, -0.2
    %vm883 = vcmp.lt.f32.partialorder %v783, 0.2
    %vm884 = vcmp.lt.f32.partialorder %v788, 0.2
    %vm885 = vmand %vm881, %vm883
    %vm886 = vmand %vm882, %vm884
    %v887 = vsel %vm885, 1.0, 0.0
    %v888 = vsel %vm886, 1.0, 0.0
    %vm889 = vcmp.ge.f32.partialorder %v783, 0.2
    %vm890 = vcmp.ge.f32.partialorder %v788, 0.2
    %vm891 = vcmp.lt.f32.partialorder %v783, 0.6
    %vm892 = vcmp.lt.f32.partialorder %v788, 0.6
    %vm893 = vmand %vm889, %vm891
    %vm894 = vmand %vm890, %vm892
    %v895 = vsel %vm893, 1.0, 0.0
    %v896 = vsel %vm894, 1.0, 0.0
    %vm897 = vcmp.ge.f32.partialorder %v783, 0.6
    %vm898 = vcmp.ge.f32.partialorder %v788, 0.6
    %vm899 = vcmp.lt.f32.partialorder %v783, 1.0
    %vm900 = vcmp.lt.f32.partialorder %v788, 1.0
    %vm901 = vmand %vm897, %vm899
    %vm902 = vmand %vm898, %vm900
    %v903 = vsel %vm901, 1.0, 0.0
    %v904 = vsel %vm902, 1.0, 0.0
    %vm905 = vcmp.ge.f32.partialorder %v783, 1.0
    %vm906 = vcmp.ge.f32.partialorder %v788, 1.0
    %vm907 = vcmp.lt.f32.partialorder %v783, 1.4
    %vm908 = vcmp.lt.f32.partialorder %v788, 1.4
    %vm909 = vmand %vm905, %vm907
    %vm910 = vmand %vm906, %vm908
    %v911 = vsel %vm909, 1.0, 0.0
    %v912 = vsel %vm910, 1.0, 0.0
    %vm913 = vcmp.ge.f32.partialorder %v783, 1.4
    %vm914 = vcmp.ge.f32.partialorder %v788, 1.4
    %vm915 = vcmp.lt.f32.partialorder %v783, 1.8
    %vm916 = vcmp.lt.f32.partialorder %v788, 1.8
    %vm917 = vmand %vm913, %vm915
    %vm918 = vmand %vm914, %vm916
    %v919 = vsel %vm917, 1.0, 0.0
    %v920 = vsel %vm918, 1.0, 0.0
    %vm921 = vcmp.ge.f32.partialorder %v783, 1.8
    %vm922 = vcmp.ge.f32.partialorder %v788, 1.8
    %vm923 = vcmp.lt.f32.partialorder %v783, 2.2
    %vm924 = vcmp.lt.f32.partialorder %v788, 2.2
    %vm925 = vmand %vm921, %vm923
    %vm926 = vmand %vm922, %vm924
    %v927 = vsel %vm925, 1.0, 0.0
    %v928 = vsel %vm926, 1.0, 0.0
    %v929 = vsub.f32 %v783, -2.2
    %v930 = vsub.f32 %v788, -2.2
    %v931 = vmul.f32 %v929, %v248
    %v932 = vmul.f32 %v930, %v248
    %v933 = vmul.f32 %v931, %v847
    %v934 = vmul.f32 %v932, %v848
    %v935 = vsub.f32 -1.4, %v783
    %v936 = vsub.f32 -1.4, %v788
    %v937 = vmul.f32 %v935, %v248
    %v938 = vmul.f32 %v936, %v248
    %v939 = vmul.f32 %v937, %v855
    %v940 = vmul.f32 %v938, %v856
    %v941 = vadd.f32 %v933, %v939
    %v942 = vadd.f32 %v934, %v940
    %v943 = vsub.f32 %v783, -1.8
    %v944 = vsub.f32 %v788, -1.8
    %v945 = vmul.f32 %v943, %v248
    %v946 = vmul.f32 %v944, %v248
    %v947 = vmul.f32 %v945, %v855
    %v948 = vmul.f32 %v946, %v856
    %v949 = vsub.f32 -1.0, %v783
    %v950 = vsub.f32 -1.0, %v788
    %v951 = vmul.f32 %v949, %v248
    %v952 = vmul.f32 %v950, %v248
    %v953 = vmul.f32 %v951, %v863
    %v954 = vmul.f32 %v952, %v864
    %v955 = vadd.f32 %v947, %v953
    %v956 = vadd.f32 %v948, %v954
    %v957 = vsub.f32 %v783, -1.4
    %v958 = vsub.f32 %v788, -1.4
    %v959 = vmul.f32 %v957, %v248
    %v960 = vmul.f32 %v958, %v248
    %v961 = vmul.f32 %v959, %v863
    %v962 = vmul.f32 %v960, %v864
    %v963 = vsub.f32 -0.6, %v783
    %v964 = vsub.f32 -0.6, %v788
    %v965 = vmul.f32 %v963, %v248
    %v966 = vmul.f32 %v964, %v248
    %v967 = vmul.f32 %v965, %v871
    %v968 = vmul.f32 %v966, %v872
    %v969 = vadd.f32 %v961, %v967
    %v970 = vadd.f32 %v962, %v968
    %v971 = vsub.f32 %v783, -1.0
    %v972 = vsub.f32 %v788, -1.0
    %v973 = vmul.f32 %v971, %v248
    %v974 = vmul.f32 %v972, %v248
    %v975 = vmul.f32 %v973, %v871
    %v976 = vmul.f32 %v974, %v872
    %v977 = vsub.f32 -0.2, %v783
    %v978 = vsub.f32 -0.2, %v788
    %v979 = vmul.f32 %v977, %v248
    %v980 = vmul.f32 %v978, %v248
    %v981 = vmul.f32 %v979, %v879
    %v982 = vmul.f32 %v980, %v880
    %v983 = vadd.f32 %v975, %v981
    %v984 = vadd.f32 %v976, %v982
    %v985 = vsub.f32 %v783, -0.6
    %v986 = vsub.f32 %v788, -0.6
    %v987 = vmul.f32 %v985, %v248
    %v988 = vmul.f32 %v986, %v248
    %v989 = vmul.f32 %v987, %v879
    %v990 = vmul.f32 %v988, %v880
    %v991 = vsub.f32 0.2, %v783
    %v992 = vsub.f32 0.2, %v788
    %v993 = vmul.f32 %v991, %v248
    %v994 = vmul.f32 %v992, %v248
    %v995 = vmul.f32 %v993, %v887
    %v996 = vmul.f32 %v994, %v888
    %v997 = vadd.f32 %v989, %v995
    %v998 = vadd.f32 %v990, %v996
    %v999 = vsub.f32 %v783, -0.2
    %v1000 = vsub.f32 %v788, -0.2
    %v1001 = vmul.f32 %v999, %v248
    %v1002 = vmul.f32 %v1000, %v248
    %v1003 = vmul.f32 %v1001, %v887
    %v1004 = vmul.f32 %v1002, %v888
    %v1005 = vsub.f32 0.6, %v783
    %v1006 = vsub.f32 0.6, %v788
    %v1007 = vmul.f32 %v1005, %v248
    %v1008 = vmul.f32 %v1006, %v248
    %v1009 = vmul.f32 %v1007, %v895
    %v1010 = vmul.f32 %v1008, %v896
    %v1011 = vadd.f32 %v1003, %v1009
    %v1012 = vadd.f32 %v1004, %v1010
    %v1013 = vsub.f32 %v783, 0.2
    %v1014 = vsub.f32 %v788, 0.2
    %v1015 = vmul.f32 %v1013, %v248
    %v1016 = vmul.f32 %v1014, %v248
    %v1017 = vmul.f32 %v1015, %v895
    %v1018 = vmul.f32 %v1016, %v896
    %v1019 = vsub.f32 1.0, %v783
    %v1020 = vsub.f32 1.0, %v788
    %v1021 = vmul.f32 %v1019, %v248
    %v1022 = vmul.f32 %v1020, %v248
    %v1023 = vmul.f32 %v1021, %v903
    %v1024 = vmul.f32 %v1022, %v904
    %v1025 = vadd.f32 %v1017, %v1023
    %v1026 = vadd.f32 %v1018, %v1024
    %v1027 = vsub.f32 %v783, 0.6
    %v1028 = vsub.f32 %v788, 0.6
    %v1029 = vmul.f32 %v1027, %v248
    %v1030 = vmul.f32 %v1028, %v248
    %v1031 = vmul.f32 %v1029, %v903
    %v1032 = vmul.f32 %v1030, %v904
    %v1033 = vsub.f32 1.4, %v783
    %v1034 = vsub.f32 1.4, %v788
    %v1035 = vmul.f32 %v1033, %v248
    %v1036 = vmul.f32 %v1034, %v248
    %v1037 = vmul.f32 %v1035, %v911
    %v1038 = vmul.f32 %v1036, %v912
    %v1039 = vadd.f32 %v1031, %v1037
    %v1040 = vadd.f32 %v1032, %v1038
    %v1041 = vsub.f32 %v783, 1.0
    %v1042 = vsub.f32 %v788, 1.0
    %v1043 = vmul.f32 %v1041, %v248
    %v1044 = vmul.f32 %v1042, %v248
    %v1045 = vmul.f32 %v1043, %v911
    %v1046 = vmul.f32 %v1044, %v912
    %v1047 = vsub.f32 1.8, %v783
    %v1048 = vsub.f32 1.8, %v788
    %v1049 = vmul.f32 %v1047, %v248
    %v1050 = vmul.f32 %v1048, %v248
    %v1051 = vmul.f32 %v1049, %v919
    %v1052 = vmul.f32 %v1050, %v920
    %v1053 = vadd.f32 %v1045, %v1051
    %v1054 = vadd.f32 %v1046, %v1052
    %v1055 = vsub.f32 %v783, 1.4
    %v1056 = vsub.f32 %v788, 1.4
    %v1057 = vmul.f32 %v1055, %v248
    %v1058 = vmul.f32 %v1056, %v248
    %v1059 = vmul.f32 %v1057, %v919
    %v1060 = vmul.f32 %v1058, %v920
    %v1061 = vsub.f32 2.2, %v783
    %v1062 = vsub.f32 2.2, %v788
    %v1063 = vmul.f32 %v1061, %v248
    %v1064 = vmul.f32 %v1062, %v248
    %v1065 = vmul.f32 %v1063, %v927
    %v1066 = vmul.f32 %v1064, %v928
    %v1067 = vadd.f32 %v1059, %v1065
    %v1068 = vadd.f32 %v1060, %v1066
    %v1069 = vmul.f32 %v929, %v387
    %v1070 = vmul.f32 %v930, %v387
    %v1071 = vmul.f32 %v1069, %v941
    %v1072 = vmul.f32 %v1070, %v942
    %v1073 = vmul.f32 %v949, %v387
    %v1074 = vmul.f32 %v950, %v387
    %v1075 = vmul.f32 %v1073, %v955
    %v1076 = vmul.f32 %v1074, %v956
    %v1077 = vadd.f32 %v1071, %v1075
    %v1078 = vadd.f32 %v1072, %v1076
    %v1079 = vmul.f32 %v943, %v387
    %v1080 = vmul.f32 %v944, %v387
    %v1081 = vmul.f32 %v1079, %v955
    %v1082 = vmul.f32 %v1080, %v956
    %v1083 = vmul.f32 %v963, %v387
    %v1084 = vmul.f32 %v964, %v387
    %v1085 = vmul.f32 %v1083, %v969
    %v1086 = vmul.f32 %v1084, %v970
    %v1087 = vadd.f32 %v1081, %v1085
    %v1088 = vadd.f32 %v1082, %v1086
    %v1089 = vmul.f32 %v957, %v387
    %v1090 = vmul.f32 %v958, %v387
    %v1091 = vmul.f32 %v1089, %v969
    %v1092 = vmul.f32 %v1090, %v970
    %v1093 = vmul.f32 %v977, %v387
    %v1094 = vmul.f32 %v978, %v387
    %v1095 = vmul.f32 %v1093, %v983
    %v1096 = vmul.f32 %v1094, %v984
    %v1097 = vadd.f32 %v1091, %v1095
    %v1098 = vadd.f32 %v1092, %v1096
    %v1099 = vmul.f32 %v971, %v387
    %v1100 = vmul.f32 %v972, %v387
    %v1101 = vmul.f32 %v1099, %v983
    %v1102 = vmul.f32 %v1100, %v984
    %v1103 = vmul.f32 %v991, %v387
    %v1104 = vmul.f32 %v992, %v387
    %v1105 = vmul.f32 %v1103, %v997
    %v1106 = vmul.f32 %v1104, %v998
    %v1107 = vadd.f32 %v1101, %v1105
    %v1108 = vadd.f32 %v1102, %v1106
    %v1109 = vmul.f32 %v985, %v387
    %v1110 = vmul.f32 %v986, %v387
    %v1111 = vmul.f32 %v1109, %v997
    %v1112 = vmul.f32 %v1110, %v998
    %v1113 = vmul.f32 %v1005, %v387
    %v1114 = vmul.f32 %v1006, %v387
    %v1115 = vmul.f32 %v1113, %v1011
    %v1116 = vmul.f32 %v1114, %v1012
    %v1117 = vadd.f32 %v1111, %v1115
    %v1118 = vadd.f32 %v1112, %v1116
    %v1119 = vmul.f32 %v999, %v387
    %v1120 = vmul.f32 %v1000, %v387
    %v1121 = vmul.f32 %v1119, %v1011
    %v1122 = vmul.f32 %v1120, %v1012
    %v1123 = vmul.f32 %v1019, %v387
    %v1124 = vmul.f32 %v1020, %v387
    %v1125 = vmul.f32 %v1123, %v1025
    %v1126 = vmul.f32 %v1124, %v1026
    %v1127 = vadd.f32 %v1121, %v1125
    %v1128 = vadd.f32 %v1122, %v1126
    %v1129 = vmul.f32 %v1013, %v387
    %v1130 = vmul.f32 %v1014, %v387
    %v1131 = vmul.f32 %v1129, %v1025
    %v1132 = vmul.f32 %v1130, %v1026
    %v1133 = vmul.f32 %v1033, %v387
    %v1134 = vmul.f32 %v1034, %v387
    %v1135 = vmul.f32 %v1133, %v1039
    %v1136 = vmul.f32 %v1134, %v1040
    %v1137 = vadd.f32 %v1131, %v1135
    %v1138 = vadd.f32 %v1132, %v1136
    %v1139 = vmul.f32 %v1027, %v387
    %v1140 = vmul.f32 %v1028, %v387
    %v1141 = vmul.f32 %v1139, %v1039
    %v1142 = vmul.f32 %v1140, %v1040
    %v1143 = vmul.f32 %v1047, %v387
    %v1144 = vmul.f32 %v1048, %v387
    %v1145 = vmul.f32 %v1143, %v1053
    %v1146 = vmul.f32 %v1144, %v1054
    %v1147 = vadd.f32 %v1141, %v1145
    %v1148 = vadd.f32 %v1142, %v1146
    %v1149 = vmul.f32 %v1041, %v387
    %v1150 = vmul.f32 %v1042, %v387
    %v1151 = vmul.f32 %v1149, %v1053
    %v1152 = vmul.f32 %v1150, %v1054
    %v1153 = vmul.f32 %v1061, %v387
    %v1154 = vmul.f32 %v1062, %v387
    %v1155 = vmul.f32 %v1153, %v1067
    %v1156 = vmul.f32 %v1154, %v1068
    %v1157 = vadd.f32 %v1151, %v1155
    %v1158 = vadd.f32 %v1152, %v1156
    %v1159 = vmul.f32 %v929, %v478
    %v1160 = vmul.f32 %v930, %v478
    %v1161 = vmul.f32 %v1159, %v1077
    %v1162 = vmul.f32 %v1160, %v1078
    %v1163 = vmul.f32 %v963, %v478
    %v1164 = vmul.f32 %v964, %v478
    %v1165 = vmul.f32 %v1163, %v1087
    %v1166 = vmul.f32 %v1164, %v1088
    %v1167 = vadd.f32 %v1161, %v1165
    %v1168 = vadd.f32 %v1162, %v1166
    %v1169 = vmul.f32 %v943, %v478
    %v1170 = vmul.f32 %v944, %v478
    %v1171 = vmul.f32 %v1169, %v1087
    %v1172 = vmul.f32 %v1170, %v1088
    %v1173 = vmul.f32 %v977, %v478
    %v1174 = vmul.f32 %v978, %v478
    %v1175 = vmul.f32 %v1173, %v1097
    %v1176 = vmul.f32 %v1174, %v1098
    %v1177 = vadd.f32 %v1171, %v1175
    %v1178 = vadd.f32 %v1172, %v1176
    %v1179 = vmul.f32 %v957, %v478
    %v1180 = vmul.f32 %v958, %v478
    %v1181 = vmul.f32 %v1179, %v1097
    %v1182 = vmul.f32 %v1180, %v1098
    %v1183 = vmul.f32 %v991, %v478
    %v1184 = vmul.f32 %v992, %v478
    %v1185 = vmul.f32 %v1183, %v1107
    %v1186 = vmul.f32 %v1184, %v1108
    %v1187 = vadd.f32 %v1181, %v1185
    %v1188 = vadd.f32 %v1182, %v1186
    %v1189 = vmul.f32 %v971, %v478
    %v1190 = vmul.f32 %v972, %v478
    %v1191 = vmul.f32 %v1189, %v1107
    %v1192 = vmul.f32 %v1190, %v1108
    %v1193 = vmul.f32 %v1005, %v478
    %v1194 = vmul.f32 %v1006, %v478
    %v1195 = vmul.f32 %v1193, %v1117
    %v1196 = vmul.f32 %v1194, %v1118
    %v1197 = vadd.f32 %v1191, %v1195
    %v1198 = vadd.f32 %v1192, %v1196
    %v1199 = vmul.f32 %v985, %v478
    %v1200 = vmul.f32 %v986, %v478
    %v1201 = vmul.f32 %v1199, %v1117
    %v1202 = vmul.f32 %v1200, %v1118
    %v1203 = vmul.f32 %v1019, %v478
    %v1204 = vmul.f32 %v1020, %v478
    %v1205 = vmul.f32 %v1203, %v1127
    %v1206 = vmul.f32 %v1204, %v1128
    %v1207 = vadd.f32 %v1201, %v1205
    %v1208 = vadd.f32 %v1202, %v1206
    %v1209 = vmul.f32 %v999, %v478
    %v1210 = vmul.f32 %v1000, %v478
    %v1211 = vmul.f32 %v1209, %v1127
    %v1212 = vmul.f32 %v1210, %v1128
    %v1213 = vmul.f32 %v1033, %v478
    %v1214 = vmul.f32 %v1034, %v478
    %v1215 = vmul.f32 %v1213, %v1137
    %v1216 = vmul.f32 %v1214, %v1138
    %v1217 = vadd.f32 %v1211, %v1215
    %v1218 = vadd.f32 %v1212, %v1216
    %v1219 = vmul.f32 %v1013, %v478
    %v1220 = vmul.f32 %v1014, %v478
    %v1221 = vmul.f32 %v1219, %v1137
    %v1222 = vmul.f32 %v1220, %v1138
    %v1223 = vmul.f32 %v1047, %v478
    %v1224 = vmul.f32 %v1048, %v478
    %v1225 = vmul.f32 %v1223, %v1147
    %v1226 = vmul.f32 %v1224, %v1148
    %v1227 = vadd.f32 %v1221, %v1225
    %v1228 = vadd.f32 %v1222, %v1226
    %v1229 = vmul.f32 %v1027, %v478
    %v1230 = vmul.f32 %v1028, %v478
    %v1231 = vmul.f32 %v1229, %v1147
    %v1232 = vmul.f32 %v1230, %v1148
    %v1233 = vmul.f32 %v1061, %v478
    %v1234 = vmul.f32 %v1062, %v478
    %v1235 = vmul.f32 %v1233, %v1157
    %v1236 = vmul.f32 %v1234, %v1158
    %v1237 = vadd.f32 %v1231, %v1235
    %v1238 = vadd.f32 %v1232, %v1236
    %1241 = vrot.lane.b32.xlu0 %v1177, 32
    %v1242 = vpop.permute.xlu0 %1241
    %1243 = vrot.lane.b32.xlu0 %v1178, 32
    %v1244 = vpop.permute.xlu0 %1243
    %1249 = vrot.lane.b32.xlu0 %v1187, 64
    %v1250 = vpop.permute.xlu0 %1249
    %1251 = vrot.lane.b32.xlu0 %v1188, 64
    %v1252 = vpop.permute.xlu0 %1251
    %1257 = vrot.lane.b32.xlu0 %v1197, 96
    %v1258 = vpop.permute.xlu0 %1257
    %1259 = vrot.lane.b32.xlu0 %v1198, 96
    %v1260 = vpop.permute.xlu0 %1259
    %1265 = vrot.lane.b32.xlu0 %v1217, 32
    %v1266 = vpop.permute.xlu0 %1265
    %1267 = vrot.lane.b32.xlu0 %v1218, 32
    %v1268 = vpop.permute.xlu0 %1267
    %1273 = vrot.lane.b32.xlu0 %v1227, 64
    %v1274 = vpop.permute.xlu0 %1273
    %1275 = vrot.lane.b32.xlu0 %v1228, 64
    %v1276 = vpop.permute.xlu0 %1275
    %1281 = vrot.lane.b32.xlu0 %v1237, 96
    %v1282 = vpop.permute.xlu0 %1281
    %1283 = vrot.lane.b32.xlu0 %v1238, 96
    %v1284 = vpop.permute.xlu0 %1283
    %v1287 = vsel %vm618, %v1167, %v1242
    %v1288 = vsel %vm618, %v1168, %v1244
    %v1289 = vsel %vm44, %v1287, %v1250
    %v1290 = vsel %vm44, %v1288, %v1252
    %v1291 = vsel %vm629, %v1289, %v1258
    %v1292 = vsel %vm629, %v1290, %v1260
    %v1293 = vsel %vm618, %v1207, %v1266
    %v1294 = vsel %vm618, %v1208, %v1268
    %v1295 = vsel %vm44, %v1293, %v1274
    %v1296 = vsel %vm44, %v1294, %v1276
    %v1297 = vsel %vm629, %v1295, %v1282
    %v1298 = vsel %vm629, %v1296, %v1284
    %1299 = vmatprep.subr.mxu0 0.0
    %1300 = vmatpush1.msra.mxu0 %v795
    %1301 = vmatprep.subr.mxu0 0.0
    %1302 = vmatpush1.msra.mxu0 %v796
    %1303 = vmatprep.subr.mxu0 0.0
    %1304 = vmatpush1.msra.mxu0 %v797
    %1305 = vmatprep.subr.mxu0 0.0
    %1306 = vmatpush1.msra.mxu0 %v798
    %1307 = vmatprep.subr.mxu0 0.0
    %1308 = vmatpush1.msra.mxu0 %v799
    %1309 = vmatprep.subr.mxu0 0.0
    %1310 = vmatpush1.msra.mxu0 %v800
    %1311 = vmatprep.subr.mxu0 0.0
    %1312 = vmatpush1.msra.mxu0 %v801
    %1313 = vmatprep.subr.mxu0 0.0
    %1314 = vmatpush1.msra.mxu0 %v802
    %1315 = vmatprep.subr.mxu0 0.0
    %1316 = vmatpush1.msra.mxu0 %v803
    %1317 = vmatprep.subr.mxu0 0.0
    %1318 = vmatpush1.msra.mxu0 %v804
    %1319 = vmatprep.subr.mxu0 0.0
    %1320 = vmatpush1.msra.mxu0 %v805
    %1321 = vmatprep.subr.mxu0 0.0
    %1322 = vmatpush1.msra.mxu0 %v806
    %1323 = vmatprep.subr.mxu0 0.0
    %1324 = vmatpush1.msra.mxu0 %v807
    %1325 = vmatprep.subr.mxu0 0.0
    %1326 = vmatpush1.msra.mxu0 %v808
    %1327 = vmatprep.subr.mxu0 0.0
    %1328 = vmatpush1.msra.mxu0 %v809
    %1329 = vmatprep.subr.mxu0 0.0
    %1330 = vmatpush1.msra.mxu0 %v810
    %1331 = vmatprep.subr.mxu0 0.0
    %1332 = vmatpush1.msra.mxu0 %v811
    %1333 = vmatprep.subr.mxu0 0.0
    %1334 = vmatpush1.msra.mxu0 %v812
    %1335 = vmatprep.subr.mxu0 0.0
    %1336 = vmatpush1.msra.mxu0 %v813
    %1337 = vmatprep.subr.mxu0 0.0
    %1338 = vmatpush1.msra.mxu0 %v814
    %1339 = vmatprep.subr.mxu0 0.0
    %1340 = vmatpush1.msra.mxu0 %v815
    %1341 = vmatprep.subr.mxu0 0.0
    %1342 = vmatpush1.msra.mxu0 %v816
    %1343 = vmatprep.subr.mxu0 0.0
    %1344 = vmatpush1.msra.mxu0 %v817
    %1345 = vmatprep.subr.mxu0 0.0
    %1346 = vmatpush1.msra.mxu0 %v818
    %1347 = vmatprep.subr.mxu0 0.0
    %1348 = vmatpush1.msra.mxu0 %v819
    %1349 = vmatprep.subr.mxu0 0.0
    %1350 = vmatpush1.msra.mxu0 %v820
    %1351 = vmatprep.subr.mxu0 0.0
    %1352 = vmatpush1.msra.mxu0 %v821
    %1353 = vmatprep.subr.mxu0 0.0
    %1354 = vmatpush1.msra.mxu0 %v822
    %1355 = vmatprep.subr.mxu0 0.0
    %1356 = vmatpush1.msra.mxu0 %v823
    %1357 = vmatprep.subr.mxu0 0.0
    %1358 = vmatpush1.msra.mxu0 %v824
    %1359 = vmatprep.subr.mxu0 0.0
    %1360 = vmatpush1.msra.mxu0 %v825
    %1361 = vmatprep.subr.mxu0 0.0
    %1362 = vmatpush1.msra.mxu0 %v826
    %1363 = vmatprep.mubr.f32.mxu0 %v1297
    %1364 = vmatmul.mubr.f32.gmra.mrb[0].mxu0 %v1291
    %v1365 = vpop.f32.mrb[0].mxu0
    %v1366 = vadd.f32 0.0, %v1365
    %v1367 = vpop.f32.mrb[0].mxu0
    %1368 = vmatprep.mubr.f32.mxu0 %v1298
    %1369 = vmatmul.mubr.f32.gmra.mrb[0].mxu0 %v1292
    %v1370 = vpop.f32.mrb[0].mxu0
    %v1371 = vadd.f32 0.0, %v1370
    %v1372 = vpop.f32.mrb[0].mxu0
    %1373 = vdwg.mxu0
    %v1375 = vsel %vm618, %v839, 0
    %v1378 = vsel %vm618, %v840, 0
    %1380 = vmatprep.subr.mxu0 0.0
    %1381 = vmatpush1.msra.mxu0 %v791
    %1382 = vmatprep.subr.mxu0 0.0
    %1383 = vmatpush1.msra.mxu0 %v792
    %1384 = vmatprep.subr.mxu0 0.0
    %1385 = vmatpush1.msra.mxu0 %v793
    %1386 = vmatprep.subr.mxu0 0.0
    %1387 = vmatpush1.msra.mxu0 %v794
    %1388 = vmatprep.subr.mxu0 0.0
    %1389 = vmatpush1.msra.mxu0 0.0
    %1390 = vmatprep.subr.mxu0 0.0
    %1391 = vmatpush1.msra.mxu0 0.0
    %1392 = vmatprep.subr.mxu0 0.0
    %1393 = vmatpush1.msra.mxu0 0.0
    %1394 = vmatprep.subr.mxu0 0.0
    %1395 = vmatpush1.msra.mxu0 0.0
    %1396 = vmatprep.subr.mxu0 0.0
    %1397 = vmatpush1.msra.mxu0 0.0
    %1398 = vmatprep.subr.mxu0 0.0
    %1399 = vmatpush1.msra.mxu0 0.0
    %1400 = vmatprep.subr.mxu0 0.0
    %1401 = vmatpush1.msra.mxu0 0.0
    %1402 = vmatprep.subr.mxu0 0.0
    %1403 = vmatpush1.msra.mxu0 0.0
    %1404 = vmatprep.subr.mxu0 0.0
    %1405 = vmatpush1.msra.mxu0 0.0
    %1406 = vmatprep.subr.mxu0 0.0
    %1407 = vmatpush1.msra.mxu0 0.0
    %1408 = vmatprep.subr.mxu0 0.0
    %1409 = vmatpush1.msra.mxu0 0.0
    %1410 = vmatprep.subr.mxu0 0.0
    %1411 = vmatpush1.msra.mxu0 0.0
    %1412 = vmatprep.subr.mxu0 0.0
    %1413 = vmatpush1.msra.mxu0 0.0
    %1414 = vmatprep.subr.mxu0 0.0
    %1415 = vmatpush1.msra.mxu0 0.0
    %1416 = vmatprep.subr.mxu0 0.0
    %1417 = vmatpush1.msra.mxu0 0.0
    %1418 = vmatprep.subr.mxu0 0.0
    %1419 = vmatpush1.msra.mxu0 0.0
    %1420 = vmatprep.subr.mxu0 0.0
    %1421 = vmatpush1.msra.mxu0 0.0
    %1422 = vmatprep.subr.mxu0 0.0
    %1423 = vmatpush1.msra.mxu0 0.0
    %1424 = vmatprep.subr.mxu0 0.0
    %1425 = vmatpush1.msra.mxu0 0.0
    %1426 = vmatprep.subr.mxu0 0.0
    %1427 = vmatpush1.msra.mxu0 0.0
    %1428 = vmatprep.subr.mxu0 0.0
    %1429 = vmatpush1.msra.mxu0 0.0
    %1430 = vmatprep.subr.mxu0 0.0
    %1431 = vmatpush1.msra.mxu0 0.0
    %1432 = vmatprep.subr.mxu0 0.0
    %1433 = vmatpush1.msra.mxu0 0.0
    %1434 = vmatprep.subr.mxu0 0.0
    %1435 = vmatpush1.msra.mxu0 0.0
    %1436 = vmatprep.subr.mxu0 0.0
    %1437 = vmatpush1.msra.mxu0 0.0
    %1438 = vmatprep.subr.mxu0 0.0
    %1439 = vmatpush1.msra.mxu0 0.0
    %1440 = vmatprep.subr.mxu0 0.0
    %1441 = vmatpush1.msra.mxu0 0.0
    %1442 = vmatprep.subr.mxu0 0.0
    %1443 = vmatpush1.msra.mxu0 0.0
    %1444 = vmatprep.mubr.f32.mxu0 0.0
    %1445 = vmatmul.mubr.f32.gmra.mrb[0].mxu0 %v1375
    %v1446 = vpop.f32.mrb[0].mxu0
    %v1447 = vadd.f32 %v1366, %v1446
    %v1448 = vpop.f32.mrb[0].mxu0
    %1449 = vmatprep.mubr.f32.mxu0 0.0
    %1450 = vmatmul.mubr.f32.gmra.mrb[0].mxu0 %v1378
    %v1451 = vpop.f32.mrb[0].mxu0
    %v1452 = vadd.f32 %v1371, %v1451
    %v1453 = vpop.f32.mrb[0].mxu0
    %1454 = vdwg.mxu0
    %v1455 = vadd.f32 %v118, %v1447
    %v1456 = vadd.f32 %v123, %v1452
    %1457 = vst.msk [vmem:[#allocation2] sm:$0xff] %vm615, %v1455
    %1458 = vst.msk [vmem:[#allocation2 + $0x8] sm:$0xff] %vm615, %v1456
    // Predicated region
    $region30: #{blstm_res_conversion_forward.9} parent=1 // pred_check
      _
    $region31: #{blstm_res_conversion_forward.9} parent=1 // pred_check_branch
      %1460 = sbr.rel (0) target = $region33
    $region32: #{blstm_res_conversion_forward.9} parent=1 // pred_region
      %s1462 = ssub.s32 256, 256
      %1463 = vsyncadd [#allocation3], %s1462
      %s1464 = sshll.u32 [#allocation2], 4
      %s1465 = int_to_ptr.vmem [resolvable:$true] %s1464
      %1470 = dma.vmem_to_hbm [thread:$0]  %s1465, 256, %s7, [#allocation3], 128, 128, 8
    $region33: #{blstm_res_conversion_forward.9} parent=1 // pred_fallthru
      _
    // Predicated region
    $region34: #{blstm_res_conversion_forward.9} parent=1 // pred_check
      _
    $region35: #{blstm_res_conversion_forward.9} parent=1 // pred_check_branch
      %1472 = sbr.rel (0) target = $region37
    $region36: #{blstm_res_conversion_forward.9} parent=1 // pred_region
      %1473 = dma.done [#allocation3], 256
    $region37: #{blstm_res_conversion_forward.9} parent=1 // pred_fallthru
      _
    %1474 = vsyncpa [#allocation3], 1

</llo_original>
